<compile_context>
chip_gen: v6e
topology: v6e:2x2x1
jax: 0.10.0
libtpu: 0.0.40
codegen_flags: <defaults>
</compile_context>

<pallas_src>
import jax
import jax.numpy as jnp
from jax.experimental import pallas as pl
from jax.experimental.pallas import tpu as pltpu

BN_EPS = 1e-5  # nn.BatchNorm1d default eps


# ----------------------------- Pallas kernel -------------------------------

def eeg_encoder_kernel(x_ref, w1_ref, w2_ref, g1_ref, be1_ref, g2_ref,
                       be2_ref, pos_ref, o_ref, y1_ref):
    """Fused conv1(k7,s2) + BN + SiLU + conv2(k5,s2) + BN + SiLU + pos-add.

    x_ref   : [B, 4, L2 + 2, C_in]   phase-split, zero-padded input
    w1_ref  : [7, C_in, C_mid]       conv1 weight, tap-major
    w2_ref  : [5, C_mid, D]          conv2 weight, tap-major
    g*/be*  : [1, C]                 BatchNorm affine parameters
    pos_ref : [L2, D]                positional embedding (shared over batch)
    o_ref   : [B, L2, D]             output
    y1_ref  : [B, 2, L2 + 2, C_mid]  VMEM scratch: phase-split stage-1 act.
    """
    B, L2, D = o_ref.shape
    C_mid = y1_ref.shape[-1]
    K1 = w1_ref.shape[0]
    K2 = w2_ref.shape[0]
    f32 = jnp.float32

    # Zero the scratch once so the +/-1 halo rows used by stage 2 are literal
    # zeros (conv2 zero-pads the *activated* stage-1 output).
    y1_ref[...] = jnp.zeros_like(y1_ref)

    # ---- stage 1: Conv1d(k=7, s=2, p=3) as 7 shifted matmuls per phase -----
    s1 = jnp.zeros((1, C_mid), f32)           # per-channel sum
    q1 = jnp.zeros((1, C_mid), f32)           # per-channel sum of squares
    accs1 = []
    for b in range(B):
        for r in range(2):                    # output phase: t1 = 2*s + r
            acc = jnp.zeros((L2, C_mid), f32)
            for tap in range(K1):
                ph = (2 * r + tap) % 4
                off = (2 * r + tap) // 4
                xs = x_ref[b, ph, pl.ds(off, L2), :]            # [L2, C_in]
                acc = acc + jnp.dot(xs, w1_ref[tap],
                                    preferred_element_type=f32)
            s1 = s1 + jnp.sum(acc, axis=0, keepdims=True)
            q1 = q1 + jnp.sum(acc * acc, axis=0, keepdims=True)
            accs1.append((b, r, acc))

    n1 = float(B * 2 * L2)                    # == B * L1 elements per channel
    mean1 = s1 / n1
    var1 = q1 / n1 - mean1 * mean1            # biased var (training-mode BN)
    scale1 = jax.lax.rsqrt(var1 + BN_EPS) * g1_ref[...]
    shift1 = be1_ref[...] - mean1 * scale1
    for b, r, acc in accs1:
        a = acc * scale1 + shift1
        a = a * jax.nn.sigmoid(a)                               # SiLU
        y1_ref[b, r, pl.ds(1, L2), :] = a                       # halo stays 0

    # ---- stage 2: Conv1d(k=5, s=2, p=2) on the phase-split scratch ---------
    s2 = jnp.zeros((1, D), f32)
    q2 = jnp.zeros((1, D), f32)
    accs2 = []
    for b in range(B):
        acc = jnp.zeros((L2, D), f32)
        for tap in range(K2):
            r = tap % 2
            off = tap // 2
            ys = y1_ref[b, r, pl.ds(off, L2), :]                # [L2, C_mid]
            acc = acc + jnp.dot(ys, w2_ref[tap],
                                preferred_element_type=f32)
        s2 = s2 + jnp.sum(acc, axis=0, keepdims=True)
        q2 = q2 + jnp.sum(acc * acc, axis=0, keepdims=True)
        accs2.append((b, acc))

    n2 = float(B * L2)
    mean2 = s2 / n2
    var2 = q2 / n2 - mean2 * mean2
    scale2 = jax.lax.rsqrt(var2 + BN_EPS) * g2_ref[...]
    shift2 = be2_ref[...] - mean2 * scale2
    pos = pos_ref[...]                        # broadcast over batch in-kernel
    for b, acc in accs2:
        a = acc * scale2 + shift2
        a = a * jax.nn.sigmoid(a)
        o_ref[b] = a + pos


# ------------------------------- JAX glue ----------------------------------

def eeg_encoder_forward(x, params):
    """x: [B, eeg_channels, seq_len] -> [B, seq_len // 4, d_model]."""
    w1, b1, g1, be1, w2, b2, g2, be2, pos = params
    del b1, b2  # conv biases cancel exactly under training-mode BatchNorm
    B, C_in, L = x.shape
    assert L % 4 == 0
    C_mid = w1.shape[0]
    D = w2.shape[0]
    L2 = L // 4
    P = L2 + 2                                # padded phase length

    # Host-side prep: channel-last, zero-pad time (3 left / 5 right), split the
    # time axis into 4 stride-phases.  Cheap relayout of the raw input; no
    # im2col expansion and no inter-stage HBM traffic.
    x_cl = jnp.transpose(x, (0, 2, 1))                            # [B, L, C_in]
    x_pad = jnp.pad(x_cl, ((0, 0), (3, 4 * P - L - 3), (0, 0)))   # [B, 4P, C_in]
    x_ph = x_pad.reshape(B, P, 4, C_in).transpose(0, 2, 1, 3)     # [B, 4, P, C_in]

    w1_t = jnp.transpose(w1, (2, 1, 0))       # [7, C_in, C_mid]
    w2_t = jnp.transpose(w2, (2, 1, 0))       # [5, C_mid, D]
    pos2 = pos[0, :L2, :]                     # [L2, D] — not tiled over batch

    vmem = pl.BlockSpec(memory_space=pltpu.MemorySpace.VMEM)
    # TODO(synk): for production sizes (seq_len=10000, d_model=768, large B),
    # add a row-tiled grid with a two-pass BatchNorm (stats-accumulation pass,
    # then normalize pass) and bf16 matmul inputs with f32 accumulation; at the
    # sizes exercised here the whole fused problem fits comfortably in VMEM,
    # so a single un-gridded invocation is both correct and fastest.
    return pl.pallas_call(
        eeg_encoder_kernel,
        out_shape=jax.ShapeDtypeStruct((B, L2, D), jnp.float32),
        in_specs=[vmem] * 8,
        out_specs=vmem,
        scratch_shapes=[pltpu.VMEM((B, 2, P, C_mid), jnp.float32)],
    )(x_ph, w1_t, w2_t,
      g1.reshape(1, -1), be1.reshape(1, -1),
      g2.reshape(1, -1), be2.reshape(1, -1), pos2)


# --------------------------- Reference (pure JAX) ---------------------------

def _bn_silu_ref(y, gamma, beta):
    mean = y.mean(axis=(0, 2), keepdims=True)
    var = jnp.square(y - mean).mean(axis=(0, 2), keepdims=True)
    y = (y - mean) / jnp.sqrt(var + BN_EPS) * gamma[None, :, None] + beta[None, :, None]
    return y * jax.nn.sigmoid(y)


def reference_forward(x, params):
    w1, b1, g1, be1, w2, b2, g2, be2, pos = params
    dn = ('NCH', 'OIH', 'NCH')
    y = jax.lax.conv_general_dilated(x, w1, (2,), [(3, 3)], dimension_numbers=dn)
    y = y + b1[None, :, None]
    y = _bn_silu_ref(y, g1, be1)
    y = jax.lax.conv_general_dilated(y, w2, (2,), [(2, 2)], dimension_numbers=dn)
    y = y + b2[None, :, None]
    y = _bn_silu_ref(y, g2, be2)
    y = jnp.transpose(y, (0, 2, 1))
    return y + pos[:, : y.shape[1], :]


# ---------------------------------- Main ------------------------------------

if __name__ == "__main__":
    # Small config consistent with the module:
    #   eeg_channels=8, d_model=32, sample_rate=64, time_window=1.0 -> seq_len=64
    B, C_EEG, D_MODEL, SEQ_LEN = 2, 8, 32, 64
    C_MID = D_MODEL // 2

    key = jax.random.PRNGKey(0)
    kx, kw1, kb1, kw2, kb2, kp = jax.random.split(key, 6)

    x = jax.random.normal(kx, (B, C_EEG, SEQ_LEN), jnp.float32)

    # Deterministic synthetic parameters (shapes per nn.Conv1d / BatchNorm1d).
    w1 = 0.1 * jax.random.normal(kw1, (C_MID, C_EEG, 7), jnp.float32)
    b1 = 0.1 * jax.random.normal(kb1, (C_MID,), jnp.float32)
    g1 = jnp.ones((C_MID,), jnp.float32)
    be1 = jnp.zeros((C_MID,), jnp.float32)
    w2 = 0.1 * jax.random.normal(kw2, (D_MODEL, C_MID, 5), jnp.float32)
    b2 = 0.1 * jax.random.normal(kb2, (D_MODEL,), jnp.float32)
    g2 = jnp.ones((D_MODEL,), jnp.float32)
    be2 = jnp.zeros((D_MODEL,), jnp.float32)
    pos = jax.random.normal(kp, (1, SEQ_LEN // 4, D_MODEL), jnp.float32)

    params = (w1, b1, g1, be1, w2, b2, g2, be2, pos)

    out = jax.jit(eeg_encoder_forward)(x, params)
    out = jax.block_until_ready(out)

    assert out.shape == (B, SEQ_LEN // 4, D_MODEL), out.shape

    ref = reference_forward(x, params)
    assert jnp.allclose(out, ref, rtol=1e-3, atol=1e-3), (
        float(jnp.max(jnp.abs(out - ref))))

    print("KERNEL_OK")
</pallas_src>

<mosaic_0001>
module attributes {stable_mosaic.version = 11 : i64} {
  func.func @eeg_encoder_kernel(%arg0: memref<2x4x18x8xf32, #tpu.memory_space<vmem>>, %arg1: memref<7x8x16xf32, #tpu.memory_space<vmem>>, %arg2: memref<5x16x32xf32, #tpu.memory_space<vmem>>, %arg3: memref<1x16xf32, #tpu.memory_space<vmem>>, %arg4: memref<1x16xf32, #tpu.memory_space<vmem>>, %arg5: memref<1x32xf32, #tpu.memory_space<vmem>>, %arg6: memref<1x32xf32, #tpu.memory_space<vmem>>, %arg7: memref<16x32xf32, #tpu.memory_space<vmem>>, %arg8: memref<2x16x32xf32, #tpu.memory_space<vmem>>, %arg9: memref<2x2x18x16xf32, #tpu.memory_space<vmem>>) attributes {dimension_semantics = [], scalar_prefetch = 0 : i64, scratch_operands = 1 : i64, tpu.core_type = #tpu.core_type<tc>} {
    %cst = arith.constant 0.000000e+00 : f32
    %0 = vector.broadcast %cst : f32 to vector<2x2x18x16xf32>
    %c0 = arith.constant 0 : index
    %c0_0 = arith.constant 0 : index
    %c0_1 = arith.constant 0 : index
    %c0_2 = arith.constant 0 : index
    %1 = vector.load %arg9[%c0, %c0_0, %c0_1, %c0_2] : memref<2x2x18x16xf32, #tpu.memory_space<vmem>>, vector<2x2x18x16xf32>
    tpu.vector_store %arg9[%c0, %c0_0, %c0_1, %c0_2], %0 {strides = array<i32>} : memref<2x2x18x16xf32, #tpu.memory_space<vmem>>, vector<2x2x18x16xf32>,
    %cst_3 = arith.constant 0.000000e+00 : f32
    %2 = vector.broadcast %cst_3 : f32 to vector<1x16xf32>
    %cst_4 = arith.constant 0.000000e+00 : f32
    %3 = vector.broadcast %cst_4 : f32 to vector<1x16xf32>
    %cst_5 = arith.constant 0.000000e+00 : f32
    %4 = vector.broadcast %cst_5 : f32 to vector<16x16xf32>
    %c0_6 = arith.constant 0 : index
    %c0_7 = arith.constant 0 : index
    %c0_8 = arith.constant 0 : index
    %c0_9 = arith.constant 0 : index
    %5 = vector.load %arg0[%c0_6, %c0_7, %c0_8, %c0_9] : memref<2x4x18x8xf32, #tpu.memory_space<vmem>>, vector<1x1x16x8xf32>
    %6 = vector.shape_cast %5 : vector<1x1x16x8xf32> to vector<16x8xf32>
    %c0_10 = arith.constant 0 : index
    %c0_11 = arith.constant 0 : index
    %c0_12 = arith.constant 0 : index
    %7 = vector.load %arg1[%c0_10, %c0_11, %c0_12] : memref<7x8x16xf32, #tpu.memory_space<vmem>>, vector<1x8x16xf32>
    %8 = vector.shape_cast %7 : vector<1x8x16xf32> to vector<8x16xf32>
    %cst_13 = arith.constant dense<0.000000e+00> : vector<16x16xf32>
    %9 = tpu.matmul %6, %8, %cst_13 {dimension_numbers = #tpu.dot_dimension_numbers<[1], [0], [0], [1], [0, 0, 1, 1], [], []>} : vector<16x8xf32>, vector<8x16xf32>, vector<16x16xf32> -> vector<16x16xf32>
    %10 = arith.addf %4, %9 : vector<16x16xf32>
    %c0_14 = arith.constant 0 : index
    %c1 = arith.constant 1 : index
    %c0_15 = arith.constant 0 : index
    %c0_16 = arith.constant 0 : index
    %11 = vector.load %arg0[%c0_14, %c1, %c0_15, %c0_16] : memref<2x4x18x8xf32, #tpu.memory_space<vmem>>, vector<1x1x16x8xf32>
    %12 = vector.shape_cast %11 : vector<1x1x16x8xf32> to vector<16x8xf32>
    %c1_17 = arith.constant 1 : index
    %c0_18 = arith.constant 0 : index
    %c0_19 = arith.constant 0 : index
    %13 = vector.load %arg1[%c1_17, %c0_18, %c0_19] : memref<7x8x16xf32, #tpu.memory_space<vmem>>, vector<1x8x16xf32>
    %14 = vector.shape_cast %13 : vector<1x8x16xf32> to vector<8x16xf32>
    %cst_20 = arith.constant dense<0.000000e+00> : vector<16x16xf32>
    %15 = tpu.matmul %12, %14, %cst_20 {dimension_numbers = #tpu.dot_dimension_numbers<[1], [0], [0], [1], [0, 0, 1, 1], [], []>} : vector<16x8xf32>, vector<8x16xf32>, vector<16x16xf32> -> vector<16x16xf32>
    %16 = arith.addf %10, %15 : vector<16x16xf32>
    %c0_21 = arith.constant 0 : index
    %c2 = arith.constant 2 : index
    %c0_22 = arith.constant 0 : index
    %c0_23 = arith.constant 0 : index
    %17 = vector.load %arg0[%c0_21, %c2, %c0_22, %c0_23] : memref<2x4x18x8xf32, #tpu.memory_space<vmem>>, vector<1x1x16x8xf32>
    %18 = vector.shape_cast %17 : vector<1x1x16x8xf32> to vector<16x8xf32>
    %c2_24 = arith.constant 2 : index
    %c0_25 = arith.constant 0 : index
    %c0_26 = arith.constant 0 : index
    %19 = vector.load %arg1[%c2_24, %c0_25, %c0_26] : memref<7x8x16xf32, #tpu.memory_space<vmem>>, vector<1x8x16xf32>
    %20 = vector.shape_cast %19 : vector<1x8x16xf32> to vector<8x16xf32>
    %cst_27 = arith.constant dense<0.000000e+00> : vector<16x16xf32>
    %21 = tpu.matmul %18, %20, %cst_27 {dimension_numbers = #tpu.dot_dimension_numbers<[1], [0], [0], [1], [0, 0, 1, 1], [], []>} : vector<16x8xf32>, vector<8x16xf32>, vector<16x16xf32> -> vector<16x16xf32>
    %22 = arith.addf %16, %21 : vector<16x16xf32>
    %c0_28 = arith.constant 0 : index
    %c3 = arith.constant 3 : index
    %c0_29 = arith.constant 0 : index
    %c0_30 = arith.constant 0 : index
    %23 = vector.load %arg0[%c0_28, %c3, %c0_29, %c0_30] : memref<2x4x18x8xf32, #tpu.memory_space<vmem>>, vector<1x1x16x8xf32>
    %24 = vector.shape_cast %23 : vector<1x1x16x8xf32> to vector<16x8xf32>
    %c3_31 = arith.constant 3 : index
    %c0_32 = arith.constant 0 : index
    %c0_33 = arith.constant 0 : index
    %25 = vector.load %arg1[%c3_31, %c0_32, %c0_33] : memref<7x8x16xf32, #tpu.memory_space<vmem>>, vector<1x8x16xf32>
    %26 = vector.shape_cast %25 : vector<1x8x16xf32> to vector<8x16xf32>
    %cst_34 = arith.constant dense<0.000000e+00> : vector<16x16xf32>
    %27 = tpu.matmul %24, %26, %cst_34 {dimension_numbers = #tpu.dot_dimension_numbers<[1], [0], [0], [1], [0, 0, 1, 1], [], []>} : vector<16x8xf32>, vector<8x16xf32>, vector<16x16xf32> -> vector<16x16xf32>
    %28 = arith.addf %22, %27 : vector<16x16xf32>
    %c0_35 = arith.constant 0 : index
    %c0_36 = arith.constant 0 : index
    %c1_37 = arith.constant 1 : index
    %c0_38 = arith.constant 0 : index
    %29 = vector.load %arg0[%c0_35, %c0_36, %c1_37, %c0_38] : memref<2x4x18x8xf32, #tpu.memory_space<vmem>>, vector<1x1x16x8xf32>
    %30 = vector.shape_cast %29 : vector<1x1x16x8xf32> to vector<16x8xf32>
    %c4 = arith.constant 4 : index
    %c0_39 = arith.constant 0 : index
    %c0_40 = arith.constant 0 : index
    %31 = vector.load %arg1[%c4, %c0_39, %c0_40] : memref<7x8x16xf32, #tpu.memory_space<vmem>>, vector<1x8x16xf32>
    %32 = vector.shape_cast %31 : vector<1x8x16xf32> to vector<8x16xf32>
    %cst_41 = arith.constant dense<0.000000e+00> : vector<16x16xf32>
    %33 = tpu.matmul %30, %32, %cst_41 {dimension_numbers = #tpu.dot_dimension_numbers<[1], [0], [0], [1], [0, 0, 1, 1], [], []>} : vector<16x8xf32>, vector<8x16xf32>, vector<16x16xf32> -> vector<16x16xf32>
    %34 = arith.addf %28, %33 : vector<16x16xf32>
    %c0_42 = arith.constant 0 : index
    %c1_43 = arith.constant 1 : index
    %c1_44 = arith.constant 1 : index
    %c0_45 = arith.constant 0 : index
    %35 = vector.load %arg0[%c0_42, %c1_43, %c1_44, %c0_45] : memref<2x4x18x8xf32, #tpu.memory_space<vmem>>, vector<1x1x16x8xf32>
    %36 = vector.shape_cast %35 : vector<1x1x16x8xf32> to vector<16x8xf32>
    %c5 = arith.constant 5 : index
    %c0_46 = arith.constant 0 : index
    %c0_47 = arith.constant 0 : index
    %37 = vector.load %arg1[%c5, %c0_46, %c0_47] : memref<7x8x16xf32, #tpu.memory_space<vmem>>, vector<1x8x16xf32>
    %38 = vector.shape_cast %37 : vector<1x8x16xf32> to vector<8x16xf32>
    %cst_48 = arith.constant dense<0.000000e+00> : vector<16x16xf32>
    %39 = tpu.matmul %36, %38, %cst_48 {dimension_numbers = #tpu.dot_dimension_numbers<[1], [0], [0], [1], [0, 0, 1, 1], [], []>} : vector<16x8xf32>, vector<8x16xf32>, vector<16x16xf32> -> vector<16x16xf32>
    %40 = arith.addf %34, %39 : vector<16x16xf32>
    %c0_49 = arith.constant 0 : index
    %c2_50 = arith.constant 2 : index
    %c1_51 = arith.constant 1 : index
    %c0_52 = arith.constant 0 : index
    %41 = vector.load %arg0[%c0_49, %c2_50, %c1_51, %c0_52] : memref<2x4x18x8xf32, #tpu.memory_space<vmem>>, vector<1x1x16x8xf32>
    %42 = vector.shape_cast %41 : vector<1x1x16x8xf32> to vector<16x8xf32>
    %c6 = arith.constant 6 : index
    %c0_53 = arith.constant 0 : index
    %c0_54 = arith.constant 0 : index
    %43 = vector.load %arg1[%c6, %c0_53, %c0_54] : memref<7x8x16xf32, #tpu.memory_space<vmem>>, vector<1x8x16xf32>
    %44 = vector.shape_cast %43 : vector<1x8x16xf32> to vector<8x16xf32>
    %cst_55 = arith.constant dense<0.000000e+00> : vector<16x16xf32>
    %45 = tpu.matmul %42, %44, %cst_55 {dimension_numbers = #tpu.dot_dimension_numbers<[1], [0], [0], [1], [0, 0, 1, 1], [], []>} : vector<16x8xf32>, vector<8x16xf32>, vector<16x16xf32> -> vector<16x16xf32>
    %46 = arith.addf %40, %45 : vector<16x16xf32>
    %cst_56 = arith.constant dense<0.000000e+00> : vector<16xf32>
    %47 = vector.multi_reduction <add>, %46, %cst_56 [0] : vector<16x16xf32> to vector<16xf32>
    %48 = vector.shape_cast %47 : vector<16xf32> to vector<1x16xf32>
    %49 = arith.addf %2, %48 : vector<1x16xf32>
    %50 = arith.mulf %46, %46 : vector<16x16xf32>
    %cst_57 = arith.constant dense<0.000000e+00> : vector<16xf32>
    %51 = vector.multi_reduction <add>, %50, %cst_57 [0] : vector<16x16xf32> to vector<16xf32>
    %52 = vector.shape_cast %51 : vector<16xf32> to vector<1x16xf32>
    %53 = arith.addf %3, %52 : vector<1x16xf32>
    %cst_58 = arith.constant 0.000000e+00 : f32
    %54 = vector.broadcast %cst_58 : f32 to vector<16x16xf32>
    %c0_59 = arith.constant 0 : index
    %c2_60 = arith.constant 2 : index
    %c0_61 = arith.constant 0 : index
    %c0_62 = arith.constant 0 : index
    %55 = vector.load %arg0[%c0_59, %c2_60, %c0_61, %c0_62] : memref<2x4x18x8xf32, #tpu.memory_space<vmem>>, vector<1x1x16x8xf32>
    %56 = vector.shape_cast %55 : vector<1x1x16x8xf32> to vector<16x8xf32>
    %c0_63 = arith.constant 0 : index
    %c0_64 = arith.constant 0 : index
    %c0_65 = arith.constant 0 : index
    %57 = vector.load %arg1[%c0_63, %c0_64, %c0_65] : memref<7x8x16xf32, #tpu.memory_space<vmem>>, vector<1x8x16xf32>
    %58 = vector.shape_cast %57 : vector<1x8x16xf32> to vector<8x16xf32>
    %cst_66 = arith.constant dense<0.000000e+00> : vector<16x16xf32>
    %59 = tpu.matmul %56, %58, %cst_66 {dimension_numbers = #tpu.dot_dimension_numbers<[1], [0], [0], [1], [0, 0, 1, 1], [], []>} : vector<16x8xf32>, vector<8x16xf32>, vector<16x16xf32> -> vector<16x16xf32>
    %60 = arith.addf %54, %59 : vector<16x16xf32>
    %c0_67 = arith.constant 0 : index
    %c3_68 = arith.constant 3 : index
    %c0_69 = arith.constant 0 : index
    %c0_70 = arith.constant 0 : index
    %61 = vector.load %arg0[%c0_67, %c3_68, %c0_69, %c0_70] : memref<2x4x18x8xf32, #tpu.memory_space<vmem>>, vector<1x1x16x8xf32>
    %62 = vector.shape_cast %61 : vector<1x1x16x8xf32> to vector<16x8xf32>
    %c1_71 = arith.constant 1 : index
    %c0_72 = arith.constant 0 : index
    %c0_73 = arith.constant 0 : index
    %63 = vector.load %arg1[%c1_71, %c0_72, %c0_73] : memref<7x8x16xf32, #tpu.memory_space<vmem>>, vector<1x8x16xf32>
    %64 = vector.shape_cast %63 : vector<1x8x16xf32> to vector<8x16xf32>
    %cst_74 = arith.constant dense<0.000000e+00> : vector<16x16xf32>
    %65 = tpu.matmul %62, %64, %cst_74 {dimension_numbers = #tpu.dot_dimension_numbers<[1], [0], [0], [1], [0, 0, 1, 1], [], []>} : vector<16x8xf32>, vector<8x16xf32>, vector<16x16xf32> -> vector<16x16xf32>
    %66 = arith.addf %60, %65 : vector<16x16xf32>
    %c0_75 = arith.constant 0 : index
    %c0_76 = arith.constant 0 : index
    %c1_77 = arith.constant 1 : index
    %c0_78 = arith.constant 0 : index
    %67 = vector.load %arg0[%c0_75, %c0_76, %c1_77, %c0_78] : memref<2x4x18x8xf32, #tpu.memory_space<vmem>>, vector<1x1x16x8xf32>
    %68 = vector.shape_cast %67 : vector<1x1x16x8xf32> to vector<16x8xf32>
    %c2_79 = arith.constant 2 : index
    %c0_80 = arith.constant 0 : index
    %c0_81 = arith.constant 0 : index
    %69 = vector.load %arg1[%c2_79, %c0_80, %c0_81] : memref<7x8x16xf32, #tpu.memory_space<vmem>>, vector<1x8x16xf32>
    %70 = vector.shape_cast %69 : vector<1x8x16xf32> to vector<8x16xf32>
    %cst_82 = arith.constant dense<0.000000e+00> : vector<16x16xf32>
    %71 = tpu.matmul %68, %70, %cst_82 {dimension_numbers = #tpu.dot_dimension_numbers<[1], [0], [0], [1], [0, 0, 1, 1], [], []>} : vector<16x8xf32>, vector<8x16xf32>, vector<16x16xf32> -> vector<16x16xf32>
    %72 = arith.addf %66, %71 : vector<16x16xf32>
    %c0_83 = arith.constant 0 : index
    %c1_84 = arith.constant 1 : index
    %c1_85 = arith.constant 1 : index
    %c0_86 = arith.constant 0 : index
    %73 = vector.load %arg0[%c0_83, %c1_84, %c1_85, %c0_86] : memref<2x4x18x8xf32, #tpu.memory_space<vmem>>, vector<1x1x16x8xf32>
    %74 = vector.shape_cast %73 : vector<1x1x16x8xf32> to vector<16x8xf32>
    %c3_87 = arith.constant 3 : index
    %c0_88 = arith.constant 0 : index
    %c0_89 = arith.constant 0 : index
    %75 = vector.load %arg1[%c3_87, %c0_88, %c0_89] : memref<7x8x16xf32, #tpu.memory_space<vmem>>, vector<1x8x16xf32>
    %76 = vector.shape_cast %75 : vector<1x8x16xf32> to vector<8x16xf32>
    %cst_90 = arith.constant dense<0.000000e+00> : vector<16x16xf32>
    %77 = tpu.matmul %74, %76, %cst_90 {dimension_numbers = #tpu.dot_dimension_numbers<[1], [0], [0], [1], [0, 0, 1, 1], [], []>} : vector<16x8xf32>, vector<8x16xf32>, vector<16x16xf32> -> vector<16x16xf32>
    %78 = arith.addf %72, %77 : vector<16x16xf32>
    %c0_91 = arith.constant 0 : index
    %c2_92 = arith.constant 2 : index
    %c1_93 = arith.constant 1 : index
    %c0_94 = arith.constant 0 : index
    %79 = vector.load %arg0[%c0_91, %c2_92, %c1_93, %c0_94] : memref<2x4x18x8xf32, #tpu.memory_space<vmem>>, vector<1x1x16x8xf32>
    %80 = vector.shape_cast %79 : vector<1x1x16x8xf32> to vector<16x8xf32>
    %c4_95 = arith.constant 4 : index
    %c0_96 = arith.constant 0 : index
    %c0_97 = arith.constant 0 : index
    %81 = vector.load %arg1[%c4_95, %c0_96, %c0_97] : memref<7x8x16xf32, #tpu.memory_space<vmem>>, vector<1x8x16xf32>
    %82 = vector.shape_cast %81 : vector<1x8x16xf32> to vector<8x16xf32>
    %cst_98 = arith.constant dense<0.000000e+00> : vector<16x16xf32>
    %83 = tpu.matmul %80, %82, %cst_98 {dimension_numbers = #tpu.dot_dimension_numbers<[1], [0], [0], [1], [0, 0, 1, 1], [], []>} : vector<16x8xf32>, vector<8x16xf32>, vector<16x16xf32> -> vector<16x16xf32>
    %84 = arith.addf %78, %83 : vector<16x16xf32>
    %c0_99 = arith.constant 0 : index
    %c3_100 = arith.constant 3 : index
    %c1_101 = arith.constant 1 : index
    %c0_102 = arith.constant 0 : index
    %85 = vector.load %arg0[%c0_99, %c3_100, %c1_101, %c0_102] : memref<2x4x18x8xf32, #tpu.memory_space<vmem>>, vector<1x1x16x8xf32>
    %86 = vector.shape_cast %85 : vector<1x1x16x8xf32> to vector<16x8xf32>
    %c5_103 = arith.constant 5 : index
    %c0_104 = arith.constant 0 : index
    %c0_105 = arith.constant 0 : index
    %87 = vector.load %arg1[%c5_103, %c0_104, %c0_105] : memref<7x8x16xf32, #tpu.memory_space<vmem>>, vector<1x8x16xf32>
    %88 = vector.shape_cast %87 : vector<1x8x16xf32> to vector<8x16xf32>
    %cst_106 = arith.constant dense<0.000000e+00> : vector<16x16xf32>
    %89 = tpu.matmul %86, %88, %cst_106 {dimension_numbers = #tpu.dot_dimension_numbers<[1], [0], [0], [1], [0, 0, 1, 1], [], []>} : vector<16x8xf32>, vector<8x16xf32>, vector<16x16xf32> -> vector<16x16xf32>
    %90 = arith.addf %84, %89 : vector<16x16xf32>
    %c0_107 = arith.constant 0 : index
    %c0_108 = arith.constant 0 : index
    %c2_109 = arith.constant 2 : index
    %c0_110 = arith.constant 0 : index
    %91 = vector.load %arg0[%c0_107, %c0_108, %c2_109, %c0_110] : memref<2x4x18x8xf32, #tpu.memory_space<vmem>>, vector<1x1x16x8xf32>
    %92 = vector.shape_cast %91 : vector<1x1x16x8xf32> to vector<16x8xf32>
    %c6_111 = arith.constant 6 : index
    %c0_112 = arith.constant 0 : index
    %c0_113 = arith.constant 0 : index
    %93 = vector.load %arg1[%c6_111, %c0_112, %c0_113] : memref<7x8x16xf32, #tpu.memory_space<vmem>>, vector<1x8x16xf32>
    %94 = vector.shape_cast %93 : vector<1x8x16xf32> to vector<8x16xf32>
    %cst_114 = arith.constant dense<0.000000e+00> : vector<16x16xf32>
    %95 = tpu.matmul %92, %94, %cst_114 {dimension_numbers = #tpu.dot_dimension_numbers<[1], [0], [0], [1], [0, 0, 1, 1], [], []>} : vector<16x8xf32>, vector<8x16xf32>, vector<16x16xf32> -> vector<16x16xf32>
    %96 = arith.addf %90, %95 : vector<16x16xf32>
    %cst_115 = arith.constant dense<0.000000e+00> : vector<16xf32>
    %97 = vector.multi_reduction <add>, %96, %cst_115 [0] : vector<16x16xf32> to vector<16xf32>
    %98 = vector.shape_cast %97 : vector<16xf32> to vector<1x16xf32>
    %99 = arith.addf %49, %98 : vector<1x16xf32>
    %100 = arith.mulf %96, %96 : vector<16x16xf32>
    %cst_116 = arith.constant dense<0.000000e+00> : vector<16xf32>
    %101 = vector.multi_reduction <add>, %100, %cst_116 [0] : vector<16x16xf32> to vector<16xf32>
    %102 = vector.shape_cast %101 : vector<16xf32> to vector<1x16xf32>
    %103 = arith.addf %53, %102 : vector<1x16xf32>
    %cst_117 = arith.constant 0.000000e+00 : f32
    %104 = vector.broadcast %cst_117 : f32 to vector<16x16xf32>
    %c1_118 = arith.constant 1 : index
    %c0_119 = arith.constant 0 : index
    %c0_120 = arith.constant 0 : index
    %c0_121 = arith.constant 0 : index
    %105 = vector.load %arg0[%c1_118, %c0_119, %c0_120, %c0_121] : memref<2x4x18x8xf32, #tpu.memory_space<vmem>>, vector<1x1x16x8xf32>
    %106 = vector.shape_cast %105 : vector<1x1x16x8xf32> to vector<16x8xf32>
    %c0_122 = arith.constant 0 : index
    %c0_123 = arith.constant 0 : index
    %c0_124 = arith.constant 0 : index
    %107 = vector.load %arg1[%c0_122, %c0_123, %c0_124] : memref<7x8x16xf32, #tpu.memory_space<vmem>>, vector<1x8x16xf32>
    %108 = vector.shape_cast %107 : vector<1x8x16xf32> to vector<8x16xf32>
    %cst_125 = arith.constant dense<0.000000e+00> : vector<16x16xf32>
    %109 = tpu.matmul %106, %108, %cst_125 {dimension_numbers = #tpu.dot_dimension_numbers<[1], [0], [0], [1], [0, 0, 1, 1], [], []>} : vector<16x8xf32>, vector<8x16xf32>, vector<16x16xf32> -> vector<16x16xf32>
    %110 = arith.addf %104, %109 : vector<16x16xf32>
    %c1_126 = arith.constant 1 : index
    %c1_127 = arith.constant 1 : index
    %c0_128 = arith.constant 0 : index
    %c0_129 = arith.constant 0 : index
    %111 = vector.load %arg0[%c1_126, %c1_127, %c0_128, %c0_129] : memref<2x4x18x8xf32, #tpu.memory_space<vmem>>, vector<1x1x16x8xf32>
    %112 = vector.shape_cast %111 : vector<1x1x16x8xf32> to vector<16x8xf32>
    %c1_130 = arith.constant 1 : index
    %c0_131 = arith.constant 0 : index
    %c0_132 = arith.constant 0 : index
    %113 = vector.load %arg1[%c1_130, %c0_131, %c0_132] : memref<7x8x16xf32, #tpu.memory_space<vmem>>, vector<1x8x16xf32>
    %114 = vector.shape_cast %113 : vector<1x8x16xf32> to vector<8x16xf32>
    %cst_133 = arith.constant dense<0.000000e+00> : vector<16x16xf32>
    %115 = tpu.matmul %112, %114, %cst_133 {dimension_numbers = #tpu.dot_dimension_numbers<[1], [0], [0], [1], [0, 0, 1, 1], [], []>} : vector<16x8xf32>, vector<8x16xf32>, vector<16x16xf32> -> vector<16x16xf32>
    %116 = arith.addf %110, %115 : vector<16x16xf32>
    %c1_134 = arith.constant 1 : index
    %c2_135 = arith.constant 2 : index
    %c0_136 = arith.constant 0 : index
    %c0_137 = arith.constant 0 : index
    %117 = vector.load %arg0[%c1_134, %c2_135, %c0_136, %c0_137] : memref<2x4x18x8xf32, #tpu.memory_space<vmem>>, vector<1x1x16x8xf32>
    %118 = vector.shape_cast %117 : vector<1x1x16x8xf32> to vector<16x8xf32>
    %c2_138 = arith.constant 2 : index
    %c0_139 = arith.constant 0 : index
    %c0_140 = arith.constant 0 : index
    %119 = vector.load %arg1[%c2_138, %c0_139, %c0_140] : memref<7x8x16xf32, #tpu.memory_space<vmem>>, vector<1x8x16xf32>
    %120 = vector.shape_cast %119 : vector<1x8x16xf32> to vector<8x16xf32>
    %cst_141 = arith.constant dense<0.000000e+00> : vector<16x16xf32>
    %121 = tpu.matmul %118, %120, %cst_141 {dimension_numbers = #tpu.dot_dimension_numbers<[1], [0], [0], [1], [0, 0, 1, 1], [], []>} : vector<16x8xf32>, vector<8x16xf32>, vector<16x16xf32> -> vector<16x16xf32>
    %122 = arith.addf %116, %121 : vector<16x16xf32>
    %c1_142 = arith.constant 1 : index
    %c3_143 = arith.constant 3 : index
    %c0_144 = arith.constant 0 : index
    %c0_145 = arith.constant 0 : index
    %123 = vector.load %arg0[%c1_142, %c3_143, %c0_144, %c0_145] : memref<2x4x18x8xf32, #tpu.memory_space<vmem>>, vector<1x1x16x8xf32>
    %124 = vector.shape_cast %123 : vector<1x1x16x8xf32> to vector<16x8xf32>
    %c3_146 = arith.constant 3 : index
    %c0_147 = arith.constant 0 : index
    %c0_148 = arith.constant 0 : index
    %125 = vector.load %arg1[%c3_146, %c0_147, %c0_148] : memref<7x8x16xf32, #tpu.memory_space<vmem>>, vector<1x8x16xf32>
    %126 = vector.shape_cast %125 : vector<1x8x16xf32> to vector<8x16xf32>
    %cst_149 = arith.constant dense<0.000000e+00> : vector<16x16xf32>
    %127 = tpu.matmul %124, %126, %cst_149 {dimension_numbers = #tpu.dot_dimension_numbers<[1], [0], [0], [1], [0, 0, 1, 1], [], []>} : vector<16x8xf32>, vector<8x16xf32>, vector<16x16xf32> -> vector<16x16xf32>
    %128 = arith.addf %122, %127 : vector<16x16xf32>
    %c1_150 = arith.constant 1 : index
    %c0_151 = arith.constant 0 : index
    %c1_152 = arith.constant 1 : index
    %c0_153 = arith.constant 0 : index
    %129 = vector.load %arg0[%c1_150, %c0_151, %c1_152, %c0_153] : memref<2x4x18x8xf32, #tpu.memory_space<vmem>>, vector<1x1x16x8xf32>
    %130 = vector.shape_cast %129 : vector<1x1x16x8xf32> to vector<16x8xf32>
    %c4_154 = arith.constant 4 : index
    %c0_155 = arith.constant 0 : index
    %c0_156 = arith.constant 0 : index
    %131 = vector.load %arg1[%c4_154, %c0_155, %c0_156] : memref<7x8x16xf32, #tpu.memory_space<vmem>>, vector<1x8x16xf32>
    %132 = vector.shape_cast %131 : vector<1x8x16xf32> to vector<8x16xf32>
    %cst_157 = arith.constant dense<0.000000e+00> : vector<16x16xf32>
    %133 = tpu.matmul %130, %132, %cst_157 {dimension_numbers = #tpu.dot_dimension_numbers<[1], [0], [0], [1], [0, 0, 1, 1], [], []>} : vector<16x8xf32>, vector<8x16xf32>, vector<16x16xf32> -> vector<16x16xf32>
    %134 = arith.addf %128, %133 : vector<16x16xf32>
    %c1_158 = arith.constant 1 : index
    %c1_159 = arith.constant 1 : index
    %c1_160 = arith.constant 1 : index
    %c0_161 = arith.constant 0 : index
    %135 = vector.load %arg0[%c1_158, %c1_159, %c1_160, %c0_161] : memref<2x4x18x8xf32, #tpu.memory_space<vmem>>, vector<1x1x16x8xf32>
    %136 = vector.shape_cast %135 : vector<1x1x16x8xf32> to vector<16x8xf32>
    %c5_162 = arith.constant 5 : index
    %c0_163 = arith.constant 0 : index
    %c0_164 = arith.constant 0 : index
    %137 = vector.load %arg1[%c5_162, %c0_163, %c0_164] : memref<7x8x16xf32, #tpu.memory_space<vmem>>, vector<1x8x16xf32>
    %138 = vector.shape_cast %137 : vector<1x8x16xf32> to vector<8x16xf32>
    %cst_165 = arith.constant dense<0.000000e+00> : vector<16x16xf32>
    %139 = tpu.matmul %136, %138, %cst_165 {dimension_numbers = #tpu.dot_dimension_numbers<[1], [0], [0], [1], [0, 0, 1, 1], [], []>} : vector<16x8xf32>, vector<8x16xf32>, vector<16x16xf32> -> vector<16x16xf32>
    %140 = arith.addf %134, %139 : vector<16x16xf32>
    %c1_166 = arith.constant 1 : index
    %c2_167 = arith.constant 2 : index
    %c1_168 = arith.constant 1 : index
    %c0_169 = arith.constant 0 : index
    %141 = vector.load %arg0[%c1_166, %c2_167, %c1_168, %c0_169] : memref<2x4x18x8xf32, #tpu.memory_space<vmem>>, vector<1x1x16x8xf32>
    %142 = vector.shape_cast %141 : vector<1x1x16x8xf32> to vector<16x8xf32>
    %c6_170 = arith.constant 6 : index
    %c0_171 = arith.constant 0 : index
    %c0_172 = arith.constant 0 : index
    %143 = vector.load %arg1[%c6_170, %c0_171, %c0_172] : memref<7x8x16xf32, #tpu.memory_space<vmem>>, vector<1x8x16xf32>
    %144 = vector.shape_cast %143 : vector<1x8x16xf32> to vector<8x16xf32>
    %cst_173 = arith.constant dense<0.000000e+00> : vector<16x16xf32>
    %145 = tpu.matmul %142, %144, %cst_173 {dimension_numbers = #tpu.dot_dimension_numbers<[1], [0], [0], [1], [0, 0, 1, 1], [], []>} : vector<16x8xf32>, vector<8x16xf32>, vector<16x16xf32> -> vector<16x16xf32>
    %146 = arith.addf %140, %145 : vector<16x16xf32>
    %cst_174 = arith.constant dense<0.000000e+00> : vector<16xf32>
    %147 = vector.multi_reduction <add>, %146, %cst_174 [0] : vector<16x16xf32> to vector<16xf32>
    %148 = vector.shape_cast %147 : vector<16xf32> to vector<1x16xf32>
    %149 = arith.addf %99, %148 : vector<1x16xf32>
    %150 = arith.mulf %146, %146 : vector<16x16xf32>
    %cst_175 = arith.constant dense<0.000000e+00> : vector<16xf32>
    %151 = vector.multi_reduction <add>, %150, %cst_175 [0] : vector<16x16xf32> to vector<16xf32>
    %152 = vector.shape_cast %151 : vector<16xf32> to vector<1x16xf32>
    %153 = arith.addf %103, %152 : vector<1x16xf32>
    %cst_176 = arith.constant 0.000000e+00 : f32
    %154 = vector.broadcast %cst_176 : f32 to vector<16x16xf32>
    %c1_177 = arith.constant 1 : index
    %c2_178 = arith.constant 2 : index
    %c0_179 = arith.constant 0 : index
    %c0_180 = arith.constant 0 : index
    %155 = vector.load %arg0[%c1_177, %c2_178, %c0_179, %c0_180] : memref<2x4x18x8xf32, #tpu.memory_space<vmem>>, vector<1x1x16x8xf32>
    %156 = vector.shape_cast %155 : vector<1x1x16x8xf32> to vector<16x8xf32>
    %c0_181 = arith.constant 0 : index
    %c0_182 = arith.constant 0 : index
    %c0_183 = arith.constant 0 : index
    %157 = vector.load %arg1[%c0_181, %c0_182, %c0_183] : memref<7x8x16xf32, #tpu.memory_space<vmem>>, vector<1x8x16xf32>
    %158 = vector.shape_cast %157 : vector<1x8x16xf32> to vector<8x16xf32>
    %cst_184 = arith.constant dense<0.000000e+00> : vector<16x16xf32>
    %159 = tpu.matmul %156, %158, %cst_184 {dimension_numbers = #tpu.dot_dimension_numbers<[1], [0], [0], [1], [0, 0, 1, 1], [], []>} : vector<16x8xf32>, vector<8x16xf32>, vector<16x16xf32> -> vector<16x16xf32>
    %160 = arith.addf %154, %159 : vector<16x16xf32>
    %c1_185 = arith.constant 1 : index
    %c3_186 = arith.constant 3 : index
    %c0_187 = arith.constant 0 : index
    %c0_188 = arith.constant 0 : index
    %161 = vector.load %arg0[%c1_185, %c3_186, %c0_187, %c0_188] : memref<2x4x18x8xf32, #tpu.memory_space<vmem>>, vector<1x1x16x8xf32>
    %162 = vector.shape_cast %161 : vector<1x1x16x8xf32> to vector<16x8xf32>
    %c1_189 = arith.constant 1 : index
    %c0_190 = arith.constant 0 : index
    %c0_191 = arith.constant 0 : index
    %163 = vector.load %arg1[%c1_189, %c0_190, %c0_191] : memref<7x8x16xf32, #tpu.memory_space<vmem>>, vector<1x8x16xf32>
    %164 = vector.shape_cast %163 : vector<1x8x16xf32> to vector<8x16xf32>
    %cst_192 = arith.constant dense<0.000000e+00> : vector<16x16xf32>
    %165 = tpu.matmul %162, %164, %cst_192 {dimension_numbers = #tpu.dot_dimension_numbers<[1], [0], [0], [1], [0, 0, 1, 1], [], []>} : vector<16x8xf32>, vector<8x16xf32>, vector<16x16xf32> -> vector<16x16xf32>
    %166 = arith.addf %160, %165 : vector<16x16xf32>
    %c1_193 = arith.constant 1 : index
    %c0_194 = arith.constant 0 : index
    %c1_195 = arith.constant 1 : index
    %c0_196 = arith.constant 0 : index
    %167 = vector.load %arg0[%c1_193, %c0_194, %c1_195, %c0_196] : memref<2x4x18x8xf32, #tpu.memory_space<vmem>>, vector<1x1x16x8xf32>
    %168 = vector.shape_cast %167 : vector<1x1x16x8xf32> to vector<16x8xf32>
    %c2_197 = arith.constant 2 : index
    %c0_198 = arith.constant 0 : index
    %c0_199 = arith.constant 0 : index
    %169 = vector.load %arg1[%c2_197, %c0_198, %c0_199] : memref<7x8x16xf32, #tpu.memory_space<vmem>>, vector<1x8x16xf32>
    %170 = vector.shape_cast %169 : vector<1x8x16xf32> to vector<8x16xf32>
    %cst_200 = arith.constant dense<0.000000e+00> : vector<16x16xf32>
    %171 = tpu.matmul %168, %170, %cst_200 {dimension_numbers = #tpu.dot_dimension_numbers<[1], [0], [0], [1], [0, 0, 1, 1], [], []>} : vector<16x8xf32>, vector<8x16xf32>, vector<16x16xf32> -> vector<16x16xf32>
    %172 = arith.addf %166, %171 : vector<16x16xf32>
    %c1_201 = arith.constant 1 : index
    %c1_202 = arith.constant 1 : index
    %c1_203 = arith.constant 1 : index
    %c0_204 = arith.constant 0 : index
    %173 = vector.load %arg0[%c1_201, %c1_202, %c1_203, %c0_204] : memref<2x4x18x8xf32, #tpu.memory_space<vmem>>, vector<1x1x16x8xf32>
    %174 = vector.shape_cast %173 : vector<1x1x16x8xf32> to vector<16x8xf32>
    %c3_205 = arith.constant 3 : index
    %c0_206 = arith.constant 0 : index
    %c0_207 = arith.constant 0 : index
    %175 = vector.load %arg1[%c3_205, %c0_206, %c0_207] : memref<7x8x16xf32, #tpu.memory_space<vmem>>, vector<1x8x16xf32>
    %176 = vector.shape_cast %175 : vector<1x8x16xf32> to vector<8x16xf32>
    %cst_208 = arith.constant dense<0.000000e+00> : vector<16x16xf32>
    %177 = tpu.matmul %174, %176, %cst_208 {dimension_numbers = #tpu.dot_dimension_numbers<[1], [0], [0], [1], [0, 0, 1, 1], [], []>} : vector<16x8xf32>, vector<8x16xf32>, vector<16x16xf32> -> vector<16x16xf32>
    %178 = arith.addf %172, %177 : vector<16x16xf32>
    %c1_209 = arith.constant 1 : index
    %c2_210 = arith.constant 2 : index
    %c1_211 = arith.constant 1 : index
    %c0_212 = arith.constant 0 : index
    %179 = vector.load %arg0[%c1_209, %c2_210, %c1_211, %c0_212] : memref<2x4x18x8xf32, #tpu.memory_space<vmem>>, vector<1x1x16x8xf32>
    %180 = vector.shape_cast %179 : vector<1x1x16x8xf32> to vector<16x8xf32>
    %c4_213 = arith.constant 4 : index
    %c0_214 = arith.constant 0 : index
    %c0_215 = arith.constant 0 : index
    %181 = vector.load %arg1[%c4_213, %c0_214, %c0_215] : memref<7x8x16xf32, #tpu.memory_space<vmem>>, vector<1x8x16xf32>
    %182 = vector.shape_cast %181 : vector<1x8x16xf32> to vector<8x16xf32>
    %cst_216 = arith.constant dense<0.000000e+00> : vector<16x16xf32>
    %183 = tpu.matmul %180, %182, %cst_216 {dimension_numbers = #tpu.dot_dimension_numbers<[1], [0], [0], [1], [0, 0, 1, 1], [], []>} : vector<16x8xf32>, vector<8x16xf32>, vector<16x16xf32> -> vector<16x16xf32>
    %184 = arith.addf %178, %183 : vector<16x16xf32>
    %c1_217 = arith.constant 1 : index
    %c3_218 = arith.constant 3 : index
    %c1_219 = arith.constant 1 : index
    %c0_220 = arith.constant 0 : index
    %185 = vector.load %arg0[%c1_217, %c3_218, %c1_219, %c0_220] : memref<2x4x18x8xf32, #tpu.memory_space<vmem>>, vector<1x1x16x8xf32>
    %186 = vector.shape_cast %185 : vector<1x1x16x8xf32> to vector<16x8xf32>
    %c5_221 = arith.constant 5 : index
    %c0_222 = arith.constant 0 : index
    %c0_223 = arith.constant 0 : index
    %187 = vector.load %arg1[%c5_221, %c0_222, %c0_223] : memref<7x8x16xf32, #tpu.memory_space<vmem>>, vector<1x8x16xf32>
    %188 = vector.shape_cast %187 : vector<1x8x16xf32> to vector<8x16xf32>
    %cst_224 = arith.constant dense<0.000000e+00> : vector<16x16xf32>
    %189 = tpu.matmul %186, %188, %cst_224 {dimension_numbers = #tpu.dot_dimension_numbers<[1], [0], [0], [1], [0, 0, 1, 1], [], []>} : vector<16x8xf32>, vector<8x16xf32>, vector<16x16xf32> -> vector<16x16xf32>
    %190 = arith.addf %184, %189 : vector<16x16xf32>
    %c1_225 = arith.constant 1 : index
    %c0_226 = arith.constant 0 : index
    %c2_227 = arith.constant 2 : index
    %c0_228 = arith.constant 0 : index
    %191 = vector.load %arg0[%c1_225, %c0_226, %c2_227, %c0_228] : memref<2x4x18x8xf32, #tpu.memory_space<vmem>>, vector<1x1x16x8xf32>
    %192 = vector.shape_cast %191 : vector<1x1x16x8xf32> to vector<16x8xf32>
    %c6_229 = arith.constant 6 : index
    %c0_230 = arith.constant 0 : index
    %c0_231 = arith.constant 0 : index
    %193 = vector.load %arg1[%c6_229, %c0_230, %c0_231] : memref<7x8x16xf32, #tpu.memory_space<vmem>>, vector<1x8x16xf32>
    %194 = vector.shape_cast %193 : vector<1x8x16xf32> to vector<8x16xf32>
    %cst_232 = arith.constant dense<0.000000e+00> : vector<16x16xf32>
    %195 = tpu.matmul %192, %194, %cst_232 {dimension_numbers = #tpu.dot_dimension_numbers<[1], [0], [0], [1], [0, 0, 1, 1], [], []>} : vector<16x8xf32>, vector<8x16xf32>, vector<16x16xf32> -> vector<16x16xf32>
    %196 = arith.addf %190, %195 : vector<16x16xf32>
    %cst_233 = arith.constant dense<0.000000e+00> : vector<16xf32>
    %197 = vector.multi_reduction <add>, %196, %cst_233 [0] : vector<16x16xf32> to vector<16xf32>
    %198 = vector.shape_cast %197 : vector<16xf32> to vector<1x16xf32>
    %199 = arith.addf %149, %198 : vector<1x16xf32>
    %200 = arith.mulf %196, %196 : vector<16x16xf32>
    %cst_234 = arith.constant dense<0.000000e+00> : vector<16xf32>
    %201 = vector.multi_reduction <add>, %200, %cst_234 [0] : vector<16x16xf32> to vector<16xf32>
    %202 = vector.shape_cast %201 : vector<16xf32> to vector<1x16xf32>
    %203 = arith.addf %153, %202 : vector<1x16xf32>
    %cst_235 = arith.constant 6.400000e+01 : f32
    %204 = vector.broadcast %cst_235 : f32 to vector<1x16xf32>
    %205 = arith.divf %199, %204 : vector<1x16xf32>
    %cst_236 = arith.constant 6.400000e+01 : f32
    %206 = vector.broadcast %cst_236 : f32 to vector<1x16xf32>
    %207 = arith.divf %203, %206 : vector<1x16xf32>
    %208 = arith.mulf %205, %205 : vector<1x16xf32>
    %209 = arith.subf %207, %208 : vector<1x16xf32>
    %cst_237 = arith.constant 9.99999974E-6 : f32
    %210 = vector.broadcast %cst_237 : f32 to vector<1x16xf32>
    %211 = arith.addf %209, %210 : vector<1x16xf32>
    %212 = math.rsqrt %211 : vector<1x16xf32>
    %c0_238 = arith.constant 0 : index
    %c0_239 = arith.constant 0 : index
    %213 = vector.load %arg3[%c0_238, %c0_239] : memref<1x16xf32, #tpu.memory_space<vmem>>, vector<1x16xf32>
    %214 = arith.mulf %212, %213 : vector<1x16xf32>
    %c0_240 = arith.constant 0 : index
    %c0_241 = arith.constant 0 : index
    %215 = vector.load %arg4[%c0_240, %c0_241] : memref<1x16xf32, #tpu.memory_space<vmem>>, vector<1x16xf32>
    %216 = arith.mulf %205, %214 : vector<1x16xf32>
    %217 = arith.subf %215, %216 : vector<1x16xf32>
    %218 = vector.broadcast %214 : vector<1x16xf32> to vector<16x16xf32>
    %219 = arith.mulf %46, %218 : vector<16x16xf32>
    %220 = vector.broadcast %217 : vector<1x16xf32> to vector<16x16xf32>
    %221 = arith.addf %219, %220 : vector<16x16xf32>
    %222 = arith.negf %221 : vector<16x16xf32>
    %223 = math.exp %222 : vector<16x16xf32>
    %cst_242 = arith.constant 1.000000e+00 : f32
    %224 = vector.broadcast %cst_242 : f32 to vector<16x16xf32>
    %225 = arith.addf %224, %223 : vector<16x16xf32>
    %226 = arith.divf %224, %225 : vector<16x16xf32>
    %227 = arith.mulf %221, %226 : vector<16x16xf32>
    %c0_243 = arith.constant 0 : index
    %c0_244 = arith.constant 0 : index
    %c1_245 = arith.constant 1 : index
    %c0_246 = arith.constant 0 : index
    %228 = vector.load %arg9[%c0_243, %c0_244, %c1_245, %c0_246] : memref<2x2x18x16xf32, #tpu.memory_space<vmem>>, vector<1x1x16x16xf32>
    %229 = vector.shape_cast %228 : vector<1x1x16x16xf32> to vector<16x16xf32>
    %230 = vector.shape_cast %227 : vector<16x16xf32> to vector<1x1x16x16xf32>
    tpu.vector_store %arg9[%c0_243, %c0_244, %c1_245, %c0_246], %230 {strides = array<i32>} : memref<2x2x18x16xf32, #tpu.memory_space<vmem>>, vector<1x1x16x16xf32>,
    %231 = vector.broadcast %214 : vector<1x16xf32> to vector<16x16xf32>
    %232 = arith.mulf %96, %231 : vector<16x16xf32>
    %233 = vector.broadcast %217 : vector<1x16xf32> to vector<16x16xf32>
    %234 = arith.addf %232, %233 : vector<16x16xf32>
    %235 = arith.negf %234 : vector<16x16xf32>
    %236 = math.exp %235 : vector<16x16xf32>
    %cst_247 = arith.constant 1.000000e+00 : f32
    %237 = vector.broadcast %cst_247 : f32 to vector<16x16xf32>
    %238 = arith.addf %237, %236 : vector<16x16xf32>
    %239 = arith.divf %237, %238 : vector<16x16xf32>
    %240 = arith.mulf %234, %239 : vector<16x16xf32>
    %c0_248 = arith.constant 0 : index
    %c1_249 = arith.constant 1 : index
    %c1_250 = arith.constant 1 : index
    %c0_251 = arith.constant 0 : index
    %241 = vector.load %arg9[%c0_248, %c1_249, %c1_250, %c0_251] : memref<2x2x18x16xf32, #tpu.memory_space<vmem>>, vector<1x1x16x16xf32>
    %242 = vector.shape_cast %241 : vector<1x1x16x16xf32> to vector<16x16xf32>
    %243 = vector.shape_cast %240 : vector<16x16xf32> to vector<1x1x16x16xf32>
    tpu.vector_store %arg9[%c0_248, %c1_249, %c1_250, %c0_251], %243 {strides = array<i32>} : memref<2x2x18x16xf32, #tpu.memory_space<vmem>>, vector<1x1x16x16xf32>,
    %244 = vector.broadcast %214 : vector<1x16xf32> to vector<16x16xf32>
    %245 = arith.mulf %146, %244 : vector<16x16xf32>
    %246 = vector.broadcast %217 : vector<1x16xf32> to vector<16x16xf32>
    %247 = arith.addf %245, %246 : vector<16x16xf32>
    %248 = arith.negf %247 : vector<16x16xf32>
    %249 = math.exp %248 : vector<16x16xf32>
    %cst_252 = arith.constant 1.000000e+00 : f32
    %250 = vector.broadcast %cst_252 : f32 to vector<16x16xf32>
    %251 = arith.addf %250, %249 : vector<16x16xf32>
    %252 = arith.divf %250, %251 : vector<16x16xf32>
    %253 = arith.mulf %247, %252 : vector<16x16xf32>
    %c1_253 = arith.constant 1 : index
    %c0_254 = arith.constant 0 : index
    %c1_255 = arith.constant 1 : index
    %c0_256 = arith.constant 0 : index
    %254 = vector.load %arg9[%c1_253, %c0_254, %c1_255, %c0_256] : memref<2x2x18x16xf32, #tpu.memory_space<vmem>>, vector<1x1x16x16xf32>
    %255 = vector.shape_cast %254 : vector<1x1x16x16xf32> to vector<16x16xf32>
    %256 = vector.shape_cast %253 : vector<16x16xf32> to vector<1x1x16x16xf32>
    tpu.vector_store %arg9[%c1_253, %c0_254, %c1_255, %c0_256], %256 {strides = array<i32>} : memref<2x2x18x16xf32, #tpu.memory_space<vmem>>, vector<1x1x16x16xf32>,
    %257 = vector.broadcast %214 : vector<1x16xf32> to vector<16x16xf32>
    %258 = arith.mulf %196, %257 : vector<16x16xf32>
    %259 = vector.broadcast %217 : vector<1x16xf32> to vector<16x16xf32>
    %260 = arith.addf %258, %259 : vector<16x16xf32>
    %261 = arith.negf %260 : vector<16x16xf32>
    %262 = math.exp %261 : vector<16x16xf32>
    %cst_257 = arith.constant 1.000000e+00 : f32
    %263 = vector.broadcast %cst_257 : f32 to vector<16x16xf32>
    %264 = arith.addf %263, %262 : vector<16x16xf32>
    %265 = arith.divf %263, %264 : vector<16x16xf32>
    %266 = arith.mulf %260, %265 : vector<16x16xf32>
    %c1_258 = arith.constant 1 : index
    %c1_259 = arith.constant 1 : index
    %c1_260 = arith.constant 1 : index
    %c0_261 = arith.constant 0 : index
    %267 = vector.load %arg9[%c1_258, %c1_259, %c1_260, %c0_261] : memref<2x2x18x16xf32, #tpu.memory_space<vmem>>, vector<1x1x16x16xf32>
    %268 = vector.shape_cast %267 : vector<1x1x16x16xf32> to vector<16x16xf32>
    %269 = vector.shape_cast %266 : vector<16x16xf32> to vector<1x1x16x16xf32>
    tpu.vector_store %arg9[%c1_258, %c1_259, %c1_260, %c0_261], %269 {strides = array<i32>} : memref<2x2x18x16xf32, #tpu.memory_space<vmem>>, vector<1x1x16x16xf32>,
    %cst_262 = arith.constant 0.000000e+00 : f32
    %270 = vector.broadcast %cst_262 : f32 to vector<1x32xf32>
    %cst_263 = arith.constant 0.000000e+00 : f32
    %271 = vector.broadcast %cst_263 : f32 to vector<1x32xf32>
    %cst_264 = arith.constant 0.000000e+00 : f32
    %272 = vector.broadcast %cst_264 : f32 to vector<16x32xf32>
    %c0_265 = arith.constant 0 : index
    %c0_266 = arith.constant 0 : index
    %c0_267 = arith.constant 0 : index
    %c0_268 = arith.constant 0 : index
    %273 = vector.load %arg9[%c0_265, %c0_266, %c0_267, %c0_268] : memref<2x2x18x16xf32, #tpu.memory_space<vmem>>, vector<1x1x16x16xf32>
    %274 = vector.shape_cast %273 : vector<1x1x16x16xf32> to vector<16x16xf32>
    %c0_269 = arith.constant 0 : index
    %c0_270 = arith.constant 0 : index
    %c0_271 = arith.constant 0 : index
    %275 = vector.load %arg2[%c0_269, %c0_270, %c0_271] : memref<5x16x32xf32, #tpu.memory_space<vmem>>, vector<1x16x32xf32>
    %276 = vector.shape_cast %275 : vector<1x16x32xf32> to vector<16x32xf32>
    %cst_272 = arith.constant dense<0.000000e+00> : vector<16x32xf32>
    %277 = tpu.matmul %274, %276, %cst_272 {dimension_numbers = #tpu.dot_dimension_numbers<[1], [0], [0], [1], [0, 0, 1, 1], [], []>} : vector<16x16xf32>, vector<16x32xf32>, vector<16x32xf32> -> vector<16x32xf32>
    %278 = arith.addf %272, %277 : vector<16x32xf32>
    %c0_273 = arith.constant 0 : index
    %c1_274 = arith.constant 1 : index
    %c0_275 = arith.constant 0 : index
    %c0_276 = arith.constant 0 : index
    %279 = vector.load %arg9[%c0_273, %c1_274, %c0_275, %c0_276] : memref<2x2x18x16xf32, #tpu.memory_space<vmem>>, vector<1x1x16x16xf32>
    %280 = vector.shape_cast %279 : vector<1x1x16x16xf32> to vector<16x16xf32>
    %c1_277 = arith.constant 1 : index
    %c0_278 = arith.constant 0 : index
    %c0_279 = arith.constant 0 : index
    %281 = vector.load %arg2[%c1_277, %c0_278, %c0_279] : memref<5x16x32xf32, #tpu.memory_space<vmem>>, vector<1x16x32xf32>
    %282 = vector.shape_cast %281 : vector<1x16x32xf32> to vector<16x32xf32>
    %cst_280 = arith.constant dense<0.000000e+00> : vector<16x32xf32>
    %283 = tpu.matmul %280, %282, %cst_280 {dimension_numbers = #tpu.dot_dimension_numbers<[1], [0], [0], [1], [0, 0, 1, 1], [], []>} : vector<16x16xf32>, vector<16x32xf32>, vector<16x32xf32> -> vector<16x32xf32>
    %284 = arith.addf %278, %283 : vector<16x32xf32>
    %c0_281 = arith.constant 0 : index
    %c0_282 = arith.constant 0 : index
    %c1_283 = arith.constant 1 : index
    %c0_284 = arith.constant 0 : index
    %285 = vector.load %arg9[%c0_281, %c0_282, %c1_283, %c0_284] : memref<2x2x18x16xf32, #tpu.memory_space<vmem>>, vector<1x1x16x16xf32>
    %286 = vector.shape_cast %285 : vector<1x1x16x16xf32> to vector<16x16xf32>
    %c2_285 = arith.constant 2 : index
    %c0_286 = arith.constant 0 : index
    %c0_287 = arith.constant 0 : index
    %287 = vector.load %arg2[%c2_285, %c0_286, %c0_287] : memref<5x16x32xf32, #tpu.memory_space<vmem>>, vector<1x16x32xf32>
    %288 = vector.shape_cast %287 : vector<1x16x32xf32> to vector<16x32xf32>
    %cst_288 = arith.constant dense<0.000000e+00> : vector<16x32xf32>
    %289 = tpu.matmul %286, %288, %cst_288 {dimension_numbers = #tpu.dot_dimension_numbers<[1], [0], [0], [1], [0, 0, 1, 1], [], []>} : vector<16x16xf32>, vector<16x32xf32>, vector<16x32xf32> -> vector<16x32xf32>
    %290 = arith.addf %284, %289 : vector<16x32xf32>
    %c0_289 = arith.constant 0 : index
    %c1_290 = arith.constant 1 : index
    %c1_291 = arith.constant 1 : index
    %c0_292 = arith.constant 0 : index
    %291 = vector.load %arg9[%c0_289, %c1_290, %c1_291, %c0_292] : memref<2x2x18x16xf32, #tpu.memory_space<vmem>>, vector<1x1x16x16xf32>
    %292 = vector.shape_cast %291 : vector<1x1x16x16xf32> to vector<16x16xf32>
    %c3_293 = arith.constant 3 : index
    %c0_294 = arith.constant 0 : index
    %c0_295 = arith.constant 0 : index
    %293 = vector.load %arg2[%c3_293, %c0_294, %c0_295] : memref<5x16x32xf32, #tpu.memory_space<vmem>>, vector<1x16x32xf32>
    %294 = vector.shape_cast %293 : vector<1x16x32xf32> to vector<16x32xf32>
    %cst_296 = arith.constant dense<0.000000e+00> : vector<16x32xf32>
    %295 = tpu.matmul %292, %294, %cst_296 {dimension_numbers = #tpu.dot_dimension_numbers<[1], [0], [0], [1], [0, 0, 1, 1], [], []>} : vector<16x16xf32>, vector<16x32xf32>, vector<16x32xf32> -> vector<16x32xf32>
    %296 = arith.addf %290, %295 : vector<16x32xf32>
    %c0_297 = arith.constant 0 : index
    %c0_298 = arith.constant 0 : index
    %c2_299 = arith.constant 2 : index
    %c0_300 = arith.constant 0 : index
    %297 = vector.load %arg9[%c0_297, %c0_298, %c2_299, %c0_300] : memref<2x2x18x16xf32, #tpu.memory_space<vmem>>, vector<1x1x16x16xf32>
    %298 = vector.shape_cast %297 : vector<1x1x16x16xf32> to vector<16x16xf32>
    %c4_301 = arith.constant 4 : index
    %c0_302 = arith.constant 0 : index
    %c0_303 = arith.constant 0 : index
    %299 = vector.load %arg2[%c4_301, %c0_302, %c0_303] : memref<5x16x32xf32, #tpu.memory_space<vmem>>, vector<1x16x32xf32>
    %300 = vector.shape_cast %299 : vector<1x16x32xf32> to vector<16x32xf32>
    %cst_304 = arith.constant dense<0.000000e+00> : vector<16x32xf32>
    %301 = tpu.matmul %298, %300, %cst_304 {dimension_numbers = #tpu.dot_dimension_numbers<[1], [0], [0], [1], [0, 0, 1, 1], [], []>} : vector<16x16xf32>, vector<16x32xf32>, vector<16x32xf32> -> vector<16x32xf32>
    %302 = arith.addf %296, %301 : vector<16x32xf32>
    %cst_305 = arith.constant dense<0.000000e+00> : vector<32xf32>
    %303 = vector.multi_reduction <add>, %302, %cst_305 [0] : vector<16x32xf32> to vector<32xf32>
    %304 = vector.shape_cast %303 : vector<32xf32> to vector<1x32xf32>
    %305 = arith.addf %270, %304 : vector<1x32xf32>
    %306 = arith.mulf %302, %302 : vector<16x32xf32>
    %cst_306 = arith.constant dense<0.000000e+00> : vector<32xf32>
    %307 = vector.multi_reduction <add>, %306, %cst_306 [0] : vector<16x32xf32> to vector<32xf32>
    %308 = vector.shape_cast %307 : vector<32xf32> to vector<1x32xf32>
    %309 = arith.addf %271, %308 : vector<1x32xf32>
    %cst_307 = arith.constant 0.000000e+00 : f32
    %310 = vector.broadcast %cst_307 : f32 to vector<16x32xf32>
    %c1_308 = arith.constant 1 : index
    %c0_309 = arith.constant 0 : index
    %c0_310 = arith.constant 0 : index
    %c0_311 = arith.constant 0 : index
    %311 = vector.load %arg9[%c1_308, %c0_309, %c0_310, %c0_311] : memref<2x2x18x16xf32, #tpu.memory_space<vmem>>, vector<1x1x16x16xf32>
    %312 = vector.shape_cast %311 : vector<1x1x16x16xf32> to vector<16x16xf32>
    %c0_312 = arith.constant 0 : index
    %c0_313 = arith.constant 0 : index
    %c0_314 = arith.constant 0 : index
    %313 = vector.load %arg2[%c0_312, %c0_313, %c0_314] : memref<5x16x32xf32, #tpu.memory_space<vmem>>, vector<1x16x32xf32>
    %314 = vector.shape_cast %313 : vector<1x16x32xf32> to vector<16x32xf32>
    %cst_315 = arith.constant dense<0.000000e+00> : vector<16x32xf32>
    %315 = tpu.matmul %312, %314, %cst_315 {dimension_numbers = #tpu.dot_dimension_numbers<[1], [0], [0], [1], [0, 0, 1, 1], [], []>} : vector<16x16xf32>, vector<16x32xf32>, vector<16x32xf32> -> vector<16x32xf32>
    %316 = arith.addf %310, %315 : vector<16x32xf32>
    %c1_316 = arith.constant 1 : index
    %c1_317 = arith.constant 1 : index
    %c0_318 = arith.constant 0 : index
    %c0_319 = arith.constant 0 : index
    %317 = vector.load %arg9[%c1_316, %c1_317, %c0_318, %c0_319] : memref<2x2x18x16xf32, #tpu.memory_space<vmem>>, vector<1x1x16x16xf32>
    %318 = vector.shape_cast %317 : vector<1x1x16x16xf32> to vector<16x16xf32>
    %c1_320 = arith.constant 1 : index
    %c0_321 = arith.constant 0 : index
    %c0_322 = arith.constant 0 : index
    %319 = vector.load %arg2[%c1_320, %c0_321, %c0_322] : memref<5x16x32xf32, #tpu.memory_space<vmem>>, vector<1x16x32xf32>
    %320 = vector.shape_cast %319 : vector<1x16x32xf32> to vector<16x32xf32>
    %cst_323 = arith.constant dense<0.000000e+00> : vector<16x32xf32>
    %321 = tpu.matmul %318, %320, %cst_323 {dimension_numbers = #tpu.dot_dimension_numbers<[1], [0], [0], [1], [0, 0, 1, 1], [], []>} : vector<16x16xf32>, vector<16x32xf32>, vector<16x32xf32> -> vector<16x32xf32>
    %322 = arith.addf %316, %321 : vector<16x32xf32>
    %c1_324 = arith.constant 1 : index
    %c0_325 = arith.constant 0 : index
    %c1_326 = arith.constant 1 : index
    %c0_327 = arith.constant 0 : index
    %323 = vector.load %arg9[%c1_324, %c0_325, %c1_326, %c0_327] : memref<2x2x18x16xf32, #tpu.memory_space<vmem>>, vector<1x1x16x16xf32>
    %324 = vector.shape_cast %323 : vector<1x1x16x16xf32> to vector<16x16xf32>
    %c2_328 = arith.constant 2 : index
    %c0_329 = arith.constant 0 : index
    %c0_330 = arith.constant 0 : index
    %325 = vector.load %arg2[%c2_328, %c0_329, %c0_330] : memref<5x16x32xf32, #tpu.memory_space<vmem>>, vector<1x16x32xf32>
    %326 = vector.shape_cast %325 : vector<1x16x32xf32> to vector<16x32xf32>
    %cst_331 = arith.constant dense<0.000000e+00> : vector<16x32xf32>
    %327 = tpu.matmul %324, %326, %cst_331 {dimension_numbers = #tpu.dot_dimension_numbers<[1], [0], [0], [1], [0, 0, 1, 1], [], []>} : vector<16x16xf32>, vector<16x32xf32>, vector<16x32xf32> -> vector<16x32xf32>
    %328 = arith.addf %322, %327 : vector<16x32xf32>
    %c1_332 = arith.constant 1 : index
    %c1_333 = arith.constant 1 : index
    %c1_334 = arith.constant 1 : index
    %c0_335 = arith.constant 0 : index
    %329 = vector.load %arg9[%c1_332, %c1_333, %c1_334, %c0_335] : memref<2x2x18x16xf32, #tpu.memory_space<vmem>>, vector<1x1x16x16xf32>
    %330 = vector.shape_cast %329 : vector<1x1x16x16xf32> to vector<16x16xf32>
    %c3_336 = arith.constant 3 : index
    %c0_337 = arith.constant 0 : index
    %c0_338 = arith.constant 0 : index
    %331 = vector.load %arg2[%c3_336, %c0_337, %c0_338] : memref<5x16x32xf32, #tpu.memory_space<vmem>>, vector<1x16x32xf32>
    %332 = vector.shape_cast %331 : vector<1x16x32xf32> to vector<16x32xf32>
    %cst_339 = arith.constant dense<0.000000e+00> : vector<16x32xf32>
    %333 = tpu.matmul %330, %332, %cst_339 {dimension_numbers = #tpu.dot_dimension_numbers<[1], [0], [0], [1], [0, 0, 1, 1], [], []>} : vector<16x16xf32>, vector<16x32xf32>, vector<16x32xf32> -> vector<16x32xf32>
    %334 = arith.addf %328, %333 : vector<16x32xf32>
    %c1_340 = arith.constant 1 : index
    %c0_341 = arith.constant 0 : index
    %c2_342 = arith.constant 2 : index
    %c0_343 = arith.constant 0 : index
    %335 = vector.load %arg9[%c1_340, %c0_341, %c2_342, %c0_343] : memref<2x2x18x16xf32, #tpu.memory_space<vmem>>, vector<1x1x16x16xf32>
    %336 = vector.shape_cast %335 : vector<1x1x16x16xf32> to vector<16x16xf32>
    %c4_344 = arith.constant 4 : index
    %c0_345 = arith.constant 0 : index
    %c0_346 = arith.constant 0 : index
    %337 = vector.load %arg2[%c4_344, %c0_345, %c0_346] : memref<5x16x32xf32, #tpu.memory_space<vmem>>, vector<1x16x32xf32>
    %338 = vector.shape_cast %337 : vector<1x16x32xf32> to vector<16x32xf32>
    %cst_347 = arith.constant dense<0.000000e+00> : vector<16x32xf32>
    %339 = tpu.matmul %336, %338, %cst_347 {dimension_numbers = #tpu.dot_dimension_numbers<[1], [0], [0], [1], [0, 0, 1, 1], [], []>} : vector<16x16xf32>, vector<16x32xf32>, vector<16x32xf32> -> vector<16x32xf32>
    %340 = arith.addf %334, %339 : vector<16x32xf32>
    %cst_348 = arith.constant dense<0.000000e+00> : vector<32xf32>
    %341 = vector.multi_reduction <add>, %340, %cst_348 [0] : vector<16x32xf32> to vector<32xf32>
    %342 = vector.shape_cast %341 : vector<32xf32> to vector<1x32xf32>
    %343 = arith.addf %305, %342 : vector<1x32xf32>
    %344 = arith.mulf %340, %340 : vector<16x32xf32>
    %cst_349 = arith.constant dense<0.000000e+00> : vector<32xf32>
    %345 = vector.multi_reduction <add>, %344, %cst_349 [0] : vector<16x32xf32> to vector<32xf32>
    %346 = vector.shape_cast %345 : vector<32xf32> to vector<1x32xf32>
    %347 = arith.addf %309, %346 : vector<1x32xf32>
    %cst_350 = arith.constant 3.200000e+01 : f32
    %348 = vector.broadcast %cst_350 : f32 to vector<1x32xf32>
    %349 = arith.divf %343, %348 : vector<1x32xf32>
    %cst_351 = arith.constant 3.200000e+01 : f32
    %350 = vector.broadcast %cst_351 : f32 to vector<1x32xf32>
    %351 = arith.divf %347, %350 : vector<1x32xf32>
    %352 = arith.mulf %349, %349 : vector<1x32xf32>
    %353 = arith.subf %351, %352 : vector<1x32xf32>
    %cst_352 = arith.constant 9.99999974E-6 : f32
    %354 = vector.broadcast %cst_352 : f32 to vector<1x32xf32>
    %355 = arith.addf %353, %354 : vector<1x32xf32>
    %356 = math.rsqrt %355 : vector<1x32xf32>
    %c0_353 = arith.constant 0 : index
    %c0_354 = arith.constant 0 : index
    %357 = vector.load %arg5[%c0_353, %c0_354] : memref<1x32xf32, #tpu.memory_space<vmem>>, vector<1x32xf32>
    %358 = arith.mulf %356, %357 : vector<1x32xf32>
    %c0_355 = arith.constant 0 : index
    %c0_356 = arith.constant 0 : index
    %359 = vector.load %arg6[%c0_355, %c0_356] : memref<1x32xf32, #tpu.memory_space<vmem>>, vector<1x32xf32>
    %360 = arith.mulf %349, %358 : vector<1x32xf32>
    %361 = arith.subf %359, %360 : vector<1x32xf32>
    %c0_357 = arith.constant 0 : index
    %c0_358 = arith.constant 0 : index
    %362 = vector.load %arg7[%c0_357, %c0_358] : memref<16x32xf32, #tpu.memory_space<vmem>>, vector<16x32xf32>
    %363 = vector.broadcast %358 : vector<1x32xf32> to vector<16x32xf32>
    %364 = arith.mulf %302, %363 : vector<16x32xf32>
    %365 = vector.broadcast %361 : vector<1x32xf32> to vector<16x32xf32>
    %366 = arith.addf %364, %365 : vector<16x32xf32>
    %367 = arith.negf %366 : vector<16x32xf32>
    %368 = math.exp %367 : vector<16x32xf32>
    %cst_359 = arith.constant 1.000000e+00 : f32
    %369 = vector.broadcast %cst_359 : f32 to vector<16x32xf32>
    %370 = arith.addf %369, %368 : vector<16x32xf32>
    %371 = arith.divf %369, %370 : vector<16x32xf32>
    %372 = arith.mulf %366, %371 : vector<16x32xf32>
    %373 = arith.addf %372, %362 : vector<16x32xf32>
    %c0_360 = arith.constant 0 : index
    %c0_361 = arith.constant 0 : index
    %c0_362 = arith.constant 0 : index
    %374 = vector.load %arg8[%c0_360, %c0_361, %c0_362] : memref<2x16x32xf32, #tpu.memory_space<vmem>>, vector<1x16x32xf32>
    %375 = vector.shape_cast %374 : vector<1x16x32xf32> to vector<16x32xf32>
    %376 = vector.shape_cast %373 : vector<16x32xf32> to vector<1x16x32xf32>
    tpu.vector_store %arg8[%c0_360, %c0_361, %c0_362], %376 {strides = array<i32>} : memref<2x16x32xf32, #tpu.memory_space<vmem>>, vector<1x16x32xf32>,
    %377 = vector.broadcast %358 : vector<1x32xf32> to vector<16x32xf32>
    %378 = arith.mulf %340, %377 : vector<16x32xf32>
    %379 = vector.broadcast %361 : vector<1x32xf32> to vector<16x32xf32>
    %380 = arith.addf %378, %379 : vector<16x32xf32>
    %381 = arith.negf %380 : vector<16x32xf32>
    %382 = math.exp %381 : vector<16x32xf32>
    %cst_363 = arith.constant 1.000000e+00 : f32
    %383 = vector.broadcast %cst_363 : f32 to vector<16x32xf32>
    %384 = arith.addf %383, %382 : vector<16x32xf32>
    %385 = arith.divf %383, %384 : vector<16x32xf32>
    %386 = arith.mulf %380, %385 : vector<16x32xf32>
    %387 = arith.addf %386, %362 : vector<16x32xf32>
    %c1_364 = arith.constant 1 : index
    %c0_365 = arith.constant 0 : index
    %c0_366 = arith.constant 0 : index
    %388 = vector.load %arg8[%c1_364, %c0_365, %c0_366] : memref<2x16x32xf32, #tpu.memory_space<vmem>>, vector<1x16x32xf32>
    %389 = vector.shape_cast %388 : vector<1x16x32xf32> to vector<16x32xf32>
    %390 = vector.shape_cast %387 : vector<16x32xf32> to vector<1x16x32xf32>
    tpu.vector_store %arg8[%c1_364, %c0_365, %c0_366], %390 {strides = array<i32>} : memref<2x16x32xf32, #tpu.memory_space<vmem>>, vector<1x16x32xf32>,
    return
  }
}

</mosaic_0001>

<llo_original>
// kernel: eeg_encoder_forward.1
$region0: #{eeg_encoder_forward.1}
  #allocation0 [shape = 'u32[]', space=smem, size = 0x4, offset = 0x4, fixed_abs, tag = 'smem constant byte address 0x4 - core index']
  #allocation1 [shape = 'u32[144,128]{1,0:T(1,128)}', space=vmem, size = 0x12000, scoped, tag = 'internal scratch']
  #allocation2 [shape = 'f32[2,2,18,16]{3,2,1,0:T(8,128)}', space=vmem, size = 0xc000, scoped, tag = 'scratch operand']
  %s0 = inlined_call_operand.vmem [shape: f32[2,4,18,8], index: 0, kind: input, shape index: {}]
  %s1 = inlined_call_operand.vmem [shape: f32[7,8,16], index: 1, kind: input, shape index: {}]
  %s2 = inlined_call_operand.vmem [shape: f32[5,16,32], index: 2, kind: input, shape index: {}]
  %s3 = inlined_call_operand.vmem [shape: f32[1,16], index: 3, kind: input, shape index: {}]
  %s4 = inlined_call_operand.vmem [shape: f32[1,16], index: 4, kind: input, shape index: {}]
  %s5 = inlined_call_operand.vmem [shape: f32[1,32], index: 5, kind: input, shape index: {}]
  %s6 = inlined_call_operand.vmem [shape: f32[1,32], index: 6, kind: input, shape index: {}]
  %s7 = inlined_call_operand.vmem [shape: f32[16,32], index: 7, kind: input, shape index: {}]
  %s8 = inlined_call_operand.hbm [shape: f32[2,16,32], index: 8, kind: output, shape index: {}]
  %s9 = sld [smem:[#allocation0]]
  $region42: #{eeg_encoder_forward.1} parent=0
    _
  %s11 = ssub.s32 1, %s9
  %s12 = scalar_select 0, %s11, %s9
  $region1: #{eeg_encoder_forward.1} parent=0
    #allocation3 [shape = 'u8[16384]{0}', space=vmem, size = 0x4000, scoped, tag = 'output window, operand 0, single buffered']
    #allocation4 [shape = 's32[1]{0}', space=sflag, size = 0x4, scoped, tag = 'scoped memory for eeg_encoder_forward.1']
    %13 = vsyncpa [#allocation4], 0
    // Predicated region
    $region2: #{eeg_encoder_forward.1} parent=1 // pred_check
      _
    $region3: #{eeg_encoder_forward.1} parent=1 // pred_check_branch
      %15 = sbr.rel (0) target = $region5
    $region4: #{eeg_encoder_forward.1} parent=1 // pred_region
      _
    $region5: #{eeg_encoder_forward.1} parent=1 // pred_fallthru
      _
    // Predicated region
    $region6: #{eeg_encoder_forward.1} parent=1 // pred_check
      _
    $region7: #{eeg_encoder_forward.1} parent=1 // pred_check_branch
      %17 = sbr.rel (0) target = $region9
    $region8: #{eeg_encoder_forward.1} parent=1 // pred_region
      _
    $region9: #{eeg_encoder_forward.1} parent=1 // pred_fallthru
      _
    // Predicated region
    $region10: #{eeg_encoder_forward.1} parent=1 // pred_check
      _
    $region11: #{eeg_encoder_forward.1} parent=1 // pred_check_branch
      %19 = sbr.rel (0) target = $region13
    $region12: #{eeg_encoder_forward.1} parent=1 // pred_region
      _
    $region13: #{eeg_encoder_forward.1} parent=1 // pred_fallthru
      _
    // Predicated region
    $region14: #{eeg_encoder_forward.1} parent=1 // pred_check
      _
    $region15: #{eeg_encoder_forward.1} parent=1 // pred_check_branch
      %21 = sbr.rel (0) target = $region17
    $region16: #{eeg_encoder_forward.1} parent=1 // pred_region
      _
    $region17: #{eeg_encoder_forward.1} parent=1 // pred_fallthru
      _
    // Predicated region
    $region18: #{eeg_encoder_forward.1} parent=1 // pred_check
      _
    $region19: #{eeg_encoder_forward.1} parent=1 // pred_check_branch
      %23 = sbr.rel (0) target = $region21
    $region20: #{eeg_encoder_forward.1} parent=1 // pred_region
      _
    $region21: #{eeg_encoder_forward.1} parent=1 // pred_fallthru
      _
    // Predicated region
    $region22: #{eeg_encoder_forward.1} parent=1 // pred_check
      _
    $region23: #{eeg_encoder_forward.1} parent=1 // pred_check_branch
      %25 = sbr.rel (0) target = $region25
    $region24: #{eeg_encoder_forward.1} parent=1 // pred_region
      _
    $region25: #{eeg_encoder_forward.1} parent=1 // pred_fallthru
      _
    // Predicated region
    $region26: #{eeg_encoder_forward.1} parent=1 // pred_check
      _
    $region27: #{eeg_encoder_forward.1} parent=1 // pred_check_branch
      %27 = sbr.rel (0) target = $region29
    $region28: #{eeg_encoder_forward.1} parent=1 // pred_region
      _
    $region29: #{eeg_encoder_forward.1} parent=1 // pred_fallthru
      _
    // Predicated region
    $region30: #{eeg_encoder_forward.1} parent=1 // pred_check
      _
    $region31: #{eeg_encoder_forward.1} parent=1 // pred_check_branch
      %29 = sbr.rel (0) target = $region33
    $region32: #{eeg_encoder_forward.1} parent=1 // pred_region
      _
    $region33: #{eeg_encoder_forward.1} parent=1 // pred_fallthru
      _
    %vm30 = vcmask 130048
    %31 = vst.msk [vmem:[#allocation2] sm:$0xff] %vm30, 0.0
    %32 = vst.msk [vmem:[#allocation2 + $0x8] sm:$0xff] %vm30, 0.0
    %vm33 = vcmask 123904
    %34 = vst.msk [vmem:[#allocation2 + $0x10] sm:$0x3] %vm33, 0.0
    %35 = vst.msk [vmem:[#allocation2 + $0x18] sm:$0xff] %vm30, 0.0
    %36 = vst.msk [vmem:[#allocation2 + $0x20] sm:$0xff] %vm30, 0.0
    %37 = vst.msk [vmem:[#allocation2 + $0x28] sm:$0x3] %vm33, 0.0
    %38 = vst.msk [vmem:[#allocation2 + $0x30] sm:$0xff] %vm30, 0.0
    %39 = vst.msk [vmem:[#allocation2 + $0x38] sm:$0xff] %vm30, 0.0
    %40 = vst.msk [vmem:[#allocation2 + $0x40] sm:$0x3] %vm33, 0.0
    %41 = vst.msk [vmem:[#allocation2 + $0x48] sm:$0xff] %vm30, 0.0
    %42 = vst.msk [vmem:[#allocation2 + $0x50] sm:$0xff] %vm30, 0.0
    %43 = vst.msk [vmem:[#allocation2 + $0x58] sm:$0x3] %vm33, 0.0
    %v44 = vld [vmem:[%s0] sm:$0xff]
    %v45 = vld [vmem:[%s0 + $0x8] sm:$0xff]
    %v46 = vld [vmem:[%s1] sm:$0xff]
    %s47 = scalar_lea.vmem %s0, 24
    %v48 = vld [vmem:[%s47] sm:$0xff]
    %v49 = vld [vmem:[%s47 + $0x8] sm:$0xff]
    %s50 = scalar_lea.vmem %s1, 8
    %v51 = vld [vmem:[%s50] sm:$0xff]
    %vm52 = vcmask 64512
    %v54 = vsel %vm52, %v48, 0
    %v57 = vsel %vm52, %v49, 0
    %59 = vmatprep.subr.mxu0 0.0
    %60 = vmatpush1.msra.mxu0 0.0
    %61 = vmatprep.subr.mxu0 0.0
    %62 = vmatpush1.msra.mxu0 0.0
    %63 = vmatprep.subr.mxu0 0.0
    %64 = vmatpush1.msra.mxu0 0.0
    %65 = vmatprep.subr.mxu0 0.0
    %66 = vmatpush1.msra.mxu0 0.0
    %67 = vmatprep.subr.mxu0 0.0
    %68 = vmatpush1.msra.mxu0 0.0
    %69 = vmatprep.subr.mxu0 0.0
    %70 = vmatpush1.msra.mxu0 0.0
    %71 = vmatprep.subr.mxu0 0.0
    %72 = vmatpush1.msra.mxu0 0.0
    %73 = vmatprep.subr.mxu0 0.0
    %74 = vmatpush1.msra.mxu0 0.0
    %75 = vmatprep.subr.mxu0 0.0
    %76 = vmatpush1.msra.mxu0 0.0
    %77 = vmatprep.subr.mxu0 0.0
    %78 = vmatpush1.msra.mxu0 0.0
    %79 = vmatprep.subr.mxu0 0.0
    %80 = vmatpush1.msra.mxu0 0.0
    %81 = vmatprep.subr.mxu0 0.0
    %82 = vmatpush1.msra.mxu0 0.0
    %83 = vmatprep.subr.mxu0 0.0
    %84 = vmatpush1.msra.mxu0 0.0
    %85 = vmatprep.subr.mxu0 0.0
    %86 = vmatpush1.msra.mxu0 0.0
    %87 = vmatprep.subr.mxu0 0.0
    %88 = vmatpush1.msra.mxu0 0.0
    %89 = vmatprep.subr.mxu0 0.0
    %90 = vmatpush1.msra.mxu0 %v51
    %91 = vmatprep.subr.mxu0 0.0
    %92 = vmatpush2.msra.mxu0 0.0
    %93 = vmatprep.subr.mxu0 0.0
    %94 = vmatpush2.msra.mxu0 0.0
    %95 = vmatprep.subr.mxu0 0.0
    %96 = vmatpush2.msra.mxu0 0.0
    %97 = vmatprep.subr.mxu0 0.0
    %98 = vmatpush2.msra.mxu0 0.0
    %99 = vmatprep.subr.mxu0 0.0
    %100 = vmatpush2.msra.mxu0 0.0
    %101 = vmatprep.subr.mxu0 0.0
    %102 = vmatpush2.msra.mxu0 0.0
    %103 = vmatprep.subr.mxu0 0.0
    %104 = vmatpush2.msra.mxu0 0.0
    %105 = vmatprep.subr.mxu0 0.0
    %106 = vmatpush2.msra.mxu0 0.0
    %107 = vmatprep.subr.mxu0 0.0
    %108 = vmatpush2.msra.mxu0 0.0
    %109 = vmatprep.subr.mxu0 0.0
    %110 = vmatpush2.msra.mxu0 0.0
    %111 = vmatprep.subr.mxu0 0.0
    %112 = vmatpush2.msra.mxu0 0.0
    %113 = vmatprep.subr.mxu0 0.0
    %114 = vmatpush2.msra.mxu0 0.0
    %115 = vmatprep.subr.mxu0 0.0
    %116 = vmatpush2.msra.mxu0 0.0
    %117 = vmatprep.subr.mxu0 0.0
    %118 = vmatpush2.msra.mxu0 0.0
    %119 = vmatprep.subr.mxu0 0.0
    %120 = vmatpush2.msra.mxu0 0.0
    %121 = vmatprep.subr.mxu0 0.0
    %122 = vmatpush2.msra.mxu0 0.0
    %123 = vmatprep.mubr.f32.mxu0 0.0
    %124 = vmatmul.mubr.f32.gmra.mxu0 %v54
    %v125 = vpop.f32.mrf.mxu0
    %v126 = vadd.f32 0.0, %v125
    %v127 = vpop.f32.mrf.mxu0
    %128 = vmatprep.mubr.f32.mxu0 0.0
    %129 = vmatmul.mubr.f32.gmra.mxu0 %v57
    %v130 = vpop.f32.mrf.mxu0
    %v131 = vadd.f32 0.0, %v130
    %v132 = vpop.f32.mrf.mxu0
    %133 = vdwg.mxu0
    %v135 = vsel %vm52, %v44, 0
    %v138 = vsel %vm52, %v45, 0
    %140 = vmatprep.subr.mxu0 0.0
    %141 = vmatpush1.msra.mxu0 0.0
    %142 = vmatprep.subr.mxu0 0.0
    %143 = vmatpush1.msra.mxu0 0.0
    %144 = vmatprep.subr.mxu0 0.0
    %145 = vmatpush1.msra.mxu0 0.0
    %146 = vmatprep.subr.mxu0 0.0
    %147 = vmatpush1.msra.mxu0 0.0
    %148 = vmatprep.subr.mxu0 0.0
    %149 = vmatpush1.msra.mxu0 0.0
    %150 = vmatprep.subr.mxu0 0.0
    %151 = vmatpush1.msra.mxu0 0.0
    %152 = vmatprep.subr.mxu0 0.0
    %153 = vmatpush1.msra.mxu0 0.0
    %154 = vmatprep.subr.mxu0 0.0
    %155 = vmatpush1.msra.mxu0 0.0
    %156 = vmatprep.subr.mxu0 0.0
    %157 = vmatpush1.msra.mxu0 0.0
    %158 = vmatprep.subr.mxu0 0.0
    %159 = vmatpush1.msra.mxu0 0.0
    %160 = vmatprep.subr.mxu0 0.0
    %161 = vmatpush1.msra.mxu0 0.0
    %162 = vmatprep.subr.mxu0 0.0
    %163 = vmatpush1.msra.mxu0 0.0
    %164 = vmatprep.subr.mxu0 0.0
    %165 = vmatpush1.msra.mxu0 0.0
    %166 = vmatprep.subr.mxu0 0.0
    %167 = vmatpush1.msra.mxu0 0.0
    %168 = vmatprep.subr.mxu0 0.0
    %169 = vmatpush1.msra.mxu0 0.0
    %170 = vmatprep.subr.mxu0 0.0
    %171 = vmatpush1.msra.mxu0 %v46
    %172 = vmatprep.subr.mxu0 0.0
    %173 = vmatpush2.msra.mxu0 0.0
    %174 = vmatprep.subr.mxu0 0.0
    %175 = vmatpush2.msra.mxu0 0.0
    %176 = vmatprep.subr.mxu0 0.0
    %177 = vmatpush2.msra.mxu0 0.0
    %178 = vmatprep.subr.mxu0 0.0
    %179 = vmatpush2.msra.mxu0 0.0
    %180 = vmatprep.subr.mxu0 0.0
    %181 = vmatpush2.msra.mxu0 0.0
    %182 = vmatprep.subr.mxu0 0.0
    %183 = vmatpush2.msra.mxu0 0.0
    %184 = vmatprep.subr.mxu0 0.0
    %185 = vmatpush2.msra.mxu0 0.0
    %186 = vmatprep.subr.mxu0 0.0
    %187 = vmatpush2.msra.mxu0 0.0
    %188 = vmatprep.subr.mxu0 0.0
    %189 = vmatpush2.msra.mxu0 0.0
    %190 = vmatprep.subr.mxu0 0.0
    %191 = vmatpush2.msra.mxu0 0.0
    %192 = vmatprep.subr.mxu0 0.0
    %193 = vmatpush2.msra.mxu0 0.0
    %194 = vmatprep.subr.mxu0 0.0
    %195 = vmatpush2.msra.mxu0 0.0
    %196 = vmatprep.subr.mxu0 0.0
    %197 = vmatpush2.msra.mxu0 0.0
    %198 = vmatprep.subr.mxu0 0.0
    %199 = vmatpush2.msra.mxu0 0.0
    %200 = vmatprep.subr.mxu0 0.0
    %201 = vmatpush2.msra.mxu0 0.0
    %202 = vmatprep.subr.mxu0 0.0
    %203 = vmatpush2.msra.mxu0 0.0
    %204 = vmatprep.mubr.f32.mxu0 0.0
    %205 = vmatmul.mubr.f32.gmra.mxu0 %v135
    %v206 = vpop.f32.mrf.mxu0
    %v207 = vadd.f32 %v126, %v206
    %v208 = vpop.f32.mrf.mxu0
    %209 = vmatprep.mubr.f32.mxu0 0.0
    %210 = vmatmul.mubr.f32.gmra.mxu0 %v138
    %v211 = vpop.f32.mrf.mxu0
    %v212 = vadd.f32 %v131, %v211
    %v213 = vpop.f32.mrf.mxu0
    %214 = vdwg.mxu0
    %s215 = scalar_lea.vmem %s0, 48
    %v216 = vld [vmem:[%s215] sm:$0xff]
    %v217 = vld [vmem:[%s215 + $0x8] sm:$0xff]
    %s218 = scalar_lea.vmem %s1, 16
    %v219 = vld [vmem:[%s218] sm:$0xff]
    %v221 = vsel %vm52, %v216, 0
    %v224 = vsel %vm52, %v217, 0
    %226 = vmatprep.subr.mxu0 0.0
    %227 = vmatpush1.msra.mxu0 0.0
    %228 = vmatprep.subr.mxu0 0.0
    %229 = vmatpush1.msra.mxu0 0.0
    %230 = vmatprep.subr.mxu0 0.0
    %231 = vmatpush1.msra.mxu0 0.0
    %232 = vmatprep.subr.mxu0 0.0
    %233 = vmatpush1.msra.mxu0 0.0
    %234 = vmatprep.subr.mxu0 0.0
    %235 = vmatpush1.msra.mxu0 0.0
    %236 = vmatprep.subr.mxu0 0.0
    %237 = vmatpush1.msra.mxu0 0.0
    %238 = vmatprep.subr.mxu0 0.0
    %239 = vmatpush1.msra.mxu0 0.0
    %240 = vmatprep.subr.mxu0 0.0
    %241 = vmatpush1.msra.mxu0 0.0
    %242 = vmatprep.subr.mxu0 0.0
    %243 = vmatpush1.msra.mxu0 0.0
    %244 = vmatprep.subr.mxu0 0.0
    %245 = vmatpush1.msra.mxu0 0.0
    %246 = vmatprep.subr.mxu0 0.0
    %247 = vmatpush1.msra.mxu0 0.0
    %248 = vmatprep.subr.mxu0 0.0
    %249 = vmatpush1.msra.mxu0 0.0
    %250 = vmatprep.subr.mxu0 0.0
    %251 = vmatpush1.msra.mxu0 0.0
    %252 = vmatprep.subr.mxu0 0.0
    %253 = vmatpush1.msra.mxu0 0.0
    %254 = vmatprep.subr.mxu0 0.0
    %255 = vmatpush1.msra.mxu0 0.0
    %256 = vmatprep.subr.mxu0 0.0
    %257 = vmatpush1.msra.mxu0 %v219
    %258 = vmatprep.subr.mxu0 0.0
    %259 = vmatpush2.msra.mxu0 0.0
    %260 = vmatprep.subr.mxu0 0.0
    %261 = vmatpush2.msra.mxu0 0.0
    %262 = vmatprep.subr.mxu0 0.0
    %263 = vmatpush2.msra.mxu0 0.0
    %264 = vmatprep.subr.mxu0 0.0
    %265 = vmatpush2.msra.mxu0 0.0
    %266 = vmatprep.subr.mxu0 0.0
    %267 = vmatpush2.msra.mxu0 0.0
    %268 = vmatprep.subr.mxu0 0.0
    %269 = vmatpush2.msra.mxu0 0.0
    %270 = vmatprep.subr.mxu0 0.0
    %271 = vmatpush2.msra.mxu0 0.0
    %272 = vmatprep.subr.mxu0 0.0
    %273 = vmatpush2.msra.mxu0 0.0
    %274 = vmatprep.subr.mxu0 0.0
    %275 = vmatpush2.msra.mxu0 0.0
    %276 = vmatprep.subr.mxu0 0.0
    %277 = vmatpush2.msra.mxu0 0.0
    %278 = vmatprep.subr.mxu0 0.0
    %279 = vmatpush2.msra.mxu0 0.0
    %280 = vmatprep.subr.mxu0 0.0
    %281 = vmatpush2.msra.mxu0 0.0
    %282 = vmatprep.subr.mxu0 0.0
    %283 = vmatpush2.msra.mxu0 0.0
    %284 = vmatprep.subr.mxu0 0.0
    %285 = vmatpush2.msra.mxu0 0.0
    %286 = vmatprep.subr.mxu0 0.0
    %287 = vmatpush2.msra.mxu0 0.0
    %288 = vmatprep.subr.mxu0 0.0
    %289 = vmatpush2.msra.mxu0 0.0
    %290 = vmatprep.mubr.f32.mxu0 0.0
    %291 = vmatmul.mubr.f32.gmra.mxu0 %v221
    %v292 = vpop.f32.mrf.mxu0
    %v293 = vadd.f32 0.0, %v292
    %v294 = vpop.f32.mrf.mxu0
    %295 = vmatprep.mubr.f32.mxu0 0.0
    %296 = vmatmul.mubr.f32.gmra.mxu0 %v224
    %v297 = vpop.f32.mrf.mxu0
    %v298 = vadd.f32 0.0, %v297
    %v299 = vpop.f32.mrf.mxu0
    %300 = vdwg.mxu0
    %v301 = vadd.f32 %v207, %v293
    %v302 = vadd.f32 %v212, %v298
    %s303 = scalar_lea.vmem %s0, 72
    %v304 = vld [vmem:[%s303] sm:$0xff]
    %v305 = vld [vmem:[%s303 + $0x8] sm:$0xff]
    %s306 = scalar_lea.vmem %s1, 24
    %v307 = vld [vmem:[%s306] sm:$0xff]
    %v309 = vsel %vm52, %v304, 0
    %v312 = vsel %vm52, %v305, 0
    %314 = vmatprep.subr.mxu0 0.0
    %315 = vmatpush1.msra.mxu0 0.0
    %316 = vmatprep.subr.mxu0 0.0
    %317 = vmatpush1.msra.mxu0 0.0
    %318 = vmatprep.subr.mxu0 0.0
    %319 = vmatpush1.msra.mxu0 0.0
    %320 = vmatprep.subr.mxu0 0.0
    %321 = vmatpush1.msra.mxu0 0.0
    %322 = vmatprep.subr.mxu0 0.0
    %323 = vmatpush1.msra.mxu0 0.0
    %324 = vmatprep.subr.mxu0 0.0
    %325 = vmatpush1.msra.mxu0 0.0
    %326 = vmatprep.subr.mxu0 0.0
    %327 = vmatpush1.msra.mxu0 0.0
    %328 = vmatprep.subr.mxu0 0.0
    %329 = vmatpush1.msra.mxu0 0.0
    %330 = vmatprep.subr.mxu0 0.0
    %331 = vmatpush1.msra.mxu0 0.0
    %332 = vmatprep.subr.mxu0 0.0
    %333 = vmatpush1.msra.mxu0 0.0
    %334 = vmatprep.subr.mxu0 0.0
    %335 = vmatpush1.msra.mxu0 0.0
    %336 = vmatprep.subr.mxu0 0.0
    %337 = vmatpush1.msra.mxu0 0.0
    %338 = vmatprep.subr.mxu0 0.0
    %339 = vmatpush1.msra.mxu0 0.0
    %340 = vmatprep.subr.mxu0 0.0
    %341 = vmatpush1.msra.mxu0 0.0
    %342 = vmatprep.subr.mxu0 0.0
    %343 = vmatpush1.msra.mxu0 0.0
    %344 = vmatprep.subr.mxu0 0.0
    %345 = vmatpush1.msra.mxu0 %v307
    %346 = vmatprep.subr.mxu0 0.0
    %347 = vmatpush2.msra.mxu0 0.0
    %348 = vmatprep.subr.mxu0 0.0
    %349 = vmatpush2.msra.mxu0 0.0
    %350 = vmatprep.subr.mxu0 0.0
    %351 = vmatpush2.msra.mxu0 0.0
    %352 = vmatprep.subr.mxu0 0.0
    %353 = vmatpush2.msra.mxu0 0.0
    %354 = vmatprep.subr.mxu0 0.0
    %355 = vmatpush2.msra.mxu0 0.0
    %356 = vmatprep.subr.mxu0 0.0
    %357 = vmatpush2.msra.mxu0 0.0
    %358 = vmatprep.subr.mxu0 0.0
    %359 = vmatpush2.msra.mxu0 0.0
    %360 = vmatprep.subr.mxu0 0.0
    %361 = vmatpush2.msra.mxu0 0.0
    %362 = vmatprep.subr.mxu0 0.0
    %363 = vmatpush2.msra.mxu0 0.0
    %364 = vmatprep.subr.mxu0 0.0
    %365 = vmatpush2.msra.mxu0 0.0
    %366 = vmatprep.subr.mxu0 0.0
    %367 = vmatpush2.msra.mxu0 0.0
    %368 = vmatprep.subr.mxu0 0.0
    %369 = vmatpush2.msra.mxu0 0.0
    %370 = vmatprep.subr.mxu0 0.0
    %371 = vmatpush2.msra.mxu0 0.0
    %372 = vmatprep.subr.mxu0 0.0
    %373 = vmatpush2.msra.mxu0 0.0
    %374 = vmatprep.subr.mxu0 0.0
    %375 = vmatpush2.msra.mxu0 0.0
    %376 = vmatprep.subr.mxu0 0.0
    %377 = vmatpush2.msra.mxu0 0.0
    %378 = vmatprep.mubr.f32.mxu0 0.0
    %379 = vmatmul.mubr.f32.gmra.mxu0 %v309
    %v380 = vpop.f32.mrf.mxu0
    %v381 = vadd.f32 0.0, %v380
    %v382 = vpop.f32.mrf.mxu0
    %383 = vmatprep.mubr.f32.mxu0 0.0
    %384 = vmatmul.mubr.f32.gmra.mxu0 %v312
    %v385 = vpop.f32.mrf.mxu0
    %v386 = vadd.f32 0.0, %v385
    %v387 = vpop.f32.mrf.mxu0
    %388 = vdwg.mxu0
    %v389 = vadd.f32 %v301, %v381
    %v390 = vadd.f32 %v302, %v386
    %v391 = vld [vmem:[%s0 + $0x1] sm:$0xff]
    %v392 = vld [vmem:[%s0 + $0x9] sm:$0xff]
    %s393 = scalar_lea.vmem %s1, 32
    %v394 = vld [vmem:[%s393] sm:$0xff]
    %v396 = vsel %vm52, %v391, 0
    %v399 = vsel %vm52, %v392, 0
    %401 = vmatprep.subr.mxu0 0.0
    %402 = vmatpush1.msra.mxu0 0.0
    %403 = vmatprep.subr.mxu0 0.0
    %404 = vmatpush1.msra.mxu0 0.0
    %405 = vmatprep.subr.mxu0 0.0
    %406 = vmatpush1.msra.mxu0 0.0
    %407 = vmatprep.subr.mxu0 0.0
    %408 = vmatpush1.msra.mxu0 0.0
    %409 = vmatprep.subr.mxu0 0.0
    %410 = vmatpush1.msra.mxu0 0.0
    %411 = vmatprep.subr.mxu0 0.0
    %412 = vmatpush1.msra.mxu0 0.0
    %413 = vmatprep.subr.mxu0 0.0
    %414 = vmatpush1.msra.mxu0 0.0
    %415 = vmatprep.subr.mxu0 0.0
    %416 = vmatpush1.msra.mxu0 0.0
    %417 = vmatprep.subr.mxu0 0.0
    %418 = vmatpush1.msra.mxu0 0.0
    %419 = vmatprep.subr.mxu0 0.0
    %420 = vmatpush1.msra.mxu0 0.0
    %421 = vmatprep.subr.mxu0 0.0
    %422 = vmatpush1.msra.mxu0 0.0
    %423 = vmatprep.subr.mxu0 0.0
    %424 = vmatpush1.msra.mxu0 0.0
    %425 = vmatprep.subr.mxu0 0.0
    %426 = vmatpush1.msra.mxu0 0.0
    %427 = vmatprep.subr.mxu0 0.0
    %428 = vmatpush1.msra.mxu0 0.0
    %429 = vmatprep.subr.mxu0 0.0
    %430 = vmatpush1.msra.mxu0 0.0
    %431 = vmatprep.subr.mxu0 0.0
    %432 = vmatpush1.msra.mxu0 %v394
    %433 = vmatprep.subr.mxu0 0.0
    %434 = vmatpush2.msra.mxu0 0.0
    %435 = vmatprep.subr.mxu0 0.0
    %436 = vmatpush2.msra.mxu0 0.0
    %437 = vmatprep.subr.mxu0 0.0
    %438 = vmatpush2.msra.mxu0 0.0
    %439 = vmatprep.subr.mxu0 0.0
    %440 = vmatpush2.msra.mxu0 0.0
    %441 = vmatprep.subr.mxu0 0.0
    %442 = vmatpush2.msra.mxu0 0.0
    %443 = vmatprep.subr.mxu0 0.0
    %444 = vmatpush2.msra.mxu0 0.0
    %445 = vmatprep.subr.mxu0 0.0
    %446 = vmatpush2.msra.mxu0 0.0
    %447 = vmatprep.subr.mxu0 0.0
    %448 = vmatpush2.msra.mxu0 0.0
    %449 = vmatprep.subr.mxu0 0.0
    %450 = vmatpush2.msra.mxu0 0.0
    %451 = vmatprep.subr.mxu0 0.0
    %452 = vmatpush2.msra.mxu0 0.0
    %453 = vmatprep.subr.mxu0 0.0
    %454 = vmatpush2.msra.mxu0 0.0
    %455 = vmatprep.subr.mxu0 0.0
    %456 = vmatpush2.msra.mxu0 0.0
    %457 = vmatprep.subr.mxu0 0.0
    %458 = vmatpush2.msra.mxu0 0.0
    %459 = vmatprep.subr.mxu0 0.0
    %460 = vmatpush2.msra.mxu0 0.0
    %461 = vmatprep.subr.mxu0 0.0
    %462 = vmatpush2.msra.mxu0 0.0
    %463 = vmatprep.subr.mxu0 0.0
    %464 = vmatpush2.msra.mxu0 0.0
    %465 = vmatprep.mubr.f32.mxu0 0.0
    %466 = vmatmul.mubr.f32.gmra.mxu0 %v396
    %v467 = vpop.f32.mrf.mxu0
    %v468 = vadd.f32 0.0, %v467
    %v469 = vpop.f32.mrf.mxu0
    %470 = vmatprep.mubr.f32.mxu0 0.0
    %471 = vmatmul.mubr.f32.gmra.mxu0 %v399
    %v472 = vpop.f32.mrf.mxu0
    %v473 = vadd.f32 0.0, %v472
    %v474 = vpop.f32.mrf.mxu0
    %475 = vdwg.mxu0
    %v476 = vadd.f32 %v389, %v468
    %v477 = vadd.f32 %v390, %v473
    %v478 = vld [vmem:[%s47 + $0x1] sm:$0xff]
    %v479 = vld [vmem:[%s47 + $0x9] sm:$0xff]
    %s480 = scalar_lea.vmem %s1, 40
    %v481 = vld [vmem:[%s480] sm:$0xff]
    %v483 = vsel %vm52, %v478, 0
    %v486 = vsel %vm52, %v479, 0
    %488 = vmatprep.subr.mxu0 0.0
    %489 = vmatpush1.msra.mxu0 0.0
    %490 = vmatprep.subr.mxu0 0.0
    %491 = vmatpush1.msra.mxu0 0.0
    %492 = vmatprep.subr.mxu0 0.0
    %493 = vmatpush1.msra.mxu0 0.0
    %494 = vmatprep.subr.mxu0 0.0
    %495 = vmatpush1.msra.mxu0 0.0
    %496 = vmatprep.subr.mxu0 0.0
    %497 = vmatpush1.msra.mxu0 0.0
    %498 = vmatprep.subr.mxu0 0.0
    %499 = vmatpush1.msra.mxu0 0.0
    %500 = vmatprep.subr.mxu0 0.0
    %501 = vmatpush1.msra.mxu0 0.0
    %502 = vmatprep.subr.mxu0 0.0
    %503 = vmatpush1.msra.mxu0 0.0
    %504 = vmatprep.subr.mxu0 0.0
    %505 = vmatpush1.msra.mxu0 0.0
    %506 = vmatprep.subr.mxu0 0.0
    %507 = vmatpush1.msra.mxu0 0.0
    %508 = vmatprep.subr.mxu0 0.0
    %509 = vmatpush1.msra.mxu0 0.0
    %510 = vmatprep.subr.mxu0 0.0
    %511 = vmatpush1.msra.mxu0 0.0
    %512 = vmatprep.subr.mxu0 0.0
    %513 = vmatpush1.msra.mxu0 0.0
    %514 = vmatprep.subr.mxu0 0.0
    %515 = vmatpush1.msra.mxu0 0.0
    %516 = vmatprep.subr.mxu0 0.0
    %517 = vmatpush1.msra.mxu0 0.0
    %518 = vmatprep.subr.mxu0 0.0
    %519 = vmatpush1.msra.mxu0 %v481
    %520 = vmatprep.subr.mxu0 0.0
    %521 = vmatpush2.msra.mxu0 0.0
    %522 = vmatprep.subr.mxu0 0.0
    %523 = vmatpush2.msra.mxu0 0.0
    %524 = vmatprep.subr.mxu0 0.0
    %525 = vmatpush2.msra.mxu0 0.0
    %526 = vmatprep.subr.mxu0 0.0
    %527 = vmatpush2.msra.mxu0 0.0
    %528 = vmatprep.subr.mxu0 0.0
    %529 = vmatpush2.msra.mxu0 0.0
    %530 = vmatprep.subr.mxu0 0.0
    %531 = vmatpush2.msra.mxu0 0.0
    %532 = vmatprep.subr.mxu0 0.0
    %533 = vmatpush2.msra.mxu0 0.0
    %534 = vmatprep.subr.mxu0 0.0
    %535 = vmatpush2.msra.mxu0 0.0
    %536 = vmatprep.subr.mxu0 0.0
    %537 = vmatpush2.msra.mxu0 0.0
    %538 = vmatprep.subr.mxu0 0.0
    %539 = vmatpush2.msra.mxu0 0.0
    %540 = vmatprep.subr.mxu0 0.0
    %541 = vmatpush2.msra.mxu0 0.0
    %542 = vmatprep.subr.mxu0 0.0
    %543 = vmatpush2.msra.mxu0 0.0
    %544 = vmatprep.subr.mxu0 0.0
    %545 = vmatpush2.msra.mxu0 0.0
    %546 = vmatprep.subr.mxu0 0.0
    %547 = vmatpush2.msra.mxu0 0.0
    %548 = vmatprep.subr.mxu0 0.0
    %549 = vmatpush2.msra.mxu0 0.0
    %550 = vmatprep.subr.mxu0 0.0
    %551 = vmatpush2.msra.mxu0 0.0
    %552 = vmatprep.mubr.f32.mxu0 0.0
    %553 = vmatmul.mubr.f32.gmra.mxu0 %v483
    %v554 = vpop.f32.mrf.mxu0
    %v555 = vadd.f32 0.0, %v554
    %v556 = vpop.f32.mrf.mxu0
    %557 = vmatprep.mubr.f32.mxu0 0.0
    %558 = vmatmul.mubr.f32.gmra.mxu0 %v486
    %v559 = vpop.f32.mrf.mxu0
    %v560 = vadd.f32 0.0, %v559
    %v561 = vpop.f32.mrf.mxu0
    %562 = vdwg.mxu0
    %v563 = vadd.f32 %v476, %v555
    %v564 = vadd.f32 %v477, %v560
    %v565 = vld [vmem:[%s215 + $0x1] sm:$0xff]
    %v566 = vld [vmem:[%s215 + $0x9] sm:$0xff]
    %s567 = scalar_lea.vmem %s1, 48
    %v568 = vld [vmem:[%s567] sm:$0xff]
    %v570 = vsel %vm52, %v565, 0
    %v573 = vsel %vm52, %v566, 0
    %575 = vmatprep.subr.mxu0 0.0
    %576 = vmatpush1.msra.mxu0 0.0
    %577 = vmatprep.subr.mxu0 0.0
    %578 = vmatpush1.msra.mxu0 0.0
    %579 = vmatprep.subr.mxu0 0.0
    %580 = vmatpush1.msra.mxu0 0.0
    %581 = vmatprep.subr.mxu0 0.0
    %582 = vmatpush1.msra.mxu0 0.0
    %583 = vmatprep.subr.mxu0 0.0
    %584 = vmatpush1.msra.mxu0 0.0
    %585 = vmatprep.subr.mxu0 0.0
    %586 = vmatpush1.msra.mxu0 0.0
    %587 = vmatprep.subr.mxu0 0.0
    %588 = vmatpush1.msra.mxu0 0.0
    %589 = vmatprep.subr.mxu0 0.0
    %590 = vmatpush1.msra.mxu0 0.0
    %591 = vmatprep.subr.mxu0 0.0
    %592 = vmatpush1.msra.mxu0 0.0
    %593 = vmatprep.subr.mxu0 0.0
    %594 = vmatpush1.msra.mxu0 0.0
    %595 = vmatprep.subr.mxu0 0.0
    %596 = vmatpush1.msra.mxu0 0.0
    %597 = vmatprep.subr.mxu0 0.0
    %598 = vmatpush1.msra.mxu0 0.0
    %599 = vmatprep.subr.mxu0 0.0
    %600 = vmatpush1.msra.mxu0 0.0
    %601 = vmatprep.subr.mxu0 0.0
    %602 = vmatpush1.msra.mxu0 0.0
    %603 = vmatprep.subr.mxu0 0.0
    %604 = vmatpush1.msra.mxu0 0.0
    %605 = vmatprep.subr.mxu0 0.0
    %606 = vmatpush1.msra.mxu0 %v568
    %607 = vmatprep.subr.mxu0 0.0
    %608 = vmatpush2.msra.mxu0 0.0
    %609 = vmatprep.subr.mxu0 0.0
    %610 = vmatpush2.msra.mxu0 0.0
    %611 = vmatprep.subr.mxu0 0.0
    %612 = vmatpush2.msra.mxu0 0.0
    %613 = vmatprep.subr.mxu0 0.0
    %614 = vmatpush2.msra.mxu0 0.0
    %615 = vmatprep.subr.mxu0 0.0
    %616 = vmatpush2.msra.mxu0 0.0
    %617 = vmatprep.subr.mxu0 0.0
    %618 = vmatpush2.msra.mxu0 0.0
    %619 = vmatprep.subr.mxu0 0.0
    %620 = vmatpush2.msra.mxu0 0.0
    %621 = vmatprep.subr.mxu0 0.0
    %622 = vmatpush2.msra.mxu0 0.0
    %623 = vmatprep.subr.mxu0 0.0
    %624 = vmatpush2.msra.mxu0 0.0
    %625 = vmatprep.subr.mxu0 0.0
    %626 = vmatpush2.msra.mxu0 0.0
    %627 = vmatprep.subr.mxu0 0.0
    %628 = vmatpush2.msra.mxu0 0.0
    %629 = vmatprep.subr.mxu0 0.0
    %630 = vmatpush2.msra.mxu0 0.0
    %631 = vmatprep.subr.mxu0 0.0
    %632 = vmatpush2.msra.mxu0 0.0
    %633 = vmatprep.subr.mxu0 0.0
    %634 = vmatpush2.msra.mxu0 0.0
    %635 = vmatprep.subr.mxu0 0.0
    %636 = vmatpush2.msra.mxu0 0.0
    %637 = vmatprep.subr.mxu0 0.0
    %638 = vmatpush2.msra.mxu0 0.0
    %639 = vmatprep.mubr.f32.mxu0 0.0
    %640 = vmatmul.mubr.f32.gmra.mxu0 %v570
    %v641 = vpop.f32.mrf.mxu0
    %v642 = vadd.f32 0.0, %v641
    %v643 = vpop.f32.mrf.mxu0
    %644 = vmatprep.mubr.f32.mxu0 0.0
    %645 = vmatmul.mubr.f32.gmra.mxu0 %v573
    %v646 = vpop.f32.mrf.mxu0
    %v647 = vadd.f32 0.0, %v646
    %v648 = vpop.f32.mrf.mxu0
    %649 = vdwg.mxu0
    %v650 = vadd.f32 %v563, %v642
    %v651 = vadd.f32 %v564, %v647
    %v652 = vsel %vm30, %v650, 0.0
    %v653 = vsel %vm30, %v651, 0.0
    %v654 = vadd.f32 %v652, %v653
    %v655 = vrot.slane %v654, 4
    %v656 = vadd.f32 %v654, %v655
    %v657 = vrot.slane %v656, 2
    %v658 = vadd.f32 %v656, %v657
    %v659 = vrot.slane %v658, 1
    %v660 = vadd.f32 %v658, %v659
    %v661 = vadd.f32 %v660, 0.0
    %v662 = vmul.f32 %v650, %v650
    %v663 = vmul.f32 %v651, %v651
    %v664 = vsel %vm30, %v662, 0.0
    %v665 = vsel %vm30, %v663, 0.0
    %v666 = vadd.f32 %v664, %v665
    %v667 = vrot.slane %v666, 4
    %v668 = vadd.f32 %v666, %v667
    %v669 = vrot.slane %v668, 2
    %v670 = vadd.f32 %v668, %v669
    %v671 = vrot.slane %v670, 1
    %v672 = vadd.f32 %v670, %v671
    %v673 = vadd.f32 %v672, 0.0
    %674 = vmatprep.subr.mxu0 0.0
    %675 = vmatpush1.msra.mxu0 0.0
    %676 = vmatprep.subr.mxu0 0.0
    %677 = vmatpush1.msra.mxu0 0.0
    %678 = vmatprep.subr.mxu0 0.0
    %679 = vmatpush1.msra.mxu0 0.0
    %680 = vmatprep.subr.mxu0 0.0
    %681 = vmatpush1.msra.mxu0 0.0
    %682 = vmatprep.subr.mxu0 0.0
    %683 = vmatpush1.msra.mxu0 0.0
    %684 = vmatprep.subr.mxu0 0.0
    %685 = vmatpush1.msra.mxu0 0.0
    %686 = vmatprep.subr.mxu0 0.0
    %687 = vmatpush1.msra.mxu0 0.0
    %688 = vmatprep.subr.mxu0 0.0
    %689 = vmatpush1.msra.mxu0 0.0
    %690 = vmatprep.subr.mxu0 0.0
    %691 = vmatpush1.msra.mxu0 0.0
    %692 = vmatprep.subr.mxu0 0.0
    %693 = vmatpush1.msra.mxu0 0.0
    %694 = vmatprep.subr.mxu0 0.0
    %695 = vmatpush1.msra.mxu0 0.0
    %696 = vmatprep.subr.mxu0 0.0
    %697 = vmatpush1.msra.mxu0 0.0
    %698 = vmatprep.subr.mxu0 0.0
    %699 = vmatpush1.msra.mxu0 0.0
    %700 = vmatprep.subr.mxu0 0.0
    %701 = vmatpush1.msra.mxu0 0.0
    %702 = vmatprep.subr.mxu0 0.0
    %703 = vmatpush1.msra.mxu0 0.0
    %704 = vmatprep.subr.mxu0 0.0
    %705 = vmatpush1.msra.mxu0 %v51
    %706 = vmatprep.subr.mxu0 0.0
    %707 = vmatpush2.msra.mxu0 0.0
    %708 = vmatprep.subr.mxu0 0.0
    %709 = vmatpush2.msra.mxu0 0.0
    %710 = vmatprep.subr.mxu0 0.0
    %711 = vmatpush2.msra.mxu0 0.0
    %712 = vmatprep.subr.mxu0 0.0
    %713 = vmatpush2.msra.mxu0 0.0
    %714 = vmatprep.subr.mxu0 0.0
    %715 = vmatpush2.msra.mxu0 0.0
    %716 = vmatprep.subr.mxu0 0.0
    %717 = vmatpush2.msra.mxu0 0.0
    %718 = vmatprep.subr.mxu0 0.0
    %719 = vmatpush2.msra.mxu0 0.0
    %720 = vmatprep.subr.mxu0 0.0
    %721 = vmatpush2.msra.mxu0 0.0
    %722 = vmatprep.subr.mxu0 0.0
    %723 = vmatpush2.msra.mxu0 0.0
    %724 = vmatprep.subr.mxu0 0.0
    %725 = vmatpush2.msra.mxu0 0.0
    %726 = vmatprep.subr.mxu0 0.0
    %727 = vmatpush2.msra.mxu0 0.0
    %728 = vmatprep.subr.mxu0 0.0
    %729 = vmatpush2.msra.mxu0 0.0
    %730 = vmatprep.subr.mxu0 0.0
    %731 = vmatpush2.msra.mxu0 0.0
    %732 = vmatprep.subr.mxu0 0.0
    %733 = vmatpush2.msra.mxu0 0.0
    %734 = vmatprep.subr.mxu0 0.0
    %735 = vmatpush2.msra.mxu0 0.0
    %736 = vmatprep.subr.mxu0 0.0
    %737 = vmatpush2.msra.mxu0 0.0
    %738 = vmatprep.mubr.f32.mxu0 0.0
    %739 = vmatmul.mubr.f32.gmra.mxu0 %v309
    %v740 = vpop.f32.mrf.mxu0
    %v741 = vadd.f32 0.0, %v740
    %v742 = vpop.f32.mrf.mxu0
    %743 = vmatprep.mubr.f32.mxu0 0.0
    %744 = vmatmul.mubr.f32.gmra.mxu0 %v312
    %v745 = vpop.f32.mrf.mxu0
    %v746 = vadd.f32 0.0, %v745
    %v747 = vpop.f32.mrf.mxu0
    %748 = vdwg.mxu0
    %749 = vmatprep.subr.mxu0 0.0
    %750 = vmatpush1.msra.mxu0 0.0
    %751 = vmatprep.subr.mxu0 0.0
    %752 = vmatpush1.msra.mxu0 0.0
    %753 = vmatprep.subr.mxu0 0.0
    %754 = vmatpush1.msra.mxu0 0.0
    %755 = vmatprep.subr.mxu0 0.0
    %756 = vmatpush1.msra.mxu0 0.0
    %757 = vmatprep.subr.mxu0 0.0
    %758 = vmatpush1.msra.mxu0 0.0
    %759 = vmatprep.subr.mxu0 0.0
    %760 = vmatpush1.msra.mxu0 0.0
    %761 = vmatprep.subr.mxu0 0.0
    %762 = vmatpush1.msra.mxu0 0.0
    %763 = vmatprep.subr.mxu0 0.0
    %764 = vmatpush1.msra.mxu0 0.0
    %765 = vmatprep.subr.mxu0 0.0
    %766 = vmatpush1.msra.mxu0 0.0
    %767 = vmatprep.subr.mxu0 0.0
    %768 = vmatpush1.msra.mxu0 0.0
    %769 = vmatprep.subr.mxu0 0.0
    %770 = vmatpush1.msra.mxu0 0.0
    %771 = vmatprep.subr.mxu0 0.0
    %772 = vmatpush1.msra.mxu0 0.0
    %773 = vmatprep.subr.mxu0 0.0
    %774 = vmatpush1.msra.mxu0 0.0
    %775 = vmatprep.subr.mxu0 0.0
    %776 = vmatpush1.msra.mxu0 0.0
    %777 = vmatprep.subr.mxu0 0.0
    %778 = vmatpush1.msra.mxu0 0.0
    %779 = vmatprep.subr.mxu0 0.0
    %780 = vmatpush1.msra.mxu0 %v46
    %781 = vmatprep.subr.mxu0 0.0
    %782 = vmatpush2.msra.mxu0 0.0
    %783 = vmatprep.subr.mxu0 0.0
    %784 = vmatpush2.msra.mxu0 0.0
    %785 = vmatprep.subr.mxu0 0.0
    %786 = vmatpush2.msra.mxu0 0.0
    %787 = vmatprep.subr.mxu0 0.0
    %788 = vmatpush2.msra.mxu0 0.0
    %789 = vmatprep.subr.mxu0 0.0
    %790 = vmatpush2.msra.mxu0 0.0
    %791 = vmatprep.subr.mxu0 0.0
    %792 = vmatpush2.msra.mxu0 0.0
    %793 = vmatprep.subr.mxu0 0.0
    %794 = vmatpush2.msra.mxu0 0.0
    %795 = vmatprep.subr.mxu0 0.0
    %796 = vmatpush2.msra.mxu0 0.0
    %797 = vmatprep.subr.mxu0 0.0
    %798 = vmatpush2.msra.mxu0 0.0
    %799 = vmatprep.subr.mxu0 0.0
    %800 = vmatpush2.msra.mxu0 0.0
    %801 = vmatprep.subr.mxu0 0.0
    %802 = vmatpush2.msra.mxu0 0.0
    %803 = vmatprep.subr.mxu0 0.0
    %804 = vmatpush2.msra.mxu0 0.0
    %805 = vmatprep.subr.mxu0 0.0
    %806 = vmatpush2.msra.mxu0 0.0
    %807 = vmatprep.subr.mxu0 0.0
    %808 = vmatpush2.msra.mxu0 0.0
    %809 = vmatprep.subr.mxu0 0.0
    %810 = vmatpush2.msra.mxu0 0.0
    %811 = vmatprep.subr.mxu0 0.0
    %812 = vmatpush2.msra.mxu0 0.0
    %813 = vmatprep.mubr.f32.mxu0 0.0
    %814 = vmatmul.mubr.f32.gmra.mxu0 %v221
    %v815 = vpop.f32.mrf.mxu0
    %v816 = vadd.f32 %v741, %v815
    %v817 = vpop.f32.mrf.mxu0
    %818 = vmatprep.mubr.f32.mxu0 0.0
    %819 = vmatmul.mubr.f32.gmra.mxu0 %v224
    %v820 = vpop.f32.mrf.mxu0
    %v821 = vadd.f32 %v746, %v820
    %v822 = vpop.f32.mrf.mxu0
    %823 = vdwg.mxu0
    %824 = vmatprep.subr.mxu0 0.0
    %825 = vmatpush1.msra.mxu0 0.0
    %826 = vmatprep.subr.mxu0 0.0
    %827 = vmatpush1.msra.mxu0 0.0
    %828 = vmatprep.subr.mxu0 0.0
    %829 = vmatpush1.msra.mxu0 0.0
    %830 = vmatprep.subr.mxu0 0.0
    %831 = vmatpush1.msra.mxu0 0.0
    %832 = vmatprep.subr.mxu0 0.0
    %833 = vmatpush1.msra.mxu0 0.0
    %834 = vmatprep.subr.mxu0 0.0
    %835 = vmatpush1.msra.mxu0 0.0
    %836 = vmatprep.subr.mxu0 0.0
    %837 = vmatpush1.msra.mxu0 0.0
    %838 = vmatprep.subr.mxu0 0.0
    %839 = vmatpush1.msra.mxu0 0.0
    %840 = vmatprep.subr.mxu0 0.0
    %841 = vmatpush1.msra.mxu0 0.0
    %842 = vmatprep.subr.mxu0 0.0
    %843 = vmatpush1.msra.mxu0 0.0
    %844 = vmatprep.subr.mxu0 0.0
    %845 = vmatpush1.msra.mxu0 0.0
    %846 = vmatprep.subr.mxu0 0.0
    %847 = vmatpush1.msra.mxu0 0.0
    %848 = vmatprep.subr.mxu0 0.0
    %849 = vmatpush1.msra.mxu0 0.0
    %850 = vmatprep.subr.mxu0 0.0
    %851 = vmatpush1.msra.mxu0 0.0
    %852 = vmatprep.subr.mxu0 0.0
    %853 = vmatpush1.msra.mxu0 0.0
    %854 = vmatprep.subr.mxu0 0.0
    %855 = vmatpush1.msra.mxu0 %v219
    %856 = vmatprep.subr.mxu0 0.0
    %857 = vmatpush2.msra.mxu0 0.0
    %858 = vmatprep.subr.mxu0 0.0
    %859 = vmatpush2.msra.mxu0 0.0
    %860 = vmatprep.subr.mxu0 0.0
    %861 = vmatpush2.msra.mxu0 0.0
    %862 = vmatprep.subr.mxu0 0.0
    %863 = vmatpush2.msra.mxu0 0.0
    %864 = vmatprep.subr.mxu0 0.0
    %865 = vmatpush2.msra.mxu0 0.0
    %866 = vmatprep.subr.mxu0 0.0
    %867 = vmatpush2.msra.mxu0 0.0
    %868 = vmatprep.subr.mxu0 0.0
    %869 = vmatpush2.msra.mxu0 0.0
    %870 = vmatprep.subr.mxu0 0.0
    %871 = vmatpush2.msra.mxu0 0.0
    %872 = vmatprep.subr.mxu0 0.0
    %873 = vmatpush2.msra.mxu0 0.0
    %874 = vmatprep.subr.mxu0 0.0
    %875 = vmatpush2.msra.mxu0 0.0
    %876 = vmatprep.subr.mxu0 0.0
    %877 = vmatpush2.msra.mxu0 0.0
    %878 = vmatprep.subr.mxu0 0.0
    %879 = vmatpush2.msra.mxu0 0.0
    %880 = vmatprep.subr.mxu0 0.0
    %881 = vmatpush2.msra.mxu0 0.0
    %882 = vmatprep.subr.mxu0 0.0
    %883 = vmatpush2.msra.mxu0 0.0
    %884 = vmatprep.subr.mxu0 0.0
    %885 = vmatpush2.msra.mxu0 0.0
    %886 = vmatprep.subr.mxu0 0.0
    %887 = vmatpush2.msra.mxu0 0.0
    %888 = vmatprep.mubr.f32.mxu0 0.0
    %889 = vmatmul.mubr.f32.gmra.mxu0 %v396
    %v890 = vpop.f32.mrf.mxu0
    %v891 = vadd.f32 0.0, %v890
    %v892 = vpop.f32.mrf.mxu0
    %893 = vmatprep.mubr.f32.mxu0 0.0
    %894 = vmatmul.mubr.f32.gmra.mxu0 %v399
    %v895 = vpop.f32.mrf.mxu0
    %v896 = vadd.f32 0.0, %v895
    %v897 = vpop.f32.mrf.mxu0
    %898 = vdwg.mxu0
    %v899 = vadd.f32 %v816, %v891
    %v900 = vadd.f32 %v821, %v896
    %901 = vmatprep.subr.mxu0 0.0
    %902 = vmatpush1.msra.mxu0 0.0
    %903 = vmatprep.subr.mxu0 0.0
    %904 = vmatpush1.msra.mxu0 0.0
    %905 = vmatprep.subr.mxu0 0.0
    %906 = vmatpush1.msra.mxu0 0.0
    %907 = vmatprep.subr.mxu0 0.0
    %908 = vmatpush1.msra.mxu0 0.0
    %909 = vmatprep.subr.mxu0 0.0
    %910 = vmatpush1.msra.mxu0 0.0
    %911 = vmatprep.subr.mxu0 0.0
    %912 = vmatpush1.msra.mxu0 0.0
    %913 = vmatprep.subr.mxu0 0.0
    %914 = vmatpush1.msra.mxu0 0.0
    %915 = vmatprep.subr.mxu0 0.0
    %916 = vmatpush1.msra.mxu0 0.0
    %917 = vmatprep.subr.mxu0 0.0
    %918 = vmatpush1.msra.mxu0 0.0
    %919 = vmatprep.subr.mxu0 0.0
    %920 = vmatpush1.msra.mxu0 0.0
    %921 = vmatprep.subr.mxu0 0.0
    %922 = vmatpush1.msra.mxu0 0.0
    %923 = vmatprep.subr.mxu0 0.0
    %924 = vmatpush1.msra.mxu0 0.0
    %925 = vmatprep.subr.mxu0 0.0
    %926 = vmatpush1.msra.mxu0 0.0
    %927 = vmatprep.subr.mxu0 0.0
    %928 = vmatpush1.msra.mxu0 0.0
    %929 = vmatprep.subr.mxu0 0.0
    %930 = vmatpush1.msra.mxu0 0.0
    %931 = vmatprep.subr.mxu0 0.0
    %932 = vmatpush1.msra.mxu0 %v307
    %933 = vmatprep.subr.mxu0 0.0
    %934 = vmatpush2.msra.mxu0 0.0
    %935 = vmatprep.subr.mxu0 0.0
    %936 = vmatpush2.msra.mxu0 0.0
    %937 = vmatprep.subr.mxu0 0.0
    %938 = vmatpush2.msra.mxu0 0.0
    %939 = vmatprep.subr.mxu0 0.0
    %940 = vmatpush2.msra.mxu0 0.0
    %941 = vmatprep.subr.mxu0 0.0
    %942 = vmatpush2.msra.mxu0 0.0
    %943 = vmatprep.subr.mxu0 0.0
    %944 = vmatpush2.msra.mxu0 0.0
    %945 = vmatprep.subr.mxu0 0.0
    %946 = vmatpush2.msra.mxu0 0.0
    %947 = vmatprep.subr.mxu0 0.0
    %948 = vmatpush2.msra.mxu0 0.0
    %949 = vmatprep.subr.mxu0 0.0
    %950 = vmatpush2.msra.mxu0 0.0
    %951 = vmatprep.subr.mxu0 0.0
    %952 = vmatpush2.msra.mxu0 0.0
    %953 = vmatprep.subr.mxu0 0.0
    %954 = vmatpush2.msra.mxu0 0.0
    %955 = vmatprep.subr.mxu0 0.0
    %956 = vmatpush2.msra.mxu0 0.0
    %957 = vmatprep.subr.mxu0 0.0
    %958 = vmatpush2.msra.mxu0 0.0
    %959 = vmatprep.subr.mxu0 0.0
    %960 = vmatpush2.msra.mxu0 0.0
    %961 = vmatprep.subr.mxu0 0.0
    %962 = vmatpush2.msra.mxu0 0.0
    %963 = vmatprep.subr.mxu0 0.0
    %964 = vmatpush2.msra.mxu0 0.0
    %965 = vmatprep.mubr.f32.mxu0 0.0
    %966 = vmatmul.mubr.f32.gmra.mxu0 %v483
    %v967 = vpop.f32.mrf.mxu0
    %v968 = vadd.f32 0.0, %v967
    %v969 = vpop.f32.mrf.mxu0
    %970 = vmatprep.mubr.f32.mxu0 0.0
    %971 = vmatmul.mubr.f32.gmra.mxu0 %v486
    %v972 = vpop.f32.mrf.mxu0
    %v973 = vadd.f32 0.0, %v972
    %v974 = vpop.f32.mrf.mxu0
    %975 = vdwg.mxu0
    %v976 = vadd.f32 %v899, %v968
    %v977 = vadd.f32 %v900, %v973
    %978 = vmatprep.subr.mxu0 0.0
    %979 = vmatpush1.msra.mxu0 0.0
    %980 = vmatprep.subr.mxu0 0.0
    %981 = vmatpush1.msra.mxu0 0.0
    %982 = vmatprep.subr.mxu0 0.0
    %983 = vmatpush1.msra.mxu0 0.0
    %984 = vmatprep.subr.mxu0 0.0
    %985 = vmatpush1.msra.mxu0 0.0
    %986 = vmatprep.subr.mxu0 0.0
    %987 = vmatpush1.msra.mxu0 0.0
    %988 = vmatprep.subr.mxu0 0.0
    %989 = vmatpush1.msra.mxu0 0.0
    %990 = vmatprep.subr.mxu0 0.0
    %991 = vmatpush1.msra.mxu0 0.0
    %992 = vmatprep.subr.mxu0 0.0
    %993 = vmatpush1.msra.mxu0 0.0
    %994 = vmatprep.subr.mxu0 0.0
    %995 = vmatpush1.msra.mxu0 0.0
    %996 = vmatprep.subr.mxu0 0.0
    %997 = vmatpush1.msra.mxu0 0.0
    %998 = vmatprep.subr.mxu0 0.0
    %999 = vmatpush1.msra.mxu0 0.0
    %1000 = vmatprep.subr.mxu0 0.0
    %1001 = vmatpush1.msra.mxu0 0.0
    %1002 = vmatprep.subr.mxu0 0.0
    %1003 = vmatpush1.msra.mxu0 0.0
    %1004 = vmatprep.subr.mxu0 0.0
    %1005 = vmatpush1.msra.mxu0 0.0
    %1006 = vmatprep.subr.mxu0 0.0
    %1007 = vmatpush1.msra.mxu0 0.0
    %1008 = vmatprep.subr.mxu0 0.0
    %1009 = vmatpush1.msra.mxu0 %v394
    %1010 = vmatprep.subr.mxu0 0.0
    %1011 = vmatpush2.msra.mxu0 0.0
    %1012 = vmatprep.subr.mxu0 0.0
    %1013 = vmatpush2.msra.mxu0 0.0
    %1014 = vmatprep.subr.mxu0 0.0
    %1015 = vmatpush2.msra.mxu0 0.0
    %1016 = vmatprep.subr.mxu0 0.0
    %1017 = vmatpush2.msra.mxu0 0.0
    %1018 = vmatprep.subr.mxu0 0.0
    %1019 = vmatpush2.msra.mxu0 0.0
    %1020 = vmatprep.subr.mxu0 0.0
    %1021 = vmatpush2.msra.mxu0 0.0
    %1022 = vmatprep.subr.mxu0 0.0
    %1023 = vmatpush2.msra.mxu0 0.0
    %1024 = vmatprep.subr.mxu0 0.0
    %1025 = vmatpush2.msra.mxu0 0.0
    %1026 = vmatprep.subr.mxu0 0.0
    %1027 = vmatpush2.msra.mxu0 0.0
    %1028 = vmatprep.subr.mxu0 0.0
    %1029 = vmatpush2.msra.mxu0 0.0
    %1030 = vmatprep.subr.mxu0 0.0
    %1031 = vmatpush2.msra.mxu0 0.0
    %1032 = vmatprep.subr.mxu0 0.0
    %1033 = vmatpush2.msra.mxu0 0.0
    %1034 = vmatprep.subr.mxu0 0.0
    %1035 = vmatpush2.msra.mxu0 0.0
    %1036 = vmatprep.subr.mxu0 0.0
    %1037 = vmatpush2.msra.mxu0 0.0
    %1038 = vmatprep.subr.mxu0 0.0
    %1039 = vmatpush2.msra.mxu0 0.0
    %1040 = vmatprep.subr.mxu0 0.0
    %1041 = vmatpush2.msra.mxu0 0.0
    %1042 = vmatprep.mubr.f32.mxu0 0.0
    %1043 = vmatmul.mubr.f32.gmra.mxu0 %v570
    %v1044 = vpop.f32.mrf.mxu0
    %v1045 = vadd.f32 0.0, %v1044
    %v1046 = vpop.f32.mrf.mxu0
    %1047 = vmatprep.mubr.f32.mxu0 0.0
    %1048 = vmatmul.mubr.f32.gmra.mxu0 %v573
    %v1049 = vpop.f32.mrf.mxu0
    %v1050 = vadd.f32 0.0, %v1049
    %v1051 = vpop.f32.mrf.mxu0
    %1052 = vdwg.mxu0
    %v1053 = vadd.f32 %v976, %v1045
    %v1054 = vadd.f32 %v977, %v1050
    %v1055 = vld [vmem:[%s303 + $0x1] sm:$0xff]
    %v1056 = vld [vmem:[%s303 + $0x9] sm:$0xff]
    %v1058 = vsel %vm52, %v1055, 0
    %v1061 = vsel %vm52, %v1056, 0
    %1063 = vmatprep.subr.mxu0 0.0
    %1064 = vmatpush1.msra.mxu0 0.0
    %1065 = vmatprep.subr.mxu0 0.0
    %1066 = vmatpush1.msra.mxu0 0.0
    %1067 = vmatprep.subr.mxu0 0.0
    %1068 = vmatpush1.msra.mxu0 0.0
    %1069 = vmatprep.subr.mxu0 0.0
    %1070 = vmatpush1.msra.mxu0 0.0
    %1071 = vmatprep.subr.mxu0 0.0
    %1072 = vmatpush1.msra.mxu0 0.0
    %1073 = vmatprep.subr.mxu0 0.0
    %1074 = vmatpush1.msra.mxu0 0.0
    %1075 = vmatprep.subr.mxu0 0.0
    %1076 = vmatpush1.msra.mxu0 0.0
    %1077 = vmatprep.subr.mxu0 0.0
    %1078 = vmatpush1.msra.mxu0 0.0
    %1079 = vmatprep.subr.mxu0 0.0
    %1080 = vmatpush1.msra.mxu0 0.0
    %1081 = vmatprep.subr.mxu0 0.0
    %1082 = vmatpush1.msra.mxu0 0.0
    %1083 = vmatprep.subr.mxu0 0.0
    %1084 = vmatpush1.msra.mxu0 0.0
    %1085 = vmatprep.subr.mxu0 0.0
    %1086 = vmatpush1.msra.mxu0 0.0
    %1087 = vmatprep.subr.mxu0 0.0
    %1088 = vmatpush1.msra.mxu0 0.0
    %1089 = vmatprep.subr.mxu0 0.0
    %1090 = vmatpush1.msra.mxu0 0.0
    %1091 = vmatprep.subr.mxu0 0.0
    %1092 = vmatpush1.msra.mxu0 0.0
    %1093 = vmatprep.subr.mxu0 0.0
    %1094 = vmatpush1.msra.mxu0 %v481
    %1095 = vmatprep.subr.mxu0 0.0
    %1096 = vmatpush2.msra.mxu0 0.0
    %1097 = vmatprep.subr.mxu0 0.0
    %1098 = vmatpush2.msra.mxu0 0.0
    %1099 = vmatprep.subr.mxu0 0.0
    %1100 = vmatpush2.msra.mxu0 0.0
    %1101 = vmatprep.subr.mxu0 0.0
    %1102 = vmatpush2.msra.mxu0 0.0
    %1103 = vmatprep.subr.mxu0 0.0
    %1104 = vmatpush2.msra.mxu0 0.0
    %1105 = vmatprep.subr.mxu0 0.0
    %1106 = vmatpush2.msra.mxu0 0.0
    %1107 = vmatprep.subr.mxu0 0.0
    %1108 = vmatpush2.msra.mxu0 0.0
    %1109 = vmatprep.subr.mxu0 0.0
    %1110 = vmatpush2.msra.mxu0 0.0
    %1111 = vmatprep.subr.mxu0 0.0
    %1112 = vmatpush2.msra.mxu0 0.0
    %1113 = vmatprep.subr.mxu0 0.0
    %1114 = vmatpush2.msra.mxu0 0.0
    %1115 = vmatprep.subr.mxu0 0.0
    %1116 = vmatpush2.msra.mxu0 0.0
    %1117 = vmatprep.subr.mxu0 0.0
    %1118 = vmatpush2.msra.mxu0 0.0
    %1119 = vmatprep.subr.mxu0 0.0
    %1120 = vmatpush2.msra.mxu0 0.0
    %1121 = vmatprep.subr.mxu0 0.0
    %1122 = vmatpush2.msra.mxu0 0.0
    %1123 = vmatprep.subr.mxu0 0.0
    %1124 = vmatpush2.msra.mxu0 0.0
    %1125 = vmatprep.subr.mxu0 0.0
    %1126 = vmatpush2.msra.mxu0 0.0
    %1127 = vmatprep.mubr.f32.mxu0 0.0
    %1128 = vmatmul.mubr.f32.gmra.mxu0 %v1058
    %v1129 = vpop.f32.mrf.mxu0
    %v1130 = vadd.f32 0.0, %v1129
    %v1131 = vpop.f32.mrf.mxu0
    %1132 = vmatprep.mubr.f32.mxu0 0.0
    %1133 = vmatmul.mubr.f32.gmra.mxu0 %v1061
    %v1134 = vpop.f32.mrf.mxu0
    %v1135 = vadd.f32 0.0, %v1134
    %v1136 = vpop.f32.mrf.mxu0
    %1137 = vdwg.mxu0
    %v1138 = vadd.f32 %v1053, %v1130
    %v1139 = vadd.f32 %v1054, %v1135
    %v1140 = vld [vmem:[%s0 + $0x2] sm:$0xff]
    %v1141 = vld [vmem:[%s0 + $0xa] sm:$0xff]
    %v1143 = vsel %vm52, %v1140, 0
    %v1146 = vsel %vm52, %v1141, 0
    %1148 = vmatprep.subr.mxu0 0.0
    %1149 = vmatpush1.msra.mxu0 0.0
    %1150 = vmatprep.subr.mxu0 0.0
    %1151 = vmatpush1.msra.mxu0 0.0
    %1152 = vmatprep.subr.mxu0 0.0
    %1153 = vmatpush1.msra.mxu0 0.0
    %1154 = vmatprep.subr.mxu0 0.0
    %1155 = vmatpush1.msra.mxu0 0.0
    %1156 = vmatprep.subr.mxu0 0.0
    %1157 = vmatpush1.msra.mxu0 0.0
    %1158 = vmatprep.subr.mxu0 0.0
    %1159 = vmatpush1.msra.mxu0 0.0
    %1160 = vmatprep.subr.mxu0 0.0
    %1161 = vmatpush1.msra.mxu0 0.0
    %1162 = vmatprep.subr.mxu0 0.0
    %1163 = vmatpush1.msra.mxu0 0.0
    %1164 = vmatprep.subr.mxu0 0.0
    %1165 = vmatpush1.msra.mxu0 0.0
    %1166 = vmatprep.subr.mxu0 0.0
    %1167 = vmatpush1.msra.mxu0 0.0
    %1168 = vmatprep.subr.mxu0 0.0
    %1169 = vmatpush1.msra.mxu0 0.0
    %1170 = vmatprep.subr.mxu0 0.0
    %1171 = vmatpush1.msra.mxu0 0.0
    %1172 = vmatprep.subr.mxu0 0.0
    %1173 = vmatpush1.msra.mxu0 0.0
    %1174 = vmatprep.subr.mxu0 0.0
    %1175 = vmatpush1.msra.mxu0 0.0
    %1176 = vmatprep.subr.mxu0 0.0
    %1177 = vmatpush1.msra.mxu0 0.0
    %1178 = vmatprep.subr.mxu0 0.0
    %1179 = vmatpush1.msra.mxu0 %v568
    %1180 = vmatprep.subr.mxu0 0.0
    %1181 = vmatpush2.msra.mxu0 0.0
    %1182 = vmatprep.subr.mxu0 0.0
    %1183 = vmatpush2.msra.mxu0 0.0
    %1184 = vmatprep.subr.mxu0 0.0
    %1185 = vmatpush2.msra.mxu0 0.0
    %1186 = vmatprep.subr.mxu0 0.0
    %1187 = vmatpush2.msra.mxu0 0.0
    %1188 = vmatprep.subr.mxu0 0.0
    %1189 = vmatpush2.msra.mxu0 0.0
    %1190 = vmatprep.subr.mxu0 0.0
    %1191 = vmatpush2.msra.mxu0 0.0
    %1192 = vmatprep.subr.mxu0 0.0
    %1193 = vmatpush2.msra.mxu0 0.0
    %1194 = vmatprep.subr.mxu0 0.0
    %1195 = vmatpush2.msra.mxu0 0.0
    %1196 = vmatprep.subr.mxu0 0.0
    %1197 = vmatpush2.msra.mxu0 0.0
    %1198 = vmatprep.subr.mxu0 0.0
    %1199 = vmatpush2.msra.mxu0 0.0
    %1200 = vmatprep.subr.mxu0 0.0
    %1201 = vmatpush2.msra.mxu0 0.0
    %1202 = vmatprep.subr.mxu0 0.0
    %1203 = vmatpush2.msra.mxu0 0.0
    %1204 = vmatprep.subr.mxu0 0.0
    %1205 = vmatpush2.msra.mxu0 0.0
    %1206 = vmatprep.subr.mxu0 0.0
    %1207 = vmatpush2.msra.mxu0 0.0
    %1208 = vmatprep.subr.mxu0 0.0
    %1209 = vmatpush2.msra.mxu0 0.0
    %1210 = vmatprep.subr.mxu0 0.0
    %1211 = vmatpush2.msra.mxu0 0.0
    %1212 = vmatprep.mubr.f32.mxu0 0.0
    %1213 = vmatmul.mubr.f32.gmra.mxu0 %v1143
    %v1214 = vpop.f32.mrf.mxu0
    %v1215 = vadd.f32 0.0, %v1214
    %v1216 = vpop.f32.mrf.mxu0
    %1217 = vmatprep.mubr.f32.mxu0 0.0
    %1218 = vmatmul.mubr.f32.gmra.mxu0 %v1146
    %v1219 = vpop.f32.mrf.mxu0
    %v1220 = vadd.f32 0.0, %v1219
    %v1221 = vpop.f32.mrf.mxu0
    %1222 = vdwg.mxu0
    %v1223 = vadd.f32 %v1138, %v1215
    %v1224 = vadd.f32 %v1139, %v1220
    %v1225 = vsel %vm30, %v1223, 0.0
    %v1226 = vsel %vm30, %v1224, 0.0
    %v1227 = vadd.f32 %v1225, %v1226
    %v1228 = vrot.slane %v1227, 4
    %v1229 = vadd.f32 %v1227, %v1228
    %v1230 = vrot.slane %v1229, 2
    %v1231 = vadd.f32 %v1229, %v1230
    %v1232 = vrot.slane %v1231, 1
    %v1233 = vadd.f32 %v1231, %v1232
    %v1234 = vadd.f32 %v661, %v1233
    %v1235 = vmul.f32 %v1223, %v1223
    %v1236 = vmul.f32 %v1224, %v1224
    %v1237 = vsel %vm30, %v1235, 0.0
    %v1238 = vsel %vm30, %v1236, 0.0
    %v1239 = vadd.f32 %v1237, %v1238
    %v1240 = vrot.slane %v1239, 4
    %v1241 = vadd.f32 %v1239, %v1240
    %v1242 = vrot.slane %v1241, 2
    %v1243 = vadd.f32 %v1241, %v1242
    %v1244 = vrot.slane %v1243, 1
    %v1245 = vadd.f32 %v1243, %v1244
    %v1246 = vadd.f32 %v673, %v1245
    %s1247 = scalar_lea.vmem %s0, 96
    %v1248 = vld [vmem:[%s1247] sm:$0xff]
    %v1249 = vld [vmem:[%s1247 + $0x8] sm:$0xff]
    %s1250 = scalar_lea.vmem %s0, 120
    %v1251 = vld [vmem:[%s1250] sm:$0xff]
    %v1252 = vld [vmem:[%s1250 + $0x8] sm:$0xff]
    %v1254 = vsel %vm52, %v1251, 0
    %v1257 = vsel %vm52, %v1252, 0
    %1259 = vmatprep.subr.mxu0 0.0
    %1260 = vmatpush1.msra.mxu0 0.0
    %1261 = vmatprep.subr.mxu0 0.0
    %1262 = vmatpush1.msra.mxu0 0.0
    %1263 = vmatprep.subr.mxu0 0.0
    %1264 = vmatpush1.msra.mxu0 0.0
    %1265 = vmatprep.subr.mxu0 0.0
    %1266 = vmatpush1.msra.mxu0 0.0
    %1267 = vmatprep.subr.mxu0 0.0
    %1268 = vmatpush1.msra.mxu0 0.0
    %1269 = vmatprep.subr.mxu0 0.0
    %1270 = vmatpush1.msra.mxu0 0.0
    %1271 = vmatprep.subr.mxu0 0.0
    %1272 = vmatpush1.msra.mxu0 0.0
    %1273 = vmatprep.subr.mxu0 0.0
    %1274 = vmatpush1.msra.mxu0 0.0
    %1275 = vmatprep.subr.mxu0 0.0
    %1276 = vmatpush1.msra.mxu0 0.0
    %1277 = vmatprep.subr.mxu0 0.0
    %1278 = vmatpush1.msra.mxu0 0.0
    %1279 = vmatprep.subr.mxu0 0.0
    %1280 = vmatpush1.msra.mxu0 0.0
    %1281 = vmatprep.subr.mxu0 0.0
    %1282 = vmatpush1.msra.mxu0 0.0
    %1283 = vmatprep.subr.mxu0 0.0
    %1284 = vmatpush1.msra.mxu0 0.0
    %1285 = vmatprep.subr.mxu0 0.0
    %1286 = vmatpush1.msra.mxu0 0.0
    %1287 = vmatprep.subr.mxu0 0.0
    %1288 = vmatpush1.msra.mxu0 0.0
    %1289 = vmatprep.subr.mxu0 0.0
    %1290 = vmatpush1.msra.mxu0 %v51
    %1291 = vmatprep.subr.mxu0 0.0
    %1292 = vmatpush2.msra.mxu0 0.0
    %1293 = vmatprep.subr.mxu0 0.0
    %1294 = vmatpush2.msra.mxu0 0.0
    %1295 = vmatprep.subr.mxu0 0.0
    %1296 = vmatpush2.msra.mxu0 0.0
    %1297 = vmatprep.subr.mxu0 0.0
    %1298 = vmatpush2.msra.mxu0 0.0
    %1299 = vmatprep.subr.mxu0 0.0
    %1300 = vmatpush2.msra.mxu0 0.0
    %1301 = vmatprep.subr.mxu0 0.0
    %1302 = vmatpush2.msra.mxu0 0.0
    %1303 = vmatprep.subr.mxu0 0.0
    %1304 = vmatpush2.msra.mxu0 0.0
    %1305 = vmatprep.subr.mxu0 0.0
    %1306 = vmatpush2.msra.mxu0 0.0
    %1307 = vmatprep.subr.mxu0 0.0
    %1308 = vmatpush2.msra.mxu0 0.0
    %1309 = vmatprep.subr.mxu0 0.0
    %1310 = vmatpush2.msra.mxu0 0.0
    %1311 = vmatprep.subr.mxu0 0.0
    %1312 = vmatpush2.msra.mxu0 0.0
    %1313 = vmatprep.subr.mxu0 0.0
    %1314 = vmatpush2.msra.mxu0 0.0
    %1315 = vmatprep.subr.mxu0 0.0
    %1316 = vmatpush2.msra.mxu0 0.0
    %1317 = vmatprep.subr.mxu0 0.0
    %1318 = vmatpush2.msra.mxu0 0.0
    %1319 = vmatprep.subr.mxu0 0.0
    %1320 = vmatpush2.msra.mxu0 0.0
    %1321 = vmatprep.subr.mxu0 0.0
    %1322 = vmatpush2.msra.mxu0 0.0
    %1323 = vmatprep.mubr.f32.mxu0 0.0
    %1324 = vmatmul.mubr.f32.gmra.mxu0 %v1254
    %v1325 = vpop.f32.mrf.mxu0
    %v1326 = vadd.f32 0.0, %v1325
    %v1327 = vpop.f32.mrf.mxu0
    %1328 = vmatprep.mubr.f32.mxu0 0.0
    %1329 = vmatmul.mubr.f32.gmra.mxu0 %v1257
    %v1330 = vpop.f32.mrf.mxu0
    %v1331 = vadd.f32 0.0, %v1330
    %v1332 = vpop.f32.mrf.mxu0
    %1333 = vdwg.mxu0
    %v1335 = vsel %vm52, %v1248, 0
    %v1338 = vsel %vm52, %v1249, 0
    %1340 = vmatprep.subr.mxu0 0.0
    %1341 = vmatpush1.msra.mxu0 0.0
    %1342 = vmatprep.subr.mxu0 0.0
    %1343 = vmatpush1.msra.mxu0 0.0
    %1344 = vmatprep.subr.mxu0 0.0
    %1345 = vmatpush1.msra.mxu0 0.0
    %1346 = vmatprep.subr.mxu0 0.0
    %1347 = vmatpush1.msra.mxu0 0.0
    %1348 = vmatprep.subr.mxu0 0.0
    %1349 = vmatpush1.msra.mxu0 0.0
    %1350 = vmatprep.subr.mxu0 0.0
    %1351 = vmatpush1.msra.mxu0 0.0
    %1352 = vmatprep.subr.mxu0 0.0
    %1353 = vmatpush1.msra.mxu0 0.0
    %1354 = vmatprep.subr.mxu0 0.0
    %1355 = vmatpush1.msra.mxu0 0.0
    %1356 = vmatprep.subr.mxu0 0.0
    %1357 = vmatpush1.msra.mxu0 0.0
    %1358 = vmatprep.subr.mxu0 0.0
    %1359 = vmatpush1.msra.mxu0 0.0
    %1360 = vmatprep.subr.mxu0 0.0
    %1361 = vmatpush1.msra.mxu0 0.0
    %1362 = vmatprep.subr.mxu0 0.0
    %1363 = vmatpush1.msra.mxu0 0.0
    %1364 = vmatprep.subr.mxu0 0.0
    %1365 = vmatpush1.msra.mxu0 0.0
    %1366 = vmatprep.subr.mxu0 0.0
    %1367 = vmatpush1.msra.mxu0 0.0
    %1368 = vmatprep.subr.mxu0 0.0
    %1369 = vmatpush1.msra.mxu0 0.0
    %1370 = vmatprep.subr.mxu0 0.0
    %1371 = vmatpush1.msra.mxu0 %v46
    %1372 = vmatprep.subr.mxu0 0.0
    %1373 = vmatpush2.msra.mxu0 0.0
    %1374 = vmatprep.subr.mxu0 0.0
    %1375 = vmatpush2.msra.mxu0 0.0
    %1376 = vmatprep.subr.mxu0 0.0
    %1377 = vmatpush2.msra.mxu0 0.0
    %1378 = vmatprep.subr.mxu0 0.0
    %1379 = vmatpush2.msra.mxu0 0.0
    %1380 = vmatprep.subr.mxu0 0.0
    %1381 = vmatpush2.msra.mxu0 0.0
    %1382 = vmatprep.subr.mxu0 0.0
    %1383 = vmatpush2.msra.mxu0 0.0
    %1384 = vmatprep.subr.mxu0 0.0
    %1385 = vmatpush2.msra.mxu0 0.0
    %1386 = vmatprep.subr.mxu0 0.0
    %1387 = vmatpush2.msra.mxu0 0.0
    %1388 = vmatprep.subr.mxu0 0.0
    %1389 = vmatpush2.msra.mxu0 0.0
    %1390 = vmatprep.subr.mxu0 0.0
    %1391 = vmatpush2.msra.mxu0 0.0
    %1392 = vmatprep.subr.mxu0 0.0
    %1393 = vmatpush2.msra.mxu0 0.0
    %1394 = vmatprep.subr.mxu0 0.0
    %1395 = vmatpush2.msra.mxu0 0.0
    %1396 = vmatprep.subr.mxu0 0.0
    %1397 = vmatpush2.msra.mxu0 0.0
    %1398 = vmatprep.subr.mxu0 0.0
    %1399 = vmatpush2.msra.mxu0 0.0
    %1400 = vmatprep.subr.mxu0 0.0
    %1401 = vmatpush2.msra.mxu0 0.0
    %1402 = vmatprep.subr.mxu0 0.0
    %1403 = vmatpush2.msra.mxu0 0.0
    %1404 = vmatprep.mubr.f32.mxu0 0.0
    %1405 = vmatmul.mubr.f32.gmra.mxu0 %v1335
    %v1406 = vpop.f32.mrf.mxu0
    %v1407 = vadd.f32 %v1326, %v1406
    %v1408 = vpop.f32.mrf.mxu0
    %1409 = vmatprep.mubr.f32.mxu0 0.0
    %1410 = vmatmul.mubr.f32.gmra.mxu0 %v1338
    %v1411 = vpop.f32.mrf.mxu0
    %v1412 = vadd.f32 %v1331, %v1411
    %v1413 = vpop.f32.mrf.mxu0
    %1414 = vdwg.mxu0
    %s1415 = scalar_lea.vmem %s0, 144
    %v1416 = vld [vmem:[%s1415] sm:$0xff]
    %v1417 = vld [vmem:[%s1415 + $0x8] sm:$0xff]
    %v1419 = vsel %vm52, %v1416, 0
    %v1422 = vsel %vm52, %v1417, 0
    %1424 = vmatprep.subr.mxu0 0.0
    %1425 = vmatpush1.msra.mxu0 0.0
    %1426 = vmatprep.subr.mxu0 0.0
    %1427 = vmatpush1.msra.mxu0 0.0
    %1428 = vmatprep.subr.mxu0 0.0
    %1429 = vmatpush1.msra.mxu0 0.0
    %1430 = vmatprep.subr.mxu0 0.0
    %1431 = vmatpush1.msra.mxu0 0.0
    %1432 = vmatprep.subr.mxu0 0.0
    %1433 = vmatpush1.msra.mxu0 0.0
    %1434 = vmatprep.subr.mxu0 0.0
    %1435 = vmatpush1.msra.mxu0 0.0
    %1436 = vmatprep.subr.mxu0 0.0
    %1437 = vmatpush1.msra.mxu0 0.0
    %1438 = vmatprep.subr.mxu0 0.0
    %1439 = vmatpush1.msra.mxu0 0.0
    %1440 = vmatprep.subr.mxu0 0.0
    %1441 = vmatpush1.msra.mxu0 0.0
    %1442 = vmatprep.subr.mxu0 0.0
    %1443 = vmatpush1.msra.mxu0 0.0
    %1444 = vmatprep.subr.mxu0 0.0
    %1445 = vmatpush1.msra.mxu0 0.0
    %1446 = vmatprep.subr.mxu0 0.0
    %1447 = vmatpush1.msra.mxu0 0.0
    %1448 = vmatprep.subr.mxu0 0.0
    %1449 = vmatpush1.msra.mxu0 0.0
    %1450 = vmatprep.subr.mxu0 0.0
    %1451 = vmatpush1.msra.mxu0 0.0
    %1452 = vmatprep.subr.mxu0 0.0
    %1453 = vmatpush1.msra.mxu0 0.0
    %1454 = vmatprep.subr.mxu0 0.0
    %1455 = vmatpush1.msra.mxu0 %v219
    %1456 = vmatprep.subr.mxu0 0.0
    %1457 = vmatpush2.msra.mxu0 0.0
    %1458 = vmatprep.subr.mxu0 0.0
    %1459 = vmatpush2.msra.mxu0 0.0
    %1460 = vmatprep.subr.mxu0 0.0
    %1461 = vmatpush2.msra.mxu0 0.0
    %1462 = vmatprep.subr.mxu0 0.0
    %1463 = vmatpush2.msra.mxu0 0.0
    %1464 = vmatprep.subr.mxu0 0.0
    %1465 = vmatpush2.msra.mxu0 0.0
    %1466 = vmatprep.subr.mxu0 0.0
    %1467 = vmatpush2.msra.mxu0 0.0
    %1468 = vmatprep.subr.mxu0 0.0
    %1469 = vmatpush2.msra.mxu0 0.0
    %1470 = vmatprep.subr.mxu0 0.0
    %1471 = vmatpush2.msra.mxu0 0.0
    %1472 = vmatprep.subr.mxu0 0.0
    %1473 = vmatpush2.msra.mxu0 0.0
    %1474 = vmatprep.subr.mxu0 0.0
    %1475 = vmatpush2.msra.mxu0 0.0
    %1476 = vmatprep.subr.mxu0 0.0
    %1477 = vmatpush2.msra.mxu0 0.0
    %1478 = vmatprep.subr.mxu0 0.0
    %1479 = vmatpush2.msra.mxu0 0.0
    %1480 = vmatprep.subr.mxu0 0.0
    %1481 = vmatpush2.msra.mxu0 0.0
    %1482 = vmatprep.subr.mxu0 0.0
    %1483 = vmatpush2.msra.mxu0 0.0
    %1484 = vmatprep.subr.mxu0 0.0
    %1485 = vmatpush2.msra.mxu0 0.0
    %1486 = vmatprep.subr.mxu0 0.0
    %1487 = vmatpush2.msra.mxu0 0.0
    %1488 = vmatprep.mubr.f32.mxu0 0.0
    %1489 = vmatmul.mubr.f32.gmra.mxu0 %v1419
    %v1490 = vpop.f32.mrf.mxu0
    %v1491 = vadd.f32 0.0, %v1490
    %v1492 = vpop.f32.mrf.mxu0
    %1493 = vmatprep.mubr.f32.mxu0 0.0
    %1494 = vmatmul.mubr.f32.gmra.mxu0 %v1422
    %v1495 = vpop.f32.mrf.mxu0
    %v1496 = vadd.f32 0.0, %v1495
    %v1497 = vpop.f32.mrf.mxu0
    %1498 = vdwg.mxu0
    %v1499 = vadd.f32 %v1407, %v1491
    %v1500 = vadd.f32 %v1412, %v1496
    %s1501 = scalar_lea.vmem %s0, 168
    %v1502 = vld [vmem:[%s1501] sm:$0xff]
    %v1503 = vld [vmem:[%s1501 + $0x8] sm:$0xff]
    %v1505 = vsel %vm52, %v1502, 0
    %v1508 = vsel %vm52, %v1503, 0
    %1510 = vmatprep.subr.mxu0 0.0
    %1511 = vmatpush1.msra.mxu0 0.0
    %1512 = vmatprep.subr.mxu0 0.0
    %1513 = vmatpush1.msra.mxu0 0.0
    %1514 = vmatprep.subr.mxu0 0.0
    %1515 = vmatpush1.msra.mxu0 0.0
    %1516 = vmatprep.subr.mxu0 0.0
    %1517 = vmatpush1.msra.mxu0 0.0
    %1518 = vmatprep.subr.mxu0 0.0
    %1519 = vmatpush1.msra.mxu0 0.0
    %1520 = vmatprep.subr.mxu0 0.0
    %1521 = vmatpush1.msra.mxu0 0.0
    %1522 = vmatprep.subr.mxu0 0.0
    %1523 = vmatpush1.msra.mxu0 0.0
    %1524 = vmatprep.subr.mxu0 0.0
    %1525 = vmatpush1.msra.mxu0 0.0
    %1526 = vmatprep.subr.mxu0 0.0
    %1527 = vmatpush1.msra.mxu0 0.0
    %1528 = vmatprep.subr.mxu0 0.0
    %1529 = vmatpush1.msra.mxu0 0.0
    %1530 = vmatprep.subr.mxu0 0.0
    %1531 = vmatpush1.msra.mxu0 0.0
    %1532 = vmatprep.subr.mxu0 0.0
    %1533 = vmatpush1.msra.mxu0 0.0
    %1534 = vmatprep.subr.mxu0 0.0
    %1535 = vmatpush1.msra.mxu0 0.0
    %1536 = vmatprep.subr.mxu0 0.0
    %1537 = vmatpush1.msra.mxu0 0.0
    %1538 = vmatprep.subr.mxu0 0.0
    %1539 = vmatpush1.msra.mxu0 0.0
    %1540 = vmatprep.subr.mxu0 0.0
    %1541 = vmatpush1.msra.mxu0 %v307
    %1542 = vmatprep.subr.mxu0 0.0
    %1543 = vmatpush2.msra.mxu0 0.0
    %1544 = vmatprep.subr.mxu0 0.0
    %1545 = vmatpush2.msra.mxu0 0.0
    %1546 = vmatprep.subr.mxu0 0.0
    %1547 = vmatpush2.msra.mxu0 0.0
    %1548 = vmatprep.subr.mxu0 0.0
    %1549 = vmatpush2.msra.mxu0 0.0
    %1550 = vmatprep.subr.mxu0 0.0
    %1551 = vmatpush2.msra.mxu0 0.0
    %1552 = vmatprep.subr.mxu0 0.0
    %1553 = vmatpush2.msra.mxu0 0.0
    %1554 = vmatprep.subr.mxu0 0.0
    %1555 = vmatpush2.msra.mxu0 0.0
    %1556 = vmatprep.subr.mxu0 0.0
    %1557 = vmatpush2.msra.mxu0 0.0
    %1558 = vmatprep.subr.mxu0 0.0
    %1559 = vmatpush2.msra.mxu0 0.0
    %1560 = vmatprep.subr.mxu0 0.0
    %1561 = vmatpush2.msra.mxu0 0.0
    %1562 = vmatprep.subr.mxu0 0.0
    %1563 = vmatpush2.msra.mxu0 0.0
    %1564 = vmatprep.subr.mxu0 0.0
    %1565 = vmatpush2.msra.mxu0 0.0
    %1566 = vmatprep.subr.mxu0 0.0
    %1567 = vmatpush2.msra.mxu0 0.0
    %1568 = vmatprep.subr.mxu0 0.0
    %1569 = vmatpush2.msra.mxu0 0.0
    %1570 = vmatprep.subr.mxu0 0.0
    %1571 = vmatpush2.msra.mxu0 0.0
    %1572 = vmatprep.subr.mxu0 0.0
    %1573 = vmatpush2.msra.mxu0 0.0
    %1574 = vmatprep.mubr.f32.mxu0 0.0
    %1575 = vmatmul.mubr.f32.gmra.mxu0 %v1505
    %v1576 = vpop.f32.mrf.mxu0
    %v1577 = vadd.f32 0.0, %v1576
    %v1578 = vpop.f32.mrf.mxu0
    %1579 = vmatprep.mubr.f32.mxu0 0.0
    %1580 = vmatmul.mubr.f32.gmra.mxu0 %v1508
    %v1581 = vpop.f32.mrf.mxu0
    %v1582 = vadd.f32 0.0, %v1581
    %v1583 = vpop.f32.mrf.mxu0
    %1584 = vdwg.mxu0
    %v1585 = vadd.f32 %v1499, %v1577
    %v1586 = vadd.f32 %v1500, %v1582
    %v1587 = vld [vmem:[%s1247 + $0x1] sm:$0xff]
    %v1588 = vld [vmem:[%s1247 + $0x9] sm:$0xff]
    %v1590 = vsel %vm52, %v1587, 0
    %v1593 = vsel %vm52, %v1588, 0
    %1595 = vmatprep.subr.mxu0 0.0
    %1596 = vmatpush1.msra.mxu0 0.0
    %1597 = vmatprep.subr.mxu0 0.0
    %1598 = vmatpush1.msra.mxu0 0.0
    %1599 = vmatprep.subr.mxu0 0.0
    %1600 = vmatpush1.msra.mxu0 0.0
    %1601 = vmatprep.subr.mxu0 0.0
    %1602 = vmatpush1.msra.mxu0 0.0
    %1603 = vmatprep.subr.mxu0 0.0
    %1604 = vmatpush1.msra.mxu0 0.0
    %1605 = vmatprep.subr.mxu0 0.0
    %1606 = vmatpush1.msra.mxu0 0.0
    %1607 = vmatprep.subr.mxu0 0.0
    %1608 = vmatpush1.msra.mxu0 0.0
    %1609 = vmatprep.subr.mxu0 0.0
    %1610 = vmatpush1.msra.mxu0 0.0
    %1611 = vmatprep.subr.mxu0 0.0
    %1612 = vmatpush1.msra.mxu0 0.0
    %1613 = vmatprep.subr.mxu0 0.0
    %1614 = vmatpush1.msra.mxu0 0.0
    %1615 = vmatprep.subr.mxu0 0.0
    %1616 = vmatpush1.msra.mxu0 0.0
    %1617 = vmatprep.subr.mxu0 0.0
    %1618 = vmatpush1.msra.mxu0 0.0
    %1619 = vmatprep.subr.mxu0 0.0
    %1620 = vmatpush1.msra.mxu0 0.0
    %1621 = vmatprep.subr.mxu0 0.0
    %1622 = vmatpush1.msra.mxu0 0.0
    %1623 = vmatprep.subr.mxu0 0.0
    %1624 = vmatpush1.msra.mxu0 0.0
    %1625 = vmatprep.subr.mxu0 0.0
    %1626 = vmatpush1.msra.mxu0 %v394
    %1627 = vmatprep.subr.mxu0 0.0
    %1628 = vmatpush2.msra.mxu0 0.0
    %1629 = vmatprep.subr.mxu0 0.0
    %1630 = vmatpush2.msra.mxu0 0.0
    %1631 = vmatprep.subr.mxu0 0.0
    %1632 = vmatpush2.msra.mxu0 0.0
    %1633 = vmatprep.subr.mxu0 0.0
    %1634 = vmatpush2.msra.mxu0 0.0
    %1635 = vmatprep.subr.mxu0 0.0
    %1636 = vmatpush2.msra.mxu0 0.0
    %1637 = vmatprep.subr.mxu0 0.0
    %1638 = vmatpush2.msra.mxu0 0.0
    %1639 = vmatprep.subr.mxu0 0.0
    %1640 = vmatpush2.msra.mxu0 0.0
    %1641 = vmatprep.subr.mxu0 0.0
    %1642 = vmatpush2.msra.mxu0 0.0
    %1643 = vmatprep.subr.mxu0 0.0
    %1644 = vmatpush2.msra.mxu0 0.0
    %1645 = vmatprep.subr.mxu0 0.0
    %1646 = vmatpush2.msra.mxu0 0.0
    %1647 = vmatprep.subr.mxu0 0.0
    %1648 = vmatpush2.msra.mxu0 0.0
    %1649 = vmatprep.subr.mxu0 0.0
    %1650 = vmatpush2.msra.mxu0 0.0
    %1651 = vmatprep.subr.mxu0 0.0
    %1652 = vmatpush2.msra.mxu0 0.0
    %1653 = vmatprep.subr.mxu0 0.0
    %1654 = vmatpush2.msra.mxu0 0.0
    %1655 = vmatprep.subr.mxu0 0.0
    %1656 = vmatpush2.msra.mxu0 0.0
    %1657 = vmatprep.subr.mxu0 0.0
    %1658 = vmatpush2.msra.mxu0 0.0
    %1659 = vmatprep.mubr.f32.mxu0 0.0
    %1660 = vmatmul.mubr.f32.gmra.mxu0 %v1590
    %v1661 = vpop.f32.mrf.mxu0
    %v1662 = vadd.f32 0.0, %v1661
    %v1663 = vpop.f32.mrf.mxu0
    %1664 = vmatprep.mubr.f32.mxu0 0.0
    %1665 = vmatmul.mubr.f32.gmra.mxu0 %v1593
    %v1666 = vpop.f32.mrf.mxu0
    %v1667 = vadd.f32 0.0, %v1666
    %v1668 = vpop.f32.mrf.mxu0
    %1669 = vdwg.mxu0
    %v1670 = vadd.f32 %v1585, %v1662
    %v1671 = vadd.f32 %v1586, %v1667
    %v1672 = vld [vmem:[%s1250 + $0x1] sm:$0xff]
    %v1673 = vld [vmem:[%s1250 + $0x9] sm:$0xff]
    %v1675 = vsel %vm52, %v1672, 0
    %v1678 = vsel %vm52, %v1673, 0
    %1680 = vmatprep.subr.mxu0 0.0
    %1681 = vmatpush1.msra.mxu0 0.0
    %1682 = vmatprep.subr.mxu0 0.0
    %1683 = vmatpush1.msra.mxu0 0.0
    %1684 = vmatprep.subr.mxu0 0.0
    %1685 = vmatpush1.msra.mxu0 0.0
    %1686 = vmatprep.subr.mxu0 0.0
    %1687 = vmatpush1.msra.mxu0 0.0
    %1688 = vmatprep.subr.mxu0 0.0
    %1689 = vmatpush1.msra.mxu0 0.0
    %1690 = vmatprep.subr.mxu0 0.0
    %1691 = vmatpush1.msra.mxu0 0.0
    %1692 = vmatprep.subr.mxu0 0.0
    %1693 = vmatpush1.msra.mxu0 0.0
    %1694 = vmatprep.subr.mxu0 0.0
    %1695 = vmatpush1.msra.mxu0 0.0
    %1696 = vmatprep.subr.mxu0 0.0
    %1697 = vmatpush1.msra.mxu0 0.0
    %1698 = vmatprep.subr.mxu0 0.0
    %1699 = vmatpush1.msra.mxu0 0.0
    %1700 = vmatprep.subr.mxu0 0.0
    %1701 = vmatpush1.msra.mxu0 0.0
    %1702 = vmatprep.subr.mxu0 0.0
    %1703 = vmatpush1.msra.mxu0 0.0
    %1704 = vmatprep.subr.mxu0 0.0
    %1705 = vmatpush1.msra.mxu0 0.0
    %1706 = vmatprep.subr.mxu0 0.0
    %1707 = vmatpush1.msra.mxu0 0.0
    %1708 = vmatprep.subr.mxu0 0.0
    %1709 = vmatpush1.msra.mxu0 0.0
    %1710 = vmatprep.subr.mxu0 0.0
    %1711 = vmatpush1.msra.mxu0 %v481
    %1712 = vmatprep.subr.mxu0 0.0
    %1713 = vmatpush2.msra.mxu0 0.0
    %1714 = vmatprep.subr.mxu0 0.0
    %1715 = vmatpush2.msra.mxu0 0.0
    %1716 = vmatprep.subr.mxu0 0.0
    %1717 = vmatpush2.msra.mxu0 0.0
    %1718 = vmatprep.subr.mxu0 0.0
    %1719 = vmatpush2.msra.mxu0 0.0
    %1720 = vmatprep.subr.mxu0 0.0
    %1721 = vmatpush2.msra.mxu0 0.0
    %1722 = vmatprep.subr.mxu0 0.0
    %1723 = vmatpush2.msra.mxu0 0.0
    %1724 = vmatprep.subr.mxu0 0.0
    %1725 = vmatpush2.msra.mxu0 0.0
    %1726 = vmatprep.subr.mxu0 0.0
    %1727 = vmatpush2.msra.mxu0 0.0
    %1728 = vmatprep.subr.mxu0 0.0
    %1729 = vmatpush2.msra.mxu0 0.0
    %1730 = vmatprep.subr.mxu0 0.0
    %1731 = vmatpush2.msra.mxu0 0.0
    %1732 = vmatprep.subr.mxu0 0.0
    %1733 = vmatpush2.msra.mxu0 0.0
    %1734 = vmatprep.subr.mxu0 0.0
    %1735 = vmatpush2.msra.mxu0 0.0
    %1736 = vmatprep.subr.mxu0 0.0
    %1737 = vmatpush2.msra.mxu0 0.0
    %1738 = vmatprep.subr.mxu0 0.0
    %1739 = vmatpush2.msra.mxu0 0.0
    %1740 = vmatprep.subr.mxu0 0.0
    %1741 = vmatpush2.msra.mxu0 0.0
    %1742 = vmatprep.subr.mxu0 0.0
    %1743 = vmatpush2.msra.mxu0 0.0
    %1744 = vmatprep.mubr.f32.mxu0 0.0
    %1745 = vmatmul.mubr.f32.gmra.mxu0 %v1675
    %v1746 = vpop.f32.mrf.mxu0
    %v1747 = vadd.f32 0.0, %v1746
    %v1748 = vpop.f32.mrf.mxu0
    %1749 = vmatprep.mubr.f32.mxu0 0.0
    %1750 = vmatmul.mubr.f32.gmra.mxu0 %v1678
    %v1751 = vpop.f32.mrf.mxu0
    %v1752 = vadd.f32 0.0, %v1751
    %v1753 = vpop.f32.mrf.mxu0
    %1754 = vdwg.mxu0
    %v1755 = vadd.f32 %v1670, %v1747
    %v1756 = vadd.f32 %v1671, %v1752
    %v1757 = vld [vmem:[%s1415 + $0x1] sm:$0xff]
    %v1758 = vld [vmem:[%s1415 + $0x9] sm:$0xff]
    %v1760 = vsel %vm52, %v1757, 0
    %v1763 = vsel %vm52, %v1758, 0
    %1765 = vmatprep.subr.mxu0 0.0
    %1766 = vmatpush1.msra.mxu0 0.0
    %1767 = vmatprep.subr.mxu0 0.0
    %1768 = vmatpush1.msra.mxu0 0.0
    %1769 = vmatprep.subr.mxu0 0.0
    %1770 = vmatpush1.msra.mxu0 0.0
    %1771 = vmatprep.subr.mxu0 0.0
    %1772 = vmatpush1.msra.mxu0 0.0
    %1773 = vmatprep.subr.mxu0 0.0
    %1774 = vmatpush1.msra.mxu0 0.0
    %1775 = vmatprep.subr.mxu0 0.0
    %1776 = vmatpush1.msra.mxu0 0.0
    %1777 = vmatprep.subr.mxu0 0.0
    %1778 = vmatpush1.msra.mxu0 0.0
    %1779 = vmatprep.subr.mxu0 0.0
    %1780 = vmatpush1.msra.mxu0 0.0
    %1781 = vmatprep.subr.mxu0 0.0
    %1782 = vmatpush1.msra.mxu0 0.0
    %1783 = vmatprep.subr.mxu0 0.0
    %1784 = vmatpush1.msra.mxu0 0.0
    %1785 = vmatprep.subr.mxu0 0.0
    %1786 = vmatpush1.msra.mxu0 0.0
    %1787 = vmatprep.subr.mxu0 0.0
    %1788 = vmatpush1.msra.mxu0 0.0
    %1789 = vmatprep.subr.mxu0 0.0
    %1790 = vmatpush1.msra.mxu0 0.0
    %1791 = vmatprep.subr.mxu0 0.0
    %1792 = vmatpush1.msra.mxu0 0.0
    %1793 = vmatprep.subr.mxu0 0.0
    %1794 = vmatpush1.msra.mxu0 0.0
    %1795 = vmatprep.subr.mxu0 0.0
    %1796 = vmatpush1.msra.mxu0 %v568
    %1797 = vmatprep.subr.mxu0 0.0
    %1798 = vmatpush2.msra.mxu0 0.0
    %1799 = vmatprep.subr.mxu0 0.0
    %1800 = vmatpush2.msra.mxu0 0.0
    %1801 = vmatprep.subr.mxu0 0.0
    %1802 = vmatpush2.msra.mxu0 0.0
    %1803 = vmatprep.subr.mxu0 0.0
    %1804 = vmatpush2.msra.mxu0 0.0
    %1805 = vmatprep.subr.mxu0 0.0
    %1806 = vmatpush2.msra.mxu0 0.0
    %1807 = vmatprep.subr.mxu0 0.0
    %1808 = vmatpush2.msra.mxu0 0.0
    %1809 = vmatprep.subr.mxu0 0.0
    %1810 = vmatpush2.msra.mxu0 0.0
    %1811 = vmatprep.subr.mxu0 0.0
    %1812 = vmatpush2.msra.mxu0 0.0
    %1813 = vmatprep.subr.mxu0 0.0
    %1814 = vmatpush2.msra.mxu0 0.0
    %1815 = vmatprep.subr.mxu0 0.0
    %1816 = vmatpush2.msra.mxu0 0.0
    %1817 = vmatprep.subr.mxu0 0.0
    %1818 = vmatpush2.msra.mxu0 0.0
    %1819 = vmatprep.subr.mxu0 0.0
    %1820 = vmatpush2.msra.mxu0 0.0
    %1821 = vmatprep.subr.mxu0 0.0
    %1822 = vmatpush2.msra.mxu0 0.0
    %1823 = vmatprep.subr.mxu0 0.0
    %1824 = vmatpush2.msra.mxu0 0.0
    %1825 = vmatprep.subr.mxu0 0.0
    %1826 = vmatpush2.msra.mxu0 0.0
    %1827 = vmatprep.subr.mxu0 0.0
    %1828 = vmatpush2.msra.mxu0 0.0
    %1829 = vmatprep.mubr.f32.mxu0 0.0
    %1830 = vmatmul.mubr.f32.gmra.mxu0 %v1760
    %v1831 = vpop.f32.mrf.mxu0
    %v1832 = vadd.f32 0.0, %v1831
    %v1833 = vpop.f32.mrf.mxu0
    %1834 = vmatprep.mubr.f32.mxu0 0.0
    %1835 = vmatmul.mubr.f32.gmra.mxu0 %v1763
    %v1836 = vpop.f32.mrf.mxu0
    %v1837 = vadd.f32 0.0, %v1836
    %v1838 = vpop.f32.mrf.mxu0
    %1839 = vdwg.mxu0
    %v1840 = vadd.f32 %v1755, %v1832
    %v1841 = vadd.f32 %v1756, %v1837
    %v1842 = vsel %vm30, %v1840, 0.0
    %v1843 = vsel %vm30, %v1841, 0.0
    %v1844 = vadd.f32 %v1842, %v1843
    %v1845 = vrot.slane %v1844, 4
    %v1846 = vadd.f32 %v1844, %v1845
    %v1847 = vrot.slane %v1846, 2
    %v1848 = vadd.f32 %v1846, %v1847
    %v1849 = vrot.slane %v1848, 1
    %v1850 = vadd.f32 %v1848, %v1849
    %v1851 = vadd.f32 %v1234, %v1850
    %v1852 = vmul.f32 %v1840, %v1840
    %v1853 = vmul.f32 %v1841, %v1841
    %v1854 = vsel %vm30, %v1852, 0.0
    %v1855 = vsel %vm30, %v1853, 0.0
    %v1856 = vadd.f32 %v1854, %v1855
    %v1857 = vrot.slane %v1856, 4
    %v1858 = vadd.f32 %v1856, %v1857
    %v1859 = vrot.slane %v1858, 2
    %v1860 = vadd.f32 %v1858, %v1859
    %v1861 = vrot.slane %v1860, 1
    %v1862 = vadd.f32 %v1860, %v1861
    %v1863 = vadd.f32 %v1246, %v1862
    %1864 = vmatprep.subr.mxu0 0.0
    %1865 = vmatpush1.msra.mxu0 0.0
    %1866 = vmatprep.subr.mxu0 0.0
    %1867 = vmatpush1.msra.mxu0 0.0
    %1868 = vmatprep.subr.mxu0 0.0
    %1869 = vmatpush1.msra.mxu0 0.0
    %1870 = vmatprep.subr.mxu0 0.0
    %1871 = vmatpush1.msra.mxu0 0.0
    %1872 = vmatprep.subr.mxu0 0.0
    %1873 = vmatpush1.msra.mxu0 0.0
    %1874 = vmatprep.subr.mxu0 0.0
    %1875 = vmatpush1.msra.mxu0 0.0
    %1876 = vmatprep.subr.mxu0 0.0
    %1877 = vmatpush1.msra.mxu0 0.0
    %1878 = vmatprep.subr.mxu0 0.0
    %1879 = vmatpush1.msra.mxu0 0.0
    %1880 = vmatprep.subr.mxu0 0.0
    %1881 = vmatpush1.msra.mxu0 0.0
    %1882 = vmatprep.subr.mxu0 0.0
    %1883 = vmatpush1.msra.mxu0 0.0
    %1884 = vmatprep.subr.mxu0 0.0
    %1885 = vmatpush1.msra.mxu0 0.0
    %1886 = vmatprep.subr.mxu0 0.0
    %1887 = vmatpush1.msra.mxu0 0.0
    %1888 = vmatprep.subr.mxu0 0.0
    %1889 = vmatpush1.msra.mxu0 0.0
    %1890 = vmatprep.subr.mxu0 0.0
    %1891 = vmatpush1.msra.mxu0 0.0
    %1892 = vmatprep.subr.mxu0 0.0
    %1893 = vmatpush1.msra.mxu0 0.0
    %1894 = vmatprep.subr.mxu0 0.0
    %1895 = vmatpush1.msra.mxu0 %v51
    %1896 = vmatprep.subr.mxu0 0.0
    %1897 = vmatpush2.msra.mxu0 0.0
    %1898 = vmatprep.subr.mxu0 0.0
    %1899 = vmatpush2.msra.mxu0 0.0
    %1900 = vmatprep.subr.mxu0 0.0
    %1901 = vmatpush2.msra.mxu0 0.0
    %1902 = vmatprep.subr.mxu0 0.0
    %1903 = vmatpush2.msra.mxu0 0.0
    %1904 = vmatprep.subr.mxu0 0.0
    %1905 = vmatpush2.msra.mxu0 0.0
    %1906 = vmatprep.subr.mxu0 0.0
    %1907 = vmatpush2.msra.mxu0 0.0
    %1908 = vmatprep.subr.mxu0 0.0
    %1909 = vmatpush2.msra.mxu0 0.0
    %1910 = vmatprep.subr.mxu0 0.0
    %1911 = vmatpush2.msra.mxu0 0.0
    %1912 = vmatprep.subr.mxu0 0.0
    %1913 = vmatpush2.msra.mxu0 0.0
    %1914 = vmatprep.subr.mxu0 0.0
    %1915 = vmatpush2.msra.mxu0 0.0
    %1916 = vmatprep.subr.mxu0 0.0
    %1917 = vmatpush2.msra.mxu0 0.0
    %1918 = vmatprep.subr.mxu0 0.0
    %1919 = vmatpush2.msra.mxu0 0.0
    %1920 = vmatprep.subr.mxu0 0.0
    %1921 = vmatpush2.msra.mxu0 0.0
    %1922 = vmatprep.subr.mxu0 0.0
    %1923 = vmatpush2.msra.mxu0 0.0
    %1924 = vmatprep.subr.mxu0 0.0
    %1925 = vmatpush2.msra.mxu0 0.0
    %1926 = vmatprep.subr.mxu0 0.0
    %1927 = vmatpush2.msra.mxu0 0.0
    %1928 = vmatprep.mubr.f32.mxu0 0.0
    %1929 = vmatmul.mubr.f32.gmra.mxu0 %v1505
    %v1930 = vpop.f32.mrf.mxu0
    %v1931 = vadd.f32 0.0, %v1930
    %v1932 = vpop.f32.mrf.mxu0
    %1933 = vmatprep.mubr.f32.mxu0 0.0
    %1934 = vmatmul.mubr.f32.gmra.mxu0 %v1508
    %v1935 = vpop.f32.mrf.mxu0
    %v1936 = vadd.f32 0.0, %v1935
    %v1937 = vpop.f32.mrf.mxu0
    %1938 = vdwg.mxu0
    %1939 = vmatprep.subr.mxu0 0.0
    %1940 = vmatpush1.msra.mxu0 0.0
    %1941 = vmatprep.subr.mxu0 0.0
    %1942 = vmatpush1.msra.mxu0 0.0
    %1943 = vmatprep.subr.mxu0 0.0
    %1944 = vmatpush1.msra.mxu0 0.0
    %1945 = vmatprep.subr.mxu0 0.0
    %1946 = vmatpush1.msra.mxu0 0.0
    %1947 = vmatprep.subr.mxu0 0.0
    %1948 = vmatpush1.msra.mxu0 0.0
    %1949 = vmatprep.subr.mxu0 0.0
    %1950 = vmatpush1.msra.mxu0 0.0
    %1951 = vmatprep.subr.mxu0 0.0
    %1952 = vmatpush1.msra.mxu0 0.0
    %1953 = vmatprep.subr.mxu0 0.0
    %1954 = vmatpush1.msra.mxu0 0.0
    %1955 = vmatprep.subr.mxu0 0.0
    %1956 = vmatpush1.msra.mxu0 0.0
    %1957 = vmatprep.subr.mxu0 0.0
    %1958 = vmatpush1.msra.mxu0 0.0
    %1959 = vmatprep.subr.mxu0 0.0
    %1960 = vmatpush1.msra.mxu0 0.0
    %1961 = vmatprep.subr.mxu0 0.0
    %1962 = vmatpush1.msra.mxu0 0.0
    %1963 = vmatprep.subr.mxu0 0.0
    %1964 = vmatpush1.msra.mxu0 0.0
    %1965 = vmatprep.subr.mxu0 0.0
    %1966 = vmatpush1.msra.mxu0 0.0
    %1967 = vmatprep.subr.mxu0 0.0
    %1968 = vmatpush1.msra.mxu0 0.0
    %1969 = vmatprep.subr.mxu0 0.0
    %1970 = vmatpush1.msra.mxu0 %v46
    %1971 = vmatprep.subr.mxu0 0.0
    %1972 = vmatpush2.msra.mxu0 0.0
    %1973 = vmatprep.subr.mxu0 0.0
    %1974 = vmatpush2.msra.mxu0 0.0
    %1975 = vmatprep.subr.mxu0 0.0
    %1976 = vmatpush2.msra.mxu0 0.0
    %1977 = vmatprep.subr.mxu0 0.0
    %1978 = vmatpush2.msra.mxu0 0.0
    %1979 = vmatprep.subr.mxu0 0.0
    %1980 = vmatpush2.msra.mxu0 0.0
    %1981 = vmatprep.subr.mxu0 0.0
    %1982 = vmatpush2.msra.mxu0 0.0
    %1983 = vmatprep.subr.mxu0 0.0
    %1984 = vmatpush2.msra.mxu0 0.0
    %1985 = vmatprep.subr.mxu0 0.0
    %1986 = vmatpush2.msra.mxu0 0.0
    %1987 = vmatprep.subr.mxu0 0.0
    %1988 = vmatpush2.msra.mxu0 0.0
    %1989 = vmatprep.subr.mxu0 0.0
    %1990 = vmatpush2.msra.mxu0 0.0
    %1991 = vmatprep.subr.mxu0 0.0
    %1992 = vmatpush2.msra.mxu0 0.0
    %1993 = vmatprep.subr.mxu0 0.0
    %1994 = vmatpush2.msra.mxu0 0.0
    %1995 = vmatprep.subr.mxu0 0.0
    %1996 = vmatpush2.msra.mxu0 0.0
    %1997 = vmatprep.subr.mxu0 0.0
    %1998 = vmatpush2.msra.mxu0 0.0
    %1999 = vmatprep.subr.mxu0 0.0
    %2000 = vmatpush2.msra.mxu0 0.0
    %2001 = vmatprep.subr.mxu0 0.0
    %2002 = vmatpush2.msra.mxu0 0.0
    %2003 = vmatprep.mubr.f32.mxu0 0.0
    %2004 = vmatmul.mubr.f32.gmra.mxu0 %v1419
    %v2005 = vpop.f32.mrf.mxu0
    %v2006 = vadd.f32 %v1931, %v2005
    %v2007 = vpop.f32.mrf.mxu0
    %2008 = vmatprep.mubr.f32.mxu0 0.0
    %2009 = vmatmul.mubr.f32.gmra.mxu0 %v1422
    %v2010 = vpop.f32.mrf.mxu0
    %v2011 = vadd.f32 %v1936, %v2010
    %v2012 = vpop.f32.mrf.mxu0
    %2013 = vdwg.mxu0
    %2014 = vmatprep.subr.mxu0 0.0
    %2015 = vmatpush1.msra.mxu0 0.0
    %2016 = vmatprep.subr.mxu0 0.0
    %2017 = vmatpush1.msra.mxu0 0.0
    %2018 = vmatprep.subr.mxu0 0.0
    %2019 = vmatpush1.msra.mxu0 0.0
    %2020 = vmatprep.subr.mxu0 0.0
    %2021 = vmatpush1.msra.mxu0 0.0
    %2022 = vmatprep.subr.mxu0 0.0
    %2023 = vmatpush1.msra.mxu0 0.0
    %2024 = vmatprep.subr.mxu0 0.0
    %2025 = vmatpush1.msra.mxu0 0.0
    %2026 = vmatprep.subr.mxu0 0.0
    %2027 = vmatpush1.msra.mxu0 0.0
    %2028 = vmatprep.subr.mxu0 0.0
    %2029 = vmatpush1.msra.mxu0 0.0
    %2030 = vmatprep.subr.mxu0 0.0
    %2031 = vmatpush1.msra.mxu0 0.0
    %2032 = vmatprep.subr.mxu0 0.0
    %2033 = vmatpush1.msra.mxu0 0.0
    %2034 = vmatprep.subr.mxu0 0.0
    %2035 = vmatpush1.msra.mxu0 0.0
    %2036 = vmatprep.subr.mxu0 0.0
    %2037 = vmatpush1.msra.mxu0 0.0
    %2038 = vmatprep.subr.mxu0 0.0
    %2039 = vmatpush1.msra.mxu0 0.0
    %2040 = vmatprep.subr.mxu0 0.0
    %2041 = vmatpush1.msra.mxu0 0.0
    %2042 = vmatprep.subr.mxu0 0.0
    %2043 = vmatpush1.msra.mxu0 0.0
    %2044 = vmatprep.subr.mxu0 0.0
    %2045 = vmatpush1.msra.mxu0 %v219
    %2046 = vmatprep.subr.mxu0 0.0
    %2047 = vmatpush2.msra.mxu0 0.0
    %2048 = vmatprep.subr.mxu0 0.0
    %2049 = vmatpush2.msra.mxu0 0.0
    %2050 = vmatprep.subr.mxu0 0.0
    %2051 = vmatpush2.msra.mxu0 0.0
    %2052 = vmatprep.subr.mxu0 0.0
    %2053 = vmatpush2.msra.mxu0 0.0
    %2054 = vmatprep.subr.mxu0 0.0
    %2055 = vmatpush2.msra.mxu0 0.0
    %2056 = vmatprep.subr.mxu0 0.0
    %2057 = vmatpush2.msra.mxu0 0.0
    %2058 = vmatprep.subr.mxu0 0.0
    %2059 = vmatpush2.msra.mxu0 0.0
    %2060 = vmatprep.subr.mxu0 0.0
    %2061 = vmatpush2.msra.mxu0 0.0
    %2062 = vmatprep.subr.mxu0 0.0
    %2063 = vmatpush2.msra.mxu0 0.0
    %2064 = vmatprep.subr.mxu0 0.0
    %2065 = vmatpush2.msra.mxu0 0.0
    %2066 = vmatprep.subr.mxu0 0.0
    %2067 = vmatpush2.msra.mxu0 0.0
    %2068 = vmatprep.subr.mxu0 0.0
    %2069 = vmatpush2.msra.mxu0 0.0
    %2070 = vmatprep.subr.mxu0 0.0
    %2071 = vmatpush2.msra.mxu0 0.0
    %2072 = vmatprep.subr.mxu0 0.0
    %2073 = vmatpush2.msra.mxu0 0.0
    %2074 = vmatprep.subr.mxu0 0.0
    %2075 = vmatpush2.msra.mxu0 0.0
    %2076 = vmatprep.subr.mxu0 0.0
    %2077 = vmatpush2.msra.mxu0 0.0
    %2078 = vmatprep.mubr.f32.mxu0 0.0
    %2079 = vmatmul.mubr.f32.gmra.mxu0 %v1590
    %v2080 = vpop.f32.mrf.mxu0
    %v2081 = vadd.f32 0.0, %v2080
    %v2082 = vpop.f32.mrf.mxu0
    %2083 = vmatprep.mubr.f32.mxu0 0.0
    %2084 = vmatmul.mubr.f32.gmra.mxu0 %v1593
    %v2085 = vpop.f32.mrf.mxu0
    %v2086 = vadd.f32 0.0, %v2085
    %v2087 = vpop.f32.mrf.mxu0
    %2088 = vdwg.mxu0
    %v2089 = vadd.f32 %v2006, %v2081
    %v2090 = vadd.f32 %v2011, %v2086
    %2091 = vmatprep.subr.mxu0 0.0
    %2092 = vmatpush1.msra.mxu0 0.0
    %2093 = vmatprep.subr.mxu0 0.0
    %2094 = vmatpush1.msra.mxu0 0.0
    %2095 = vmatprep.subr.mxu0 0.0
    %2096 = vmatpush1.msra.mxu0 0.0
    %2097 = vmatprep.subr.mxu0 0.0
    %2098 = vmatpush1.msra.mxu0 0.0
    %2099 = vmatprep.subr.mxu0 0.0
    %2100 = vmatpush1.msra.mxu0 0.0
    %2101 = vmatprep.subr.mxu0 0.0
    %2102 = vmatpush1.msra.mxu0 0.0
    %2103 = vmatprep.subr.mxu0 0.0
    %2104 = vmatpush1.msra.mxu0 0.0
    %2105 = vmatprep.subr.mxu0 0.0
    %2106 = vmatpush1.msra.mxu0 0.0
    %2107 = vmatprep.subr.mxu0 0.0
    %2108 = vmatpush1.msra.mxu0 0.0
    %2109 = vmatprep.subr.mxu0 0.0
    %2110 = vmatpush1.msra.mxu0 0.0
    %2111 = vmatprep.subr.mxu0 0.0
    %2112 = vmatpush1.msra.mxu0 0.0
    %2113 = vmatprep.subr.mxu0 0.0
    %2114 = vmatpush1.msra.mxu0 0.0
    %2115 = vmatprep.subr.mxu0 0.0
    %2116 = vmatpush1.msra.mxu0 0.0
    %2117 = vmatprep.subr.mxu0 0.0
    %2118 = vmatpush1.msra.mxu0 0.0
    %2119 = vmatprep.subr.mxu0 0.0
    %2120 = vmatpush1.msra.mxu0 0.0
    %2121 = vmatprep.subr.mxu0 0.0
    %2122 = vmatpush1.msra.mxu0 %v307
    %2123 = vmatprep.subr.mxu0 0.0
    %2124 = vmatpush2.msra.mxu0 0.0
    %2125 = vmatprep.subr.mxu0 0.0
    %2126 = vmatpush2.msra.mxu0 0.0
    %2127 = vmatprep.subr.mxu0 0.0
    %2128 = vmatpush2.msra.mxu0 0.0
    %2129 = vmatprep.subr.mxu0 0.0
    %2130 = vmatpush2.msra.mxu0 0.0
    %2131 = vmatprep.subr.mxu0 0.0
    %2132 = vmatpush2.msra.mxu0 0.0
    %2133 = vmatprep.subr.mxu0 0.0
    %2134 = vmatpush2.msra.mxu0 0.0
    %2135 = vmatprep.subr.mxu0 0.0
    %2136 = vmatpush2.msra.mxu0 0.0
    %2137 = vmatprep.subr.mxu0 0.0
    %2138 = vmatpush2.msra.mxu0 0.0
    %2139 = vmatprep.subr.mxu0 0.0
    %2140 = vmatpush2.msra.mxu0 0.0
    %2141 = vmatprep.subr.mxu0 0.0
    %2142 = vmatpush2.msra.mxu0 0.0
    %2143 = vmatprep.subr.mxu0 0.0
    %2144 = vmatpush2.msra.mxu0 0.0
    %2145 = vmatprep.subr.mxu0 0.0
    %2146 = vmatpush2.msra.mxu0 0.0
    %2147 = vmatprep.subr.mxu0 0.0
    %2148 = vmatpush2.msra.mxu0 0.0
    %2149 = vmatprep.subr.mxu0 0.0
    %2150 = vmatpush2.msra.mxu0 0.0
    %2151 = vmatprep.subr.mxu0 0.0
    %2152 = vmatpush2.msra.mxu0 0.0
    %2153 = vmatprep.subr.mxu0 0.0
    %2154 = vmatpush2.msra.mxu0 0.0
    %2155 = vmatprep.mubr.f32.mxu0 0.0
    %2156 = vmatmul.mubr.f32.gmra.mxu0 %v1675
    %v2157 = vpop.f32.mrf.mxu0
    %v2158 = vadd.f32 0.0, %v2157
    %v2159 = vpop.f32.mrf.mxu0
    %2160 = vmatprep.mubr.f32.mxu0 0.0
    %2161 = vmatmul.mubr.f32.gmra.mxu0 %v1678
    %v2162 = vpop.f32.mrf.mxu0
    %v2163 = vadd.f32 0.0, %v2162
    %v2164 = vpop.f32.mrf.mxu0
    %2165 = vdwg.mxu0
    %v2166 = vadd.f32 %v2089, %v2158
    %v2167 = vadd.f32 %v2090, %v2163
    %2168 = vmatprep.subr.mxu0 0.0
    %2169 = vmatpush1.msra.mxu0 0.0
    %2170 = vmatprep.subr.mxu0 0.0
    %2171 = vmatpush1.msra.mxu0 0.0
    %2172 = vmatprep.subr.mxu0 0.0
    %2173 = vmatpush1.msra.mxu0 0.0
    %2174 = vmatprep.subr.mxu0 0.0
    %2175 = vmatpush1.msra.mxu0 0.0
    %2176 = vmatprep.subr.mxu0 0.0
    %2177 = vmatpush1.msra.mxu0 0.0
    %2178 = vmatprep.subr.mxu0 0.0
    %2179 = vmatpush1.msra.mxu0 0.0
    %2180 = vmatprep.subr.mxu0 0.0
    %2181 = vmatpush1.msra.mxu0 0.0
    %2182 = vmatprep.subr.mxu0 0.0
    %2183 = vmatpush1.msra.mxu0 0.0
    %2184 = vmatprep.subr.mxu0 0.0
    %2185 = vmatpush1.msra.mxu0 0.0
    %2186 = vmatprep.subr.mxu0 0.0
    %2187 = vmatpush1.msra.mxu0 0.0
    %2188 = vmatprep.subr.mxu0 0.0
    %2189 = vmatpush1.msra.mxu0 0.0
    %2190 = vmatprep.subr.mxu0 0.0
    %2191 = vmatpush1.msra.mxu0 0.0
    %2192 = vmatprep.subr.mxu0 0.0
    %2193 = vmatpush1.msra.mxu0 0.0
    %2194 = vmatprep.subr.mxu0 0.0
    %2195 = vmatpush1.msra.mxu0 0.0
    %2196 = vmatprep.subr.mxu0 0.0
    %2197 = vmatpush1.msra.mxu0 0.0
    %2198 = vmatprep.subr.mxu0 0.0
    %2199 = vmatpush1.msra.mxu0 %v394
    %2200 = vmatprep.subr.mxu0 0.0
    %2201 = vmatpush2.msra.mxu0 0.0
    %2202 = vmatprep.subr.mxu0 0.0
    %2203 = vmatpush2.msra.mxu0 0.0
    %2204 = vmatprep.subr.mxu0 0.0
    %2205 = vmatpush2.msra.mxu0 0.0
    %2206 = vmatprep.subr.mxu0 0.0
    %2207 = vmatpush2.msra.mxu0 0.0
    %2208 = vmatprep.subr.mxu0 0.0
    %2209 = vmatpush2.msra.mxu0 0.0
    %2210 = vmatprep.subr.mxu0 0.0
    %2211 = vmatpush2.msra.mxu0 0.0
    %2212 = vmatprep.subr.mxu0 0.0
    %2213 = vmatpush2.msra.mxu0 0.0
    %2214 = vmatprep.subr.mxu0 0.0
    %2215 = vmatpush2.msra.mxu0 0.0
    %2216 = vmatprep.subr.mxu0 0.0
    %2217 = vmatpush2.msra.mxu0 0.0
    %2218 = vmatprep.subr.mxu0 0.0
    %2219 = vmatpush2.msra.mxu0 0.0
    %2220 = vmatprep.subr.mxu0 0.0
    %2221 = vmatpush2.msra.mxu0 0.0
    %2222 = vmatprep.subr.mxu0 0.0
    %2223 = vmatpush2.msra.mxu0 0.0
    %2224 = vmatprep.subr.mxu0 0.0
    %2225 = vmatpush2.msra.mxu0 0.0
    %2226 = vmatprep.subr.mxu0 0.0
    %2227 = vmatpush2.msra.mxu0 0.0
    %2228 = vmatprep.subr.mxu0 0.0
    %2229 = vmatpush2.msra.mxu0 0.0
    %2230 = vmatprep.subr.mxu0 0.0
    %2231 = vmatpush2.msra.mxu0 0.0
    %2232 = vmatprep.mubr.f32.mxu0 0.0
    %2233 = vmatmul.mubr.f32.gmra.mxu0 %v1760
    %v2234 = vpop.f32.mrf.mxu0
    %v2235 = vadd.f32 0.0, %v2234
    %v2236 = vpop.f32.mrf.mxu0
    %2237 = vmatprep.mubr.f32.mxu0 0.0
    %2238 = vmatmul.mubr.f32.gmra.mxu0 %v1763
    %v2239 = vpop.f32.mrf.mxu0
    %v2240 = vadd.f32 0.0, %v2239
    %v2241 = vpop.f32.mrf.mxu0
    %2242 = vdwg.mxu0
    %v2243 = vadd.f32 %v2166, %v2235
    %v2244 = vadd.f32 %v2167, %v2240
    %v2245 = vld [vmem:[%s1501 + $0x1] sm:$0xff]
    %v2246 = vld [vmem:[%s1501 + $0x9] sm:$0xff]
    %v2248 = vsel %vm52, %v2245, 0
    %v2251 = vsel %vm52, %v2246, 0
    %2253 = vmatprep.subr.mxu0 0.0
    %2254 = vmatpush1.msra.mxu0 0.0
    %2255 = vmatprep.subr.mxu0 0.0
    %2256 = vmatpush1.msra.mxu0 0.0
    %2257 = vmatprep.subr.mxu0 0.0
    %2258 = vmatpush1.msra.mxu0 0.0
    %2259 = vmatprep.subr.mxu0 0.0
    %2260 = vmatpush1.msra.mxu0 0.0
    %2261 = vmatprep.subr.mxu0 0.0
    %2262 = vmatpush1.msra.mxu0 0.0
    %2263 = vmatprep.subr.mxu0 0.0
    %2264 = vmatpush1.msra.mxu0 0.0
    %2265 = vmatprep.subr.mxu0 0.0
    %2266 = vmatpush1.msra.mxu0 0.0
    %2267 = vmatprep.subr.mxu0 0.0
    %2268 = vmatpush1.msra.mxu0 0.0
    %2269 = vmatprep.subr.mxu0 0.0
    %2270 = vmatpush1.msra.mxu0 0.0
    %2271 = vmatprep.subr.mxu0 0.0
    %2272 = vmatpush1.msra.mxu0 0.0
    %2273 = vmatprep.subr.mxu0 0.0
    %2274 = vmatpush1.msra.mxu0 0.0
    %2275 = vmatprep.subr.mxu0 0.0
    %2276 = vmatpush1.msra.mxu0 0.0
    %2277 = vmatprep.subr.mxu0 0.0
    %2278 = vmatpush1.msra.mxu0 0.0
    %2279 = vmatprep.subr.mxu0 0.0
    %2280 = vmatpush1.msra.mxu0 0.0
    %2281 = vmatprep.subr.mxu0 0.0
    %2282 = vmatpush1.msra.mxu0 0.0
    %2283 = vmatprep.subr.mxu0 0.0
    %2284 = vmatpush1.msra.mxu0 %v481
    %2285 = vmatprep.subr.mxu0 0.0
    %2286 = vmatpush2.msra.mxu0 0.0
    %2287 = vmatprep.subr.mxu0 0.0
    %2288 = vmatpush2.msra.mxu0 0.0
    %2289 = vmatprep.subr.mxu0 0.0
    %2290 = vmatpush2.msra.mxu0 0.0
    %2291 = vmatprep.subr.mxu0 0.0
    %2292 = vmatpush2.msra.mxu0 0.0
    %2293 = vmatprep.subr.mxu0 0.0
    %2294 = vmatpush2.msra.mxu0 0.0
    %2295 = vmatprep.subr.mxu0 0.0
    %2296 = vmatpush2.msra.mxu0 0.0
    %2297 = vmatprep.subr.mxu0 0.0
    %2298 = vmatpush2.msra.mxu0 0.0
    %2299 = vmatprep.subr.mxu0 0.0
    %2300 = vmatpush2.msra.mxu0 0.0
    %2301 = vmatprep.subr.mxu0 0.0
    %2302 = vmatpush2.msra.mxu0 0.0
    %2303 = vmatprep.subr.mxu0 0.0
    %2304 = vmatpush2.msra.mxu0 0.0
    %2305 = vmatprep.subr.mxu0 0.0
    %2306 = vmatpush2.msra.mxu0 0.0
    %2307 = vmatprep.subr.mxu0 0.0
    %2308 = vmatpush2.msra.mxu0 0.0
    %2309 = vmatprep.subr.mxu0 0.0
    %2310 = vmatpush2.msra.mxu0 0.0
    %2311 = vmatprep.subr.mxu0 0.0
    %2312 = vmatpush2.msra.mxu0 0.0
    %2313 = vmatprep.subr.mxu0 0.0
    %2314 = vmatpush2.msra.mxu0 0.0
    %2315 = vmatprep.subr.mxu0 0.0
    %2316 = vmatpush2.msra.mxu0 0.0
    %2317 = vmatprep.mubr.f32.mxu0 0.0
    %2318 = vmatmul.mubr.f32.gmra.mxu0 %v2248
    %v2319 = vpop.f32.mrf.mxu0
    %v2320 = vadd.f32 0.0, %v2319
    %v2321 = vpop.f32.mrf.mxu0
    %2322 = vmatprep.mubr.f32.mxu0 0.0
    %2323 = vmatmul.mubr.f32.gmra.mxu0 %v2251
    %v2324 = vpop.f32.mrf.mxu0
    %v2325 = vadd.f32 0.0, %v2324
    %v2326 = vpop.f32.mrf.mxu0
    %2327 = vdwg.mxu0
    %v2328 = vadd.f32 %v2243, %v2320
    %v2329 = vadd.f32 %v2244, %v2325
    %v2330 = vld [vmem:[%s1247 + $0x2] sm:$0xff]
    %v2331 = vld [vmem:[%s1247 + $0xa] sm:$0xff]
    %v2333 = vsel %vm52, %v2330, 0
    %v2336 = vsel %vm52, %v2331, 0
    %2338 = vmatprep.subr.mxu0 0.0
    %2339 = vmatpush1.msra.mxu0 0.0
    %2340 = vmatprep.subr.mxu0 0.0
    %2341 = vmatpush1.msra.mxu0 0.0
    %2342 = vmatprep.subr.mxu0 0.0
    %2343 = vmatpush1.msra.mxu0 0.0
    %2344 = vmatprep.subr.mxu0 0.0
    %2345 = vmatpush1.msra.mxu0 0.0
    %2346 = vmatprep.subr.mxu0 0.0
    %2347 = vmatpush1.msra.mxu0 0.0
    %2348 = vmatprep.subr.mxu0 0.0
    %2349 = vmatpush1.msra.mxu0 0.0
    %2350 = vmatprep.subr.mxu0 0.0
    %2351 = vmatpush1.msra.mxu0 0.0
    %2352 = vmatprep.subr.mxu0 0.0
    %2353 = vmatpush1.msra.mxu0 0.0
    %2354 = vmatprep.subr.mxu0 0.0
    %2355 = vmatpush1.msra.mxu0 0.0
    %2356 = vmatprep.subr.mxu0 0.0
    %2357 = vmatpush1.msra.mxu0 0.0
    %2358 = vmatprep.subr.mxu0 0.0
    %2359 = vmatpush1.msra.mxu0 0.0
    %2360 = vmatprep.subr.mxu0 0.0
    %2361 = vmatpush1.msra.mxu0 0.0
    %2362 = vmatprep.subr.mxu0 0.0
    %2363 = vmatpush1.msra.mxu0 0.0
    %2364 = vmatprep.subr.mxu0 0.0
    %2365 = vmatpush1.msra.mxu0 0.0
    %2366 = vmatprep.subr.mxu0 0.0
    %2367 = vmatpush1.msra.mxu0 0.0
    %2368 = vmatprep.subr.mxu0 0.0
    %2369 = vmatpush1.msra.mxu0 %v568
    %2370 = vmatprep.subr.mxu0 0.0
    %2371 = vmatpush2.msra.mxu0 0.0
    %2372 = vmatprep.subr.mxu0 0.0
    %2373 = vmatpush2.msra.mxu0 0.0
    %2374 = vmatprep.subr.mxu0 0.0
    %2375 = vmatpush2.msra.mxu0 0.0
    %2376 = vmatprep.subr.mxu0 0.0
    %2377 = vmatpush2.msra.mxu0 0.0
    %2378 = vmatprep.subr.mxu0 0.0
    %2379 = vmatpush2.msra.mxu0 0.0
    %2380 = vmatprep.subr.mxu0 0.0
    %2381 = vmatpush2.msra.mxu0 0.0
    %2382 = vmatprep.subr.mxu0 0.0
    %2383 = vmatpush2.msra.mxu0 0.0
    %2384 = vmatprep.subr.mxu0 0.0
    %2385 = vmatpush2.msra.mxu0 0.0
    %2386 = vmatprep.subr.mxu0 0.0
    %2387 = vmatpush2.msra.mxu0 0.0
    %2388 = vmatprep.subr.mxu0 0.0
    %2389 = vmatpush2.msra.mxu0 0.0
    %2390 = vmatprep.subr.mxu0 0.0
    %2391 = vmatpush2.msra.mxu0 0.0
    %2392 = vmatprep.subr.mxu0 0.0
    %2393 = vmatpush2.msra.mxu0 0.0
    %2394 = vmatprep.subr.mxu0 0.0
    %2395 = vmatpush2.msra.mxu0 0.0
    %2396 = vmatprep.subr.mxu0 0.0
    %2397 = vmatpush2.msra.mxu0 0.0
    %2398 = vmatprep.subr.mxu0 0.0
    %2399 = vmatpush2.msra.mxu0 0.0
    %2400 = vmatprep.subr.mxu0 0.0
    %2401 = vmatpush2.msra.mxu0 0.0
    %2402 = vmatprep.mubr.f32.mxu0 0.0
    %2403 = vmatmul.mubr.f32.gmra.mxu0 %v2333
    %v2404 = vpop.f32.mrf.mxu0
    %v2405 = vadd.f32 0.0, %v2404
    %v2406 = vpop.f32.mrf.mxu0
    %2407 = vmatprep.mubr.f32.mxu0 0.0
    %2408 = vmatmul.mubr.f32.gmra.mxu0 %v2336
    %v2409 = vpop.f32.mrf.mxu0
    %v2410 = vadd.f32 0.0, %v2409
    %v2411 = vpop.f32.mrf.mxu0
    %2412 = vdwg.mxu0
    %v2413 = vadd.f32 %v2328, %v2405
    %v2414 = vadd.f32 %v2329, %v2410
    %v2415 = vsel %vm30, %v2413, 0.0
    %v2416 = vsel %vm30, %v2414, 0.0
    %v2417 = vadd.f32 %v2415, %v2416
    %v2418 = vrot.slane %v2417, 4
    %v2419 = vadd.f32 %v2417, %v2418
    %v2420 = vrot.slane %v2419, 2
    %v2421 = vadd.f32 %v2419, %v2420
    %v2422 = vrot.slane %v2421, 1
    %v2423 = vadd.f32 %v2421, %v2422
    %v2424 = vadd.f32 %v1851, %v2423
    %v2425 = vmul.f32 %v2413, %v2413
    %v2426 = vmul.f32 %v2414, %v2414
    %v2427 = vsel %vm30, %v2425, 0.0
    %v2428 = vsel %vm30, %v2426, 0.0
    %v2429 = vadd.f32 %v2427, %v2428
    %v2430 = vrot.slane %v2429, 4
    %v2431 = vadd.f32 %v2429, %v2430
    %v2432 = vrot.slane %v2431, 2
    %v2433 = vadd.f32 %v2431, %v2432
    %v2434 = vrot.slane %v2433, 1
    %v2435 = vadd.f32 %v2433, %v2434
    %v2436 = vadd.f32 %v1863, %v2435
    %v2437 = vrcp.pop 64.0
    %v2438 = vmul.f32 %v2424, %v2437
    %v2439 = vmul.f32 %v2436, %v2437
    %v2440 = vmul.f32 %v2438, %v2438
    %v2441 = vsub.f32 %v2439, %v2440
    %v2442 = vadd.f32 %v2441, 1e-05
    %v2443 = vrsqrt.pop %v2442
    %v2444 = vld [vmem:[%s3] sm:$0x1]
    %v2445 = vmul.f32 %v2443, %v2444
    %v2446 = vld [vmem:[%s4] sm:$0x1]
    %v2447 = vmul.f32 %v2438, %v2445
    %v2448 = vsub.f32 %v2446, %v2447
    %v2449 = vlaneseq
    %v2450 = vshrl.u32 %v2449, 7
    %v2451 = vsub.s32 0, %v2450
    %v2452 = vrot.slane %v2445, %v2451
    %v2453 = vmul.f32 %v650, %v2452
    %v2454 = vmul.f32 %v651, %v2452
    %v2456 = vlaneseq
    %v2457 = vshrl.u32 %v2456, 7
    %v2458 = vsub.s32 0, %v2457
    %v2459 = vrot.slane %v2448, %v2458
    %v2461 = vadd.f32 %v2453, %v2459
    %v2462 = vadd.f32 %v2454, %v2459
    %v2463 = vxor.u32 %v2461, 2147483648
    %v2464 = vxor.u32 %v2462, 2147483648
    %v2465 = vmul.f32 %v2463, 1.442695
    %v2466 = vpow.pop %v2465
    %v2467 = vmul.f32 %v2464, 1.442695
    %v2468 = vpow.pop %v2467
    %v2469 = vadd.f32 %v2466, 1.0
    %v2470 = vadd.f32 %v2468, 1.0
    %v2471 = vrcp.pop %v2469
    %v2472 = vmul.f32 1.0, %v2471
    %v2473 = vrcp.pop %v2470
    %v2474 = vmul.f32 1.0, %v2473
    %v2475 = vmul.f32 %v2461, %v2472
    %v2476 = vmul.f32 %v2462, %v2474
    %2477 = vst.msk [vmem:[#allocation2 + $0x1] sm:$0xff] %vm30, %v2475
    %2478 = vst.msk [vmem:[#allocation2 + $0x9] sm:$0xff] %vm30, %v2476
    %v2479 = vmul.f32 %v1223, %v2452
    %v2480 = vmul.f32 %v1224, %v2452
    %v2481 = vadd.f32 %v2479, %v2459
    %v2482 = vadd.f32 %v2480, %v2459
    %v2483 = vxor.u32 %v2481, 2147483648
    %v2484 = vxor.u32 %v2482, 2147483648
    %v2485 = vmul.f32 %v2483, 1.442695
    %v2486 = vpow.pop %v2485
    %v2487 = vmul.f32 %v2484, 1.442695
    %v2488 = vpow.pop %v2487
    %v2489 = vadd.f32 %v2486, 1.0
    %v2490 = vadd.f32 %v2488, 1.0
    %v2491 = vrcp.pop %v2489
    %v2492 = vmul.f32 1.0, %v2491
    %v2493 = vrcp.pop %v2490
    %v2494 = vmul.f32 1.0, %v2493
    %v2495 = vmul.f32 %v2481, %v2492
    %v2496 = vmul.f32 %v2482, %v2494
    %s2497 = scalar_lea.vmem [#allocation2], 24
    %2498 = vst.msk [vmem:[%s2497 + $0x1] sm:$0xff] %vm30, %v2495
    %2499 = vst.msk [vmem:[%s2497 + $0x9] sm:$0xff] %vm30, %v2496
    %v2500 = vmul.f32 %v1840, %v2452
    %v2501 = vmul.f32 %v1841, %v2452
    %v2502 = vadd.f32 %v2500, %v2459
    %v2503 = vadd.f32 %v2501, %v2459
    %v2504 = vxor.u32 %v2502, 2147483648
    %v2505 = vxor.u32 %v2503, 2147483648
    %v2506 = vmul.f32 %v2504, 1.442695
    %v2507 = vpow.pop %v2506
    %v2508 = vmul.f32 %v2505, 1.442695
    %v2509 = vpow.pop %v2508
    %v2510 = vadd.f32 %v2507, 1.0
    %v2511 = vadd.f32 %v2509, 1.0
    %v2512 = vrcp.pop %v2510
    %v2513 = vmul.f32 1.0, %v2512
    %v2514 = vrcp.pop %v2511
    %v2515 = vmul.f32 1.0, %v2514
    %v2516 = vmul.f32 %v2502, %v2513
    %v2517 = vmul.f32 %v2503, %v2515
    %s2518 = scalar_lea.vmem [#allocation2], 48
    %2519 = vst.msk [vmem:[%s2518 + $0x1] sm:$0xff] %vm30, %v2516
    %2520 = vst.msk [vmem:[%s2518 + $0x9] sm:$0xff] %vm30, %v2517
    %v2521 = vmul.f32 %v2413, %v2452
    %v2522 = vmul.f32 %v2414, %v2452
    %v2523 = vadd.f32 %v2521, %v2459
    %v2524 = vadd.f32 %v2522, %v2459
    %v2525 = vxor.u32 %v2523, 2147483648
    %v2526 = vxor.u32 %v2524, 2147483648
    %v2527 = vmul.f32 %v2525, 1.442695
    %v2528 = vpow.pop %v2527
    %v2529 = vmul.f32 %v2526, 1.442695
    %v2530 = vpow.pop %v2529
    %v2531 = vadd.f32 %v2528, 1.0
    %v2532 = vadd.f32 %v2530, 1.0
    %v2533 = vrcp.pop %v2531
    %v2534 = vmul.f32 1.0, %v2533
    %v2535 = vrcp.pop %v2532
    %v2536 = vmul.f32 1.0, %v2535
    %v2537 = vmul.f32 %v2523, %v2534
    %v2538 = vmul.f32 %v2524, %v2536
    %s2539 = scalar_lea.vmem [#allocation2], 72
    %2540 = vst.msk [vmem:[%s2539 + $0x1] sm:$0xff] %vm30, %v2537
    %2541 = vst.msk [vmem:[%s2539 + $0x9] sm:$0xff] %vm30, %v2538
    %v2542 = vld [vmem:[#allocation2] sm:$0xff]
    %v2543 = vld [vmem:[#allocation2 + $0x8] sm:$0xff]
    %v2544 = vld [vmem:[%s2] sm:$0xff]
    %v2545 = vld [vmem:[%s2 + $0x8] sm:$0xff]
    %v2546 = vld [vmem:[%s2497] sm:$0xff]
    %v2547 = vld [vmem:[%s2497 + $0x8] sm:$0xff]
    %s2548 = scalar_lea.vmem %s2, 16
    %v2549 = vld [vmem:[%s2548] sm:$0xff]
    %v2550 = vld [vmem:[%s2548 + $0x8] sm:$0xff]
    %v2552 = vsel %vm30, %v2546, 0
    %v2555 = vsel %vm30, %v2547, 0
    %2557 = vmatprep.subr.mxu0 0.0
    %2558 = vmatpush1.msra.mxu0 0.0
    %2559 = vmatprep.subr.mxu0 0.0
    %2560 = vmatpush1.msra.mxu0 0.0
    %2561 = vmatprep.subr.mxu0 0.0
    %2562 = vmatpush1.msra.mxu0 0.0
    %2563 = vmatprep.subr.mxu0 0.0
    %2564 = vmatpush1.msra.mxu0 0.0
    %2565 = vmatprep.subr.mxu0 0.0
    %2566 = vmatpush1.msra.mxu0 0.0
    %2567 = vmatprep.subr.mxu0 0.0
    %2568 = vmatpush1.msra.mxu0 0.0
    %2569 = vmatprep.subr.mxu0 0.0
    %2570 = vmatpush1.msra.mxu0 0.0
    %2571 = vmatprep.subr.mxu0 0.0
    %2572 = vmatpush1.msra.mxu0 0.0
    %2573 = vmatprep.subr.mxu0 0.0
    %2574 = vmatpush1.msra.mxu0 0.0
    %2575 = vmatprep.subr.mxu0 0.0
    %2576 = vmatpush1.msra.mxu0 0.0
    %2577 = vmatprep.subr.mxu0 0.0
    %2578 = vmatpush1.msra.mxu0 0.0
    %2579 = vmatprep.subr.mxu0 0.0
    %2580 = vmatpush1.msra.mxu0 0.0
    %2581 = vmatprep.subr.mxu0 0.0
    %2582 = vmatpush1.msra.mxu0 0.0
    %2583 = vmatprep.subr.mxu0 0.0
    %2584 = vmatpush1.msra.mxu0 0.0
    %2585 = vmatprep.subr.mxu0 0.0
    %2586 = vmatpush1.msra.mxu0 %v2550
    %2587 = vmatprep.subr.mxu0 0.0
    %2588 = vmatpush1.msra.mxu0 %v2549
    %2589 = vmatprep.subr.mxu0 0.0
    %2590 = vmatpush2.msra.mxu0 0.0
    %2591 = vmatprep.subr.mxu0 0.0
    %2592 = vmatpush2.msra.mxu0 0.0
    %2593 = vmatprep.subr.mxu0 0.0
    %2594 = vmatpush2.msra.mxu0 0.0
    %2595 = vmatprep.subr.mxu0 0.0
    %2596 = vmatpush2.msra.mxu0 0.0
    %2597 = vmatprep.subr.mxu0 0.0
    %2598 = vmatpush2.msra.mxu0 0.0
    %2599 = vmatprep.subr.mxu0 0.0
    %2600 = vmatpush2.msra.mxu0 0.0
    %2601 = vmatprep.subr.mxu0 0.0
    %2602 = vmatpush2.msra.mxu0 0.0
    %2603 = vmatprep.subr.mxu0 0.0
    %2604 = vmatpush2.msra.mxu0 0.0
    %2605 = vmatprep.subr.mxu0 0.0
    %2606 = vmatpush2.msra.mxu0 0.0
    %2607 = vmatprep.subr.mxu0 0.0
    %2608 = vmatpush2.msra.mxu0 0.0
    %2609 = vmatprep.subr.mxu0 0.0
    %2610 = vmatpush2.msra.mxu0 0.0
    %2611 = vmatprep.subr.mxu0 0.0
    %2612 = vmatpush2.msra.mxu0 0.0
    %2613 = vmatprep.subr.mxu0 0.0
    %2614 = vmatpush2.msra.mxu0 0.0
    %2615 = vmatprep.subr.mxu0 0.0
    %2616 = vmatpush2.msra.mxu0 0.0
    %2617 = vmatprep.subr.mxu0 0.0
    %2618 = vmatpush2.msra.mxu0 0.0
    %2619 = vmatprep.subr.mxu0 0.0
    %2620 = vmatpush2.msra.mxu0 0.0
    %2621 = vmatprep.mubr.f32.mxu0 0.0
    %2622 = vmatmul.mubr.f32.gmra.mxu0 %v2552
    %v2623 = vpop.f32.mrf.mxu0
    %v2624 = vadd.f32 0.0, %v2623
    %v2625 = vpop.f32.mrf.mxu0
    %2626 = vmatprep.mubr.f32.mxu0 0.0
    %2627 = vmatmul.mubr.f32.gmra.mxu0 %v2555
    %v2628 = vpop.f32.mrf.mxu0
    %v2629 = vadd.f32 0.0, %v2628
    %v2630 = vpop.f32.mrf.mxu0
    %2631 = vdwg.mxu0
    %v2633 = vsel %vm30, %v2542, 0
    %v2636 = vsel %vm30, %v2543, 0
    %2638 = vmatprep.subr.mxu0 0.0
    %2639 = vmatpush1.msra.mxu0 0.0
    %2640 = vmatprep.subr.mxu0 0.0
    %2641 = vmatpush1.msra.mxu0 0.0
    %2642 = vmatprep.subr.mxu0 0.0
    %2643 = vmatpush1.msra.mxu0 0.0
    %2644 = vmatprep.subr.mxu0 0.0
    %2645 = vmatpush1.msra.mxu0 0.0
    %2646 = vmatprep.subr.mxu0 0.0
    %2647 = vmatpush1.msra.mxu0 0.0
    %2648 = vmatprep.subr.mxu0 0.0
    %2649 = vmatpush1.msra.mxu0 0.0
    %2650 = vmatprep.subr.mxu0 0.0
    %2651 = vmatpush1.msra.mxu0 0.0
    %2652 = vmatprep.subr.mxu0 0.0
    %2653 = vmatpush1.msra.mxu0 0.0
    %2654 = vmatprep.subr.mxu0 0.0
    %2655 = vmatpush1.msra.mxu0 0.0
    %2656 = vmatprep.subr.mxu0 0.0
    %2657 = vmatpush1.msra.mxu0 0.0
    %2658 = vmatprep.subr.mxu0 0.0
    %2659 = vmatpush1.msra.mxu0 0.0
    %2660 = vmatprep.subr.mxu0 0.0
    %2661 = vmatpush1.msra.mxu0 0.0
    %2662 = vmatprep.subr.mxu0 0.0
    %2663 = vmatpush1.msra.mxu0 0.0
    %2664 = vmatprep.subr.mxu0 0.0
    %2665 = vmatpush1.msra.mxu0 0.0
    %2666 = vmatprep.subr.mxu0 0.0
    %2667 = vmatpush1.msra.mxu0 %v2545
    %2668 = vmatprep.subr.mxu0 0.0
    %2669 = vmatpush1.msra.mxu0 %v2544
    %2670 = vmatprep.subr.mxu0 0.0
    %2671 = vmatpush2.msra.mxu0 0.0
    %2672 = vmatprep.subr.mxu0 0.0
    %2673 = vmatpush2.msra.mxu0 0.0
    %2674 = vmatprep.subr.mxu0 0.0
    %2675 = vmatpush2.msra.mxu0 0.0
    %2676 = vmatprep.subr.mxu0 0.0
    %2677 = vmatpush2.msra.mxu0 0.0
    %2678 = vmatprep.subr.mxu0 0.0
    %2679 = vmatpush2.msra.mxu0 0.0
    %2680 = vmatprep.subr.mxu0 0.0
    %2681 = vmatpush2.msra.mxu0 0.0
    %2682 = vmatprep.subr.mxu0 0.0
    %2683 = vmatpush2.msra.mxu0 0.0
    %2684 = vmatprep.subr.mxu0 0.0
    %2685 = vmatpush2.msra.mxu0 0.0
    %2686 = vmatprep.subr.mxu0 0.0
    %2687 = vmatpush2.msra.mxu0 0.0
    %2688 = vmatprep.subr.mxu0 0.0
    %2689 = vmatpush2.msra.mxu0 0.0
    %2690 = vmatprep.subr.mxu0 0.0
    %2691 = vmatpush2.msra.mxu0 0.0
    %2692 = vmatprep.subr.mxu0 0.0
    %2693 = vmatpush2.msra.mxu0 0.0
    %2694 = vmatprep.subr.mxu0 0.0
    %2695 = vmatpush2.msra.mxu0 0.0
    %2696 = vmatprep.subr.mxu0 0.0
    %2697 = vmatpush2.msra.mxu0 0.0
    %2698 = vmatprep.subr.mxu0 0.0
    %2699 = vmatpush2.msra.mxu0 0.0
    %2700 = vmatprep.subr.mxu0 0.0
    %2701 = vmatpush2.msra.mxu0 0.0
    %2702 = vmatprep.mubr.f32.mxu0 0.0
    %2703 = vmatmul.mubr.f32.gmra.mxu0 %v2633
    %v2704 = vpop.f32.mrf.mxu0
    %v2705 = vadd.f32 %v2624, %v2704
    %v2706 = vpop.f32.mrf.mxu0
    %2707 = vmatprep.mubr.f32.mxu0 0.0
    %2708 = vmatmul.mubr.f32.gmra.mxu0 %v2636
    %v2709 = vpop.f32.mrf.mxu0
    %v2710 = vadd.f32 %v2629, %v2709
    %v2711 = vpop.f32.mrf.mxu0
    %2712 = vdwg.mxu0
    %v2713 = vld [vmem:[#allocation2 + $0x1] sm:$0xff]
    %v2714 = vld [vmem:[#allocation2 + $0x9] sm:$0xff]
    %s2715 = scalar_lea.vmem %s2, 32
    %v2716 = vld [vmem:[%s2715] sm:$0xff]
    %v2717 = vld [vmem:[%s2715 + $0x8] sm:$0xff]
    %v2719 = vsel %vm30, %v2713, 0
    %v2722 = vsel %vm30, %v2714, 0
    %2724 = vmatprep.subr.mxu0 0.0
    %2725 = vmatpush1.msra.mxu0 0.0
    %2726 = vmatprep.subr.mxu0 0.0
    %2727 = vmatpush1.msra.mxu0 0.0
    %2728 = vmatprep.subr.mxu0 0.0
    %2729 = vmatpush1.msra.mxu0 0.0
    %2730 = vmatprep.subr.mxu0 0.0
    %2731 = vmatpush1.msra.mxu0 0.0
    %2732 = vmatprep.subr.mxu0 0.0
    %2733 = vmatpush1.msra.mxu0 0.0
    %2734 = vmatprep.subr.mxu0 0.0
    %2735 = vmatpush1.msra.mxu0 0.0
    %2736 = vmatprep.subr.mxu0 0.0
    %2737 = vmatpush1.msra.mxu0 0.0
    %2738 = vmatprep.subr.mxu0 0.0
    %2739 = vmatpush1.msra.mxu0 0.0
    %2740 = vmatprep.subr.mxu0 0.0
    %2741 = vmatpush1.msra.mxu0 0.0
    %2742 = vmatprep.subr.mxu0 0.0
    %2743 = vmatpush1.msra.mxu0 0.0
    %2744 = vmatprep.subr.mxu0 0.0
    %2745 = vmatpush1.msra.mxu0 0.0
    %2746 = vmatprep.subr.mxu0 0.0
    %2747 = vmatpush1.msra.mxu0 0.0
    %2748 = vmatprep.subr.mxu0 0.0
    %2749 = vmatpush1.msra.mxu0 0.0
    %2750 = vmatprep.subr.mxu0 0.0
    %2751 = vmatpush1.msra.mxu0 0.0
    %2752 = vmatprep.subr.mxu0 0.0
    %2753 = vmatpush1.msra.mxu0 %v2717
    %2754 = vmatprep.subr.mxu0 0.0
    %2755 = vmatpush1.msra.mxu0 %v2716
    %2756 = vmatprep.subr.mxu0 0.0
    %2757 = vmatpush2.msra.mxu0 0.0
    %2758 = vmatprep.subr.mxu0 0.0
    %2759 = vmatpush2.msra.mxu0 0.0
    %2760 = vmatprep.subr.mxu0 0.0
    %2761 = vmatpush2.msra.mxu0 0.0
    %2762 = vmatprep.subr.mxu0 0.0
    %2763 = vmatpush2.msra.mxu0 0.0
    %2764 = vmatprep.subr.mxu0 0.0
    %2765 = vmatpush2.msra.mxu0 0.0
    %2766 = vmatprep.subr.mxu0 0.0
    %2767 = vmatpush2.msra.mxu0 0.0
    %2768 = vmatprep.subr.mxu0 0.0
    %2769 = vmatpush2.msra.mxu0 0.0
    %2770 = vmatprep.subr.mxu0 0.0
    %2771 = vmatpush2.msra.mxu0 0.0
    %2772 = vmatprep.subr.mxu0 0.0
    %2773 = vmatpush2.msra.mxu0 0.0
    %2774 = vmatprep.subr.mxu0 0.0
    %2775 = vmatpush2.msra.mxu0 0.0
    %2776 = vmatprep.subr.mxu0 0.0
    %2777 = vmatpush2.msra.mxu0 0.0
    %2778 = vmatprep.subr.mxu0 0.0
    %2779 = vmatpush2.msra.mxu0 0.0
    %2780 = vmatprep.subr.mxu0 0.0
    %2781 = vmatpush2.msra.mxu0 0.0
    %2782 = vmatprep.subr.mxu0 0.0
    %2783 = vmatpush2.msra.mxu0 0.0
    %2784 = vmatprep.subr.mxu0 0.0
    %2785 = vmatpush2.msra.mxu0 0.0
    %2786 = vmatprep.subr.mxu0 0.0
    %2787 = vmatpush2.msra.mxu0 0.0
    %2788 = vmatprep.mubr.f32.mxu0 0.0
    %2789 = vmatmul.mubr.f32.gmra.mxu0 %v2719
    %v2790 = vpop.f32.mrf.mxu0
    %v2791 = vadd.f32 0.0, %v2790
    %v2792 = vpop.f32.mrf.mxu0
    %2793 = vmatprep.mubr.f32.mxu0 0.0
    %2794 = vmatmul.mubr.f32.gmra.mxu0 %v2722
    %v2795 = vpop.f32.mrf.mxu0
    %v2796 = vadd.f32 0.0, %v2795
    %v2797 = vpop.f32.mrf.mxu0
    %2798 = vdwg.mxu0
    %v2799 = vadd.f32 %v2705, %v2791
    %v2800 = vadd.f32 %v2710, %v2796
    %v2801 = vld [vmem:[%s2497 + $0x1] sm:$0xff]
    %v2802 = vld [vmem:[%s2497 + $0x9] sm:$0xff]
    %s2803 = scalar_lea.vmem %s2, 48
    %v2804 = vld [vmem:[%s2803] sm:$0xff]
    %v2805 = vld [vmem:[%s2803 + $0x8] sm:$0xff]
    %v2807 = vsel %vm30, %v2801, 0
    %v2810 = vsel %vm30, %v2802, 0
    %2812 = vmatprep.subr.mxu0 0.0
    %2813 = vmatpush1.msra.mxu0 0.0
    %2814 = vmatprep.subr.mxu0 0.0
    %2815 = vmatpush1.msra.mxu0 0.0
    %2816 = vmatprep.subr.mxu0 0.0
    %2817 = vmatpush1.msra.mxu0 0.0
    %2818 = vmatprep.subr.mxu0 0.0
    %2819 = vmatpush1.msra.mxu0 0.0
    %2820 = vmatprep.subr.mxu0 0.0
    %2821 = vmatpush1.msra.mxu0 0.0
    %2822 = vmatprep.subr.mxu0 0.0
    %2823 = vmatpush1.msra.mxu0 0.0
    %2824 = vmatprep.subr.mxu0 0.0
    %2825 = vmatpush1.msra.mxu0 0.0
    %2826 = vmatprep.subr.mxu0 0.0
    %2827 = vmatpush1.msra.mxu0 0.0
    %2828 = vmatprep.subr.mxu0 0.0
    %2829 = vmatpush1.msra.mxu0 0.0
    %2830 = vmatprep.subr.mxu0 0.0
    %2831 = vmatpush1.msra.mxu0 0.0
    %2832 = vmatprep.subr.mxu0 0.0
    %2833 = vmatpush1.msra.mxu0 0.0
    %2834 = vmatprep.subr.mxu0 0.0
    %2835 = vmatpush1.msra.mxu0 0.0
    %2836 = vmatprep.subr.mxu0 0.0
    %2837 = vmatpush1.msra.mxu0 0.0
    %2838 = vmatprep.subr.mxu0 0.0
    %2839 = vmatpush1.msra.mxu0 0.0
    %2840 = vmatprep.subr.mxu0 0.0
    %2841 = vmatpush1.msra.mxu0 %v2805
    %2842 = vmatprep.subr.mxu0 0.0
    %2843 = vmatpush1.msra.mxu0 %v2804
    %2844 = vmatprep.subr.mxu0 0.0
    %2845 = vmatpush2.msra.mxu0 0.0
    %2846 = vmatprep.subr.mxu0 0.0
    %2847 = vmatpush2.msra.mxu0 0.0
    %2848 = vmatprep.subr.mxu0 0.0
    %2849 = vmatpush2.msra.mxu0 0.0
    %2850 = vmatprep.subr.mxu0 0.0
    %2851 = vmatpush2.msra.mxu0 0.0
    %2852 = vmatprep.subr.mxu0 0.0
    %2853 = vmatpush2.msra.mxu0 0.0
    %2854 = vmatprep.subr.mxu0 0.0
    %2855 = vmatpush2.msra.mxu0 0.0
    %2856 = vmatprep.subr.mxu0 0.0
    %2857 = vmatpush2.msra.mxu0 0.0
    %2858 = vmatprep.subr.mxu0 0.0
    %2859 = vmatpush2.msra.mxu0 0.0
    %2860 = vmatprep.subr.mxu0 0.0
    %2861 = vmatpush2.msra.mxu0 0.0
    %2862 = vmatprep.subr.mxu0 0.0
    %2863 = vmatpush2.msra.mxu0 0.0
    %2864 = vmatprep.subr.mxu0 0.0
    %2865 = vmatpush2.msra.mxu0 0.0
    %2866 = vmatprep.subr.mxu0 0.0
    %2867 = vmatpush2.msra.mxu0 0.0
    %2868 = vmatprep.subr.mxu0 0.0
    %2869 = vmatpush2.msra.mxu0 0.0
    %2870 = vmatprep.subr.mxu0 0.0
    %2871 = vmatpush2.msra.mxu0 0.0
    %2872 = vmatprep.subr.mxu0 0.0
    %2873 = vmatpush2.msra.mxu0 0.0
    %2874 = vmatprep.subr.mxu0 0.0
    %2875 = vmatpush2.msra.mxu0 0.0
    %2876 = vmatprep.mubr.f32.mxu0 0.0
    %2877 = vmatmul.mubr.f32.gmra.mxu0 %v2807
    %v2878 = vpop.f32.mrf.mxu0
    %v2879 = vadd.f32 0.0, %v2878
    %v2880 = vpop.f32.mrf.mxu0
    %2881 = vmatprep.mubr.f32.mxu0 0.0
    %2882 = vmatmul.mubr.f32.gmra.mxu0 %v2810
    %v2883 = vpop.f32.mrf.mxu0
    %v2884 = vadd.f32 0.0, %v2883
    %v2885 = vpop.f32.mrf.mxu0
    %2886 = vdwg.mxu0
    %v2887 = vadd.f32 %v2799, %v2879
    %v2888 = vadd.f32 %v2800, %v2884
    %v2889 = vld [vmem:[#allocation2 + $0x2] sm:$0xff]
    %v2890 = vld [vmem:[#allocation2 + $0xa] sm:$0xff]
    %s2891 = scalar_lea.vmem %s2, 64
    %v2892 = vld [vmem:[%s2891] sm:$0xff]
    %v2893 = vld [vmem:[%s2891 + $0x8] sm:$0xff]
    %v2895 = vsel %vm30, %v2889, 0
    %v2898 = vsel %vm30, %v2890, 0
    %2900 = vmatprep.subr.mxu0 0.0
    %2901 = vmatpush1.msra.mxu0 0.0
    %2902 = vmatprep.subr.mxu0 0.0
    %2903 = vmatpush1.msra.mxu0 0.0
    %2904 = vmatprep.subr.mxu0 0.0
    %2905 = vmatpush1.msra.mxu0 0.0
    %2906 = vmatprep.subr.mxu0 0.0
    %2907 = vmatpush1.msra.mxu0 0.0
    %2908 = vmatprep.subr.mxu0 0.0
    %2909 = vmatpush1.msra.mxu0 0.0
    %2910 = vmatprep.subr.mxu0 0.0
    %2911 = vmatpush1.msra.mxu0 0.0
    %2912 = vmatprep.subr.mxu0 0.0
    %2913 = vmatpush1.msra.mxu0 0.0
    %2914 = vmatprep.subr.mxu0 0.0
    %2915 = vmatpush1.msra.mxu0 0.0
    %2916 = vmatprep.subr.mxu0 0.0
    %2917 = vmatpush1.msra.mxu0 0.0
    %2918 = vmatprep.subr.mxu0 0.0
    %2919 = vmatpush1.msra.mxu0 0.0
    %2920 = vmatprep.subr.mxu0 0.0
    %2921 = vmatpush1.msra.mxu0 0.0
    %2922 = vmatprep.subr.mxu0 0.0
    %2923 = vmatpush1.msra.mxu0 0.0
    %2924 = vmatprep.subr.mxu0 0.0
    %2925 = vmatpush1.msra.mxu0 0.0
    %2926 = vmatprep.subr.mxu0 0.0
    %2927 = vmatpush1.msra.mxu0 0.0
    %2928 = vmatprep.subr.mxu0 0.0
    %2929 = vmatpush1.msra.mxu0 %v2893
    %2930 = vmatprep.subr.mxu0 0.0
    %2931 = vmatpush1.msra.mxu0 %v2892
    %2932 = vmatprep.subr.mxu0 0.0
    %2933 = vmatpush2.msra.mxu0 0.0
    %2934 = vmatprep.subr.mxu0 0.0
    %2935 = vmatpush2.msra.mxu0 0.0
    %2936 = vmatprep.subr.mxu0 0.0
    %2937 = vmatpush2.msra.mxu0 0.0
    %2938 = vmatprep.subr.mxu0 0.0
    %2939 = vmatpush2.msra.mxu0 0.0
    %2940 = vmatprep.subr.mxu0 0.0
    %2941 = vmatpush2.msra.mxu0 0.0
    %2942 = vmatprep.subr.mxu0 0.0
    %2943 = vmatpush2.msra.mxu0 0.0
    %2944 = vmatprep.subr.mxu0 0.0
    %2945 = vmatpush2.msra.mxu0 0.0
    %2946 = vmatprep.subr.mxu0 0.0
    %2947 = vmatpush2.msra.mxu0 0.0
    %2948 = vmatprep.subr.mxu0 0.0
    %2949 = vmatpush2.msra.mxu0 0.0
    %2950 = vmatprep.subr.mxu0 0.0
    %2951 = vmatpush2.msra.mxu0 0.0
    %2952 = vmatprep.subr.mxu0 0.0
    %2953 = vmatpush2.msra.mxu0 0.0
    %2954 = vmatprep.subr.mxu0 0.0
    %2955 = vmatpush2.msra.mxu0 0.0
    %2956 = vmatprep.subr.mxu0 0.0
    %2957 = vmatpush2.msra.mxu0 0.0
    %2958 = vmatprep.subr.mxu0 0.0
    %2959 = vmatpush2.msra.mxu0 0.0
    %2960 = vmatprep.subr.mxu0 0.0
    %2961 = vmatpush2.msra.mxu0 0.0
    %2962 = vmatprep.subr.mxu0 0.0
    %2963 = vmatpush2.msra.mxu0 0.0
    %2964 = vmatprep.mubr.f32.mxu0 0.0
    %2965 = vmatmul.mubr.f32.gmra.mxu0 %v2895
    %v2966 = vpop.f32.mrf.mxu0
    %v2967 = vadd.f32 0.0, %v2966
    %v2968 = vpop.f32.mrf.mxu0
    %2969 = vmatprep.mubr.f32.mxu0 0.0
    %2970 = vmatmul.mubr.f32.gmra.mxu0 %v2898
    %v2971 = vpop.f32.mrf.mxu0
    %v2972 = vadd.f32 0.0, %v2971
    %v2973 = vpop.f32.mrf.mxu0
    %2974 = vdwg.mxu0
    %v2975 = vadd.f32 %v2887, %v2967
    %v2976 = vadd.f32 %v2888, %v2972
    %vm2977 = vcmask 261120
    %v2978 = vsel %vm2977, %v2975, 0.0
    %v2979 = vsel %vm2977, %v2976, 0.0
    %v2980 = vadd.f32 %v2978, %v2979
    %v2981 = vrot.slane %v2980, 4
    %v2982 = vadd.f32 %v2980, %v2981
    %v2983 = vrot.slane %v2982, 2
    %v2984 = vadd.f32 %v2982, %v2983
    %v2985 = vrot.slane %v2984, 1
    %v2986 = vadd.f32 %v2984, %v2985
    %v2987 = vadd.f32 %v2986, 0.0
    %v2988 = vmul.f32 %v2975, %v2975
    %v2989 = vmul.f32 %v2976, %v2976
    %v2990 = vsel %vm2977, %v2988, 0.0
    %v2991 = vsel %vm2977, %v2989, 0.0
    %v2992 = vadd.f32 %v2990, %v2991
    %v2993 = vrot.slane %v2992, 4
    %v2994 = vadd.f32 %v2992, %v2993
    %v2995 = vrot.slane %v2994, 2
    %v2996 = vadd.f32 %v2994, %v2995
    %v2997 = vrot.slane %v2996, 1
    %v2998 = vadd.f32 %v2996, %v2997
    %v2999 = vadd.f32 %v2998, 0.0
    %v3000 = vld [vmem:[%s2518] sm:$0xff]
    %v3001 = vld [vmem:[%s2518 + $0x8] sm:$0xff]
    %v3002 = vld [vmem:[%s2539] sm:$0xff]
    %v3003 = vld [vmem:[%s2539 + $0x8] sm:$0xff]
    %v3005 = vsel %vm30, %v3002, 0
    %v3008 = vsel %vm30, %v3003, 0
    %3010 = vmatprep.subr.mxu0 0.0
    %3011 = vmatpush1.msra.mxu0 0.0
    %3012 = vmatprep.subr.mxu0 0.0
    %3013 = vmatpush1.msra.mxu0 0.0
    %3014 = vmatprep.subr.mxu0 0.0
    %3015 = vmatpush1.msra.mxu0 0.0
    %3016 = vmatprep.subr.mxu0 0.0
    %3017 = vmatpush1.msra.mxu0 0.0
    %3018 = vmatprep.subr.mxu0 0.0
    %3019 = vmatpush1.msra.mxu0 0.0
    %3020 = vmatprep.subr.mxu0 0.0
    %3021 = vmatpush1.msra.mxu0 0.0
    %3022 = vmatprep.subr.mxu0 0.0
    %3023 = vmatpush1.msra.mxu0 0.0
    %3024 = vmatprep.subr.mxu0 0.0
    %3025 = vmatpush1.msra.mxu0 0.0
    %3026 = vmatprep.subr.mxu0 0.0
    %3027 = vmatpush1.msra.mxu0 0.0
    %3028 = vmatprep.subr.mxu0 0.0
    %3029 = vmatpush1.msra.mxu0 0.0
    %3030 = vmatprep.subr.mxu0 0.0
    %3031 = vmatpush1.msra.mxu0 0.0
    %3032 = vmatprep.subr.mxu0 0.0
    %3033 = vmatpush1.msra.mxu0 0.0
    %3034 = vmatprep.subr.mxu0 0.0
    %3035 = vmatpush1.msra.mxu0 0.0
    %3036 = vmatprep.subr.mxu0 0.0
    %3037 = vmatpush1.msra.mxu0 0.0
    %3038 = vmatprep.subr.mxu0 0.0
    %3039 = vmatpush1.msra.mxu0 %v2550
    %3040 = vmatprep.subr.mxu0 0.0
    %3041 = vmatpush1.msra.mxu0 %v2549
    %3042 = vmatprep.subr.mxu0 0.0
    %3043 = vmatpush2.msra.mxu0 0.0
    %3044 = vmatprep.subr.mxu0 0.0
    %3045 = vmatpush2.msra.mxu0 0.0
    %3046 = vmatprep.subr.mxu0 0.0
    %3047 = vmatpush2.msra.mxu0 0.0
    %3048 = vmatprep.subr.mxu0 0.0
    %3049 = vmatpush2.msra.mxu0 0.0
    %3050 = vmatprep.subr.mxu0 0.0
    %3051 = vmatpush2.msra.mxu0 0.0
    %3052 = vmatprep.subr.mxu0 0.0
    %3053 = vmatpush2.msra.mxu0 0.0
    %3054 = vmatprep.subr.mxu0 0.0
    %3055 = vmatpush2.msra.mxu0 0.0
    %3056 = vmatprep.subr.mxu0 0.0
    %3057 = vmatpush2.msra.mxu0 0.0
    %3058 = vmatprep.subr.mxu0 0.0
    %3059 = vmatpush2.msra.mxu0 0.0
    %3060 = vmatprep.subr.mxu0 0.0
    %3061 = vmatpush2.msra.mxu0 0.0
    %3062 = vmatprep.subr.mxu0 0.0
    %3063 = vmatpush2.msra.mxu0 0.0
    %3064 = vmatprep.subr.mxu0 0.0
    %3065 = vmatpush2.msra.mxu0 0.0
    %3066 = vmatprep.subr.mxu0 0.0
    %3067 = vmatpush2.msra.mxu0 0.0
    %3068 = vmatprep.subr.mxu0 0.0
    %3069 = vmatpush2.msra.mxu0 0.0
    %3070 = vmatprep.subr.mxu0 0.0
    %3071 = vmatpush2.msra.mxu0 0.0
    %3072 = vmatprep.subr.mxu0 0.0
    %3073 = vmatpush2.msra.mxu0 0.0
    %3074 = vmatprep.mubr.f32.mxu0 0.0
    %3075 = vmatmul.mubr.f32.gmra.mxu0 %v3005
    %v3076 = vpop.f32.mrf.mxu0
    %v3077 = vadd.f32 0.0, %v3076
    %v3078 = vpop.f32.mrf.mxu0
    %3079 = vmatprep.mubr.f32.mxu0 0.0
    %3080 = vmatmul.mubr.f32.gmra.mxu0 %v3008
    %v3081 = vpop.f32.mrf.mxu0
    %v3082 = vadd.f32 0.0, %v3081
    %v3083 = vpop.f32.mrf.mxu0
    %3084 = vdwg.mxu0
    %v3086 = vsel %vm30, %v3000, 0
    %v3089 = vsel %vm30, %v3001, 0
    %3091 = vmatprep.subr.mxu0 0.0
    %3092 = vmatpush1.msra.mxu0 0.0
    %3093 = vmatprep.subr.mxu0 0.0
    %3094 = vmatpush1.msra.mxu0 0.0
    %3095 = vmatprep.subr.mxu0 0.0
    %3096 = vmatpush1.msra.mxu0 0.0
    %3097 = vmatprep.subr.mxu0 0.0
    %3098 = vmatpush1.msra.mxu0 0.0
    %3099 = vmatprep.subr.mxu0 0.0
    %3100 = vmatpush1.msra.mxu0 0.0
    %3101 = vmatprep.subr.mxu0 0.0
    %3102 = vmatpush1.msra.mxu0 0.0
    %3103 = vmatprep.subr.mxu0 0.0
    %3104 = vmatpush1.msra.mxu0 0.0
    %3105 = vmatprep.subr.mxu0 0.0
    %3106 = vmatpush1.msra.mxu0 0.0
    %3107 = vmatprep.subr.mxu0 0.0
    %3108 = vmatpush1.msra.mxu0 0.0
    %3109 = vmatprep.subr.mxu0 0.0
    %3110 = vmatpush1.msra.mxu0 0.0
    %3111 = vmatprep.subr.mxu0 0.0
    %3112 = vmatpush1.msra.mxu0 0.0
    %3113 = vmatprep.subr.mxu0 0.0
    %3114 = vmatpush1.msra.mxu0 0.0
    %3115 = vmatprep.subr.mxu0 0.0
    %3116 = vmatpush1.msra.mxu0 0.0
    %3117 = vmatprep.subr.mxu0 0.0
    %3118 = vmatpush1.msra.mxu0 0.0
    %3119 = vmatprep.subr.mxu0 0.0
    %3120 = vmatpush1.msra.mxu0 %v2545
    %3121 = vmatprep.subr.mxu0 0.0
    %3122 = vmatpush1.msra.mxu0 %v2544
    %3123 = vmatprep.subr.mxu0 0.0
    %3124 = vmatpush2.msra.mxu0 0.0
    %3125 = vmatprep.subr.mxu0 0.0
    %3126 = vmatpush2.msra.mxu0 0.0
    %3127 = vmatprep.subr.mxu0 0.0
    %3128 = vmatpush2.msra.mxu0 0.0
    %3129 = vmatprep.subr.mxu0 0.0
    %3130 = vmatpush2.msra.mxu0 0.0
    %3131 = vmatprep.subr.mxu0 0.0
    %3132 = vmatpush2.msra.mxu0 0.0
    %3133 = vmatprep.subr.mxu0 0.0
    %3134 = vmatpush2.msra.mxu0 0.0
    %3135 = vmatprep.subr.mxu0 0.0
    %3136 = vmatpush2.msra.mxu0 0.0
    %3137 = vmatprep.subr.mxu0 0.0
    %3138 = vmatpush2.msra.mxu0 0.0
    %3139 = vmatprep.subr.mxu0 0.0
    %3140 = vmatpush2.msra.mxu0 0.0
    %3141 = vmatprep.subr.mxu0 0.0
    %3142 = vmatpush2.msra.mxu0 0.0
    %3143 = vmatprep.subr.mxu0 0.0
    %3144 = vmatpush2.msra.mxu0 0.0
    %3145 = vmatprep.subr.mxu0 0.0
    %3146 = vmatpush2.msra.mxu0 0.0
    %3147 = vmatprep.subr.mxu0 0.0
    %3148 = vmatpush2.msra.mxu0 0.0
    %3149 = vmatprep.subr.mxu0 0.0
    %3150 = vmatpush2.msra.mxu0 0.0
    %3151 = vmatprep.subr.mxu0 0.0
    %3152 = vmatpush2.msra.mxu0 0.0
    %3153 = vmatprep.subr.mxu0 0.0
    %3154 = vmatpush2.msra.mxu0 0.0
    %3155 = vmatprep.mubr.f32.mxu0 0.0
    %3156 = vmatmul.mubr.f32.gmra.mxu0 %v3086
    %v3157 = vpop.f32.mrf.mxu0
    %v3158 = vadd.f32 %v3077, %v3157
    %v3159 = vpop.f32.mrf.mxu0
    %3160 = vmatprep.mubr.f32.mxu0 0.0
    %3161 = vmatmul.mubr.f32.gmra.mxu0 %v3089
    %v3162 = vpop.f32.mrf.mxu0
    %v3163 = vadd.f32 %v3082, %v3162
    %v3164 = vpop.f32.mrf.mxu0
    %3165 = vdwg.mxu0
    %v3166 = vld [vmem:[%s2518 + $0x1] sm:$0xff]
    %v3167 = vld [vmem:[%s2518 + $0x9] sm:$0xff]
    %v3169 = vsel %vm30, %v3166, 0
    %v3172 = vsel %vm30, %v3167, 0
    %3174 = vmatprep.subr.mxu0 0.0
    %3175 = vmatpush1.msra.mxu0 0.0
    %3176 = vmatprep.subr.mxu0 0.0
    %3177 = vmatpush1.msra.mxu0 0.0
    %3178 = vmatprep.subr.mxu0 0.0
    %3179 = vmatpush1.msra.mxu0 0.0
    %3180 = vmatprep.subr.mxu0 0.0
    %3181 = vmatpush1.msra.mxu0 0.0
    %3182 = vmatprep.subr.mxu0 0.0
    %3183 = vmatpush1.msra.mxu0 0.0
    %3184 = vmatprep.subr.mxu0 0.0
    %3185 = vmatpush1.msra.mxu0 0.0
    %3186 = vmatprep.subr.mxu0 0.0
    %3187 = vmatpush1.msra.mxu0 0.0
    %3188 = vmatprep.subr.mxu0 0.0
    %3189 = vmatpush1.msra.mxu0 0.0
    %3190 = vmatprep.subr.mxu0 0.0
    %3191 = vmatpush1.msra.mxu0 0.0
    %3192 = vmatprep.subr.mxu0 0.0
    %3193 = vmatpush1.msra.mxu0 0.0
    %3194 = vmatprep.subr.mxu0 0.0
    %3195 = vmatpush1.msra.mxu0 0.0
    %3196 = vmatprep.subr.mxu0 0.0
    %3197 = vmatpush1.msra.mxu0 0.0
    %3198 = vmatprep.subr.mxu0 0.0
    %3199 = vmatpush1.msra.mxu0 0.0
    %3200 = vmatprep.subr.mxu0 0.0
    %3201 = vmatpush1.msra.mxu0 0.0
    %3202 = vmatprep.subr.mxu0 0.0
    %3203 = vmatpush1.msra.mxu0 %v2717
    %3204 = vmatprep.subr.mxu0 0.0
    %3205 = vmatpush1.msra.mxu0 %v2716
    %3206 = vmatprep.subr.mxu0 0.0
    %3207 = vmatpush2.msra.mxu0 0.0
    %3208 = vmatprep.subr.mxu0 0.0
    %3209 = vmatpush2.msra.mxu0 0.0
    %3210 = vmatprep.subr.mxu0 0.0
    %3211 = vmatpush2.msra.mxu0 0.0
    %3212 = vmatprep.subr.mxu0 0.0
    %3213 = vmatpush2.msra.mxu0 0.0
    %3214 = vmatprep.subr.mxu0 0.0
    %3215 = vmatpush2.msra.mxu0 0.0
    %3216 = vmatprep.subr.mxu0 0.0
    %3217 = vmatpush2.msra.mxu0 0.0
    %3218 = vmatprep.subr.mxu0 0.0
    %3219 = vmatpush2.msra.mxu0 0.0
    %3220 = vmatprep.subr.mxu0 0.0
    %3221 = vmatpush2.msra.mxu0 0.0
    %3222 = vmatprep.subr.mxu0 0.0
    %3223 = vmatpush2.msra.mxu0 0.0
    %3224 = vmatprep.subr.mxu0 0.0
    %3225 = vmatpush2.msra.mxu0 0.0
    %3226 = vmatprep.subr.mxu0 0.0
    %3227 = vmatpush2.msra.mxu0 0.0
    %3228 = vmatprep.subr.mxu0 0.0
    %3229 = vmatpush2.msra.mxu0 0.0
    %3230 = vmatprep.subr.mxu0 0.0
    %3231 = vmatpush2.msra.mxu0 0.0
    %3232 = vmatprep.subr.mxu0 0.0
    %3233 = vmatpush2.msra.mxu0 0.0
    %3234 = vmatprep.subr.mxu0 0.0
    %3235 = vmatpush2.msra.mxu0 0.0
    %3236 = vmatprep.subr.mxu0 0.0
    %3237 = vmatpush2.msra.mxu0 0.0
    %3238 = vmatprep.mubr.f32.mxu0 0.0
    %3239 = vmatmul.mubr.f32.gmra.mxu0 %v3169
    %v3240 = vpop.f32.mrf.mxu0
    %v3241 = vadd.f32 0.0, %v3240
    %v3242 = vpop.f32.mrf.mxu0
    %3243 = vmatprep.mubr.f32.mxu0 0.0
    %3244 = vmatmul.mubr.f32.gmra.mxu0 %v3172
    %v3245 = vpop.f32.mrf.mxu0
    %v3246 = vadd.f32 0.0, %v3245
    %v3247 = vpop.f32.mrf.mxu0
    %3248 = vdwg.mxu0
    %v3249 = vadd.f32 %v3158, %v3241
    %v3250 = vadd.f32 %v3163, %v3246
    %v3251 = vld [vmem:[%s2539 + $0x1] sm:$0xff]
    %v3252 = vld [vmem:[%s2539 + $0x9] sm:$0xff]
    %v3254 = vsel %vm30, %v3251, 0
    %v3257 = vsel %vm30, %v3252, 0
    %3259 = vmatprep.subr.mxu0 0.0
    %3260 = vmatpush1.msra.mxu0 0.0
    %3261 = vmatprep.subr.mxu0 0.0
    %3262 = vmatpush1.msra.mxu0 0.0
    %3263 = vmatprep.subr.mxu0 0.0
    %3264 = vmatpush1.msra.mxu0 0.0
    %3265 = vmatprep.subr.mxu0 0.0
    %3266 = vmatpush1.msra.mxu0 0.0
    %3267 = vmatprep.subr.mxu0 0.0
    %3268 = vmatpush1.msra.mxu0 0.0
    %3269 = vmatprep.subr.mxu0 0.0
    %3270 = vmatpush1.msra.mxu0 0.0
    %3271 = vmatprep.subr.mxu0 0.0
    %3272 = vmatpush1.msra.mxu0 0.0
    %3273 = vmatprep.subr.mxu0 0.0
    %3274 = vmatpush1.msra.mxu0 0.0
    %3275 = vmatprep.subr.mxu0 0.0
    %3276 = vmatpush1.msra.mxu0 0.0
    %3277 = vmatprep.subr.mxu0 0.0
    %3278 = vmatpush1.msra.mxu0 0.0
    %3279 = vmatprep.subr.mxu0 0.0
    %3280 = vmatpush1.msra.mxu0 0.0
    %3281 = vmatprep.subr.mxu0 0.0
    %3282 = vmatpush1.msra.mxu0 0.0
    %3283 = vmatprep.subr.mxu0 0.0
    %3284 = vmatpush1.msra.mxu0 0.0
    %3285 = vmatprep.subr.mxu0 0.0
    %3286 = vmatpush1.msra.mxu0 0.0
    %3287 = vmatprep.subr.mxu0 0.0
    %3288 = vmatpush1.msra.mxu0 %v2805
    %3289 = vmatprep.subr.mxu0 0.0
    %3290 = vmatpush1.msra.mxu0 %v2804
    %3291 = vmatprep.subr.mxu0 0.0
    %3292 = vmatpush2.msra.mxu0 0.0
    %3293 = vmatprep.subr.mxu0 0.0
    %3294 = vmatpush2.msra.mxu0 0.0
    %3295 = vmatprep.subr.mxu0 0.0
    %3296 = vmatpush2.msra.mxu0 0.0
    %3297 = vmatprep.subr.mxu0 0.0
    %3298 = vmatpush2.msra.mxu0 0.0
    %3299 = vmatprep.subr.mxu0 0.0
    %3300 = vmatpush2.msra.mxu0 0.0
    %3301 = vmatprep.subr.mxu0 0.0
    %3302 = vmatpush2.msra.mxu0 0.0
    %3303 = vmatprep.subr.mxu0 0.0
    %3304 = vmatpush2.msra.mxu0 0.0
    %3305 = vmatprep.subr.mxu0 0.0
    %3306 = vmatpush2.msra.mxu0 0.0
    %3307 = vmatprep.subr.mxu0 0.0
    %3308 = vmatpush2.msra.mxu0 0.0
    %3309 = vmatprep.subr.mxu0 0.0
    %3310 = vmatpush2.msra.mxu0 0.0
    %3311 = vmatprep.subr.mxu0 0.0
    %3312 = vmatpush2.msra.mxu0 0.0
    %3313 = vmatprep.subr.mxu0 0.0
    %3314 = vmatpush2.msra.mxu0 0.0
    %3315 = vmatprep.subr.mxu0 0.0
    %3316 = vmatpush2.msra.mxu0 0.0
    %3317 = vmatprep.subr.mxu0 0.0
    %3318 = vmatpush2.msra.mxu0 0.0
    %3319 = vmatprep.subr.mxu0 0.0
    %3320 = vmatpush2.msra.mxu0 0.0
    %3321 = vmatprep.subr.mxu0 0.0
    %3322 = vmatpush2.msra.mxu0 0.0
    %3323 = vmatprep.mubr.f32.mxu0 0.0
    %3324 = vmatmul.mubr.f32.gmra.mxu0 %v3254
    %v3325 = vpop.f32.mrf.mxu0
    %v3326 = vadd.f32 0.0, %v3325
    %v3327 = vpop.f32.mrf.mxu0
    %3328 = vmatprep.mubr.f32.mxu0 0.0
    %3329 = vmatmul.mubr.f32.gmra.mxu0 %v3257
    %v3330 = vpop.f32.mrf.mxu0
    %v3331 = vadd.f32 0.0, %v3330
    %v3332 = vpop.f32.mrf.mxu0
    %3333 = vdwg.mxu0
    %v3334 = vadd.f32 %v3249, %v3326
    %v3335 = vadd.f32 %v3250, %v3331
    %v3336 = vld [vmem:[%s2518 + $0x2] sm:$0xff]
    %v3337 = vld [vmem:[%s2518 + $0xa] sm:$0xff]
    %v3339 = vsel %vm30, %v3336, 0
    %v3342 = vsel %vm30, %v3337, 0
    %3344 = vmatprep.subr.mxu0 0.0
    %3345 = vmatpush1.msra.mxu0 0.0
    %3346 = vmatprep.subr.mxu0 0.0
    %3347 = vmatpush1.msra.mxu0 0.0
    %3348 = vmatprep.subr.mxu0 0.0
    %3349 = vmatpush1.msra.mxu0 0.0
    %3350 = vmatprep.subr.mxu0 0.0
    %3351 = vmatpush1.msra.mxu0 0.0
    %3352 = vmatprep.subr.mxu0 0.0
    %3353 = vmatpush1.msra.mxu0 0.0
    %3354 = vmatprep.subr.mxu0 0.0
    %3355 = vmatpush1.msra.mxu0 0.0
    %3356 = vmatprep.subr.mxu0 0.0
    %3357 = vmatpush1.msra.mxu0 0.0
    %3358 = vmatprep.subr.mxu0 0.0
    %3359 = vmatpush1.msra.mxu0 0.0
    %3360 = vmatprep.subr.mxu0 0.0
    %3361 = vmatpush1.msra.mxu0 0.0
    %3362 = vmatprep.subr.mxu0 0.0
    %3363 = vmatpush1.msra.mxu0 0.0
    %3364 = vmatprep.subr.mxu0 0.0
    %3365 = vmatpush1.msra.mxu0 0.0
    %3366 = vmatprep.subr.mxu0 0.0
    %3367 = vmatpush1.msra.mxu0 0.0
    %3368 = vmatprep.subr.mxu0 0.0
    %3369 = vmatpush1.msra.mxu0 0.0
    %3370 = vmatprep.subr.mxu0 0.0
    %3371 = vmatpush1.msra.mxu0 0.0
    %3372 = vmatprep.subr.mxu0 0.0
    %3373 = vmatpush1.msra.mxu0 %v2893
    %3374 = vmatprep.subr.mxu0 0.0
    %3375 = vmatpush1.msra.mxu0 %v2892
    %3376 = vmatprep.subr.mxu0 0.0
    %3377 = vmatpush2.msra.mxu0 0.0
    %3378 = vmatprep.subr.mxu0 0.0
    %3379 = vmatpush2.msra.mxu0 0.0
    %3380 = vmatprep.subr.mxu0 0.0
    %3381 = vmatpush2.msra.mxu0 0.0
    %3382 = vmatprep.subr.mxu0 0.0
    %3383 = vmatpush2.msra.mxu0 0.0
    %3384 = vmatprep.subr.mxu0 0.0
    %3385 = vmatpush2.msra.mxu0 0.0
    %3386 = vmatprep.subr.mxu0 0.0
    %3387 = vmatpush2.msra.mxu0 0.0
    %3388 = vmatprep.subr.mxu0 0.0
    %3389 = vmatpush2.msra.mxu0 0.0
    %3390 = vmatprep.subr.mxu0 0.0
    %3391 = vmatpush2.msra.mxu0 0.0
    %3392 = vmatprep.subr.mxu0 0.0
    %3393 = vmatpush2.msra.mxu0 0.0
    %3394 = vmatprep.subr.mxu0 0.0
    %3395 = vmatpush2.msra.mxu0 0.0
    %3396 = vmatprep.subr.mxu0 0.0
    %3397 = vmatpush2.msra.mxu0 0.0
    %3398 = vmatprep.subr.mxu0 0.0
    %3399 = vmatpush2.msra.mxu0 0.0
    %3400 = vmatprep.subr.mxu0 0.0
    %3401 = vmatpush2.msra.mxu0 0.0
    %3402 = vmatprep.subr.mxu0 0.0
    %3403 = vmatpush2.msra.mxu0 0.0
    %3404 = vmatprep.subr.mxu0 0.0
    %3405 = vmatpush2.msra.mxu0 0.0
    %3406 = vmatprep.subr.mxu0 0.0
    %3407 = vmatpush2.msra.mxu0 0.0
    %3408 = vmatprep.mubr.f32.mxu0 0.0
    %3409 = vmatmul.mubr.f32.gmra.mxu0 %v3339
    %v3410 = vpop.f32.mrf.mxu0
    %v3411 = vadd.f32 0.0, %v3410
    %v3412 = vpop.f32.mrf.mxu0
    %3413 = vmatprep.mubr.f32.mxu0 0.0
    %3414 = vmatmul.mubr.f32.gmra.mxu0 %v3342
    %v3415 = vpop.f32.mrf.mxu0
    %v3416 = vadd.f32 0.0, %v3415
    %v3417 = vpop.f32.mrf.mxu0
    %3418 = vdwg.mxu0
    %v3419 = vadd.f32 %v3334, %v3411
    %v3420 = vadd.f32 %v3335, %v3416
    %v3421 = vsel %vm2977, %v3419, 0.0
    %v3422 = vsel %vm2977, %v3420, 0.0
    %v3423 = vadd.f32 %v3421, %v3422
    %v3424 = vrot.slane %v3423, 4
    %v3425 = vadd.f32 %v3423, %v3424
    %v3426 = vrot.slane %v3425, 2
    %v3427 = vadd.f32 %v3425, %v3426
    %v3428 = vrot.slane %v3427, 1
    %v3429 = vadd.f32 %v3427, %v3428
    %v3430 = vadd.f32 %v2987, %v3429
    %v3431 = vmul.f32 %v3419, %v3419
    %v3432 = vmul.f32 %v3420, %v3420
    %v3433 = vsel %vm2977, %v3431, 0.0
    %v3434 = vsel %vm2977, %v3432, 0.0
    %v3435 = vadd.f32 %v3433, %v3434
    %v3436 = vrot.slane %v3435, 4
    %v3437 = vadd.f32 %v3435, %v3436
    %v3438 = vrot.slane %v3437, 2
    %v3439 = vadd.f32 %v3437, %v3438
    %v3440 = vrot.slane %v3439, 1
    %v3441 = vadd.f32 %v3439, %v3440
    %v3442 = vadd.f32 %v2999, %v3441
    %v3443 = vrcp.pop 32.0
    %v3444 = vmul.f32 %v3430, %v3443
    %v3445 = vmul.f32 %v3442, %v3443
    %v3446 = vmul.f32 %v3444, %v3444
    %v3447 = vsub.f32 %v3445, %v3446
    %v3448 = vadd.f32 %v3447, 1e-05
    %v3449 = vrsqrt.pop %v3448
    %v3450 = vld [vmem:[%s5] sm:$0x1]
    %v3451 = vmul.f32 %v3449, %v3450
    %v3452 = vld [vmem:[%s6] sm:$0x1]
    %v3453 = vmul.f32 %v3444, %v3451
    %v3454 = vsub.f32 %v3452, %v3453
    %v3455 = vld [vmem:[%s7] sm:$0xff]
    %v3456 = vld [vmem:[%s7 + $0x8] sm:$0xff]
    %v3457 = vlaneseq
    %v3458 = vshrl.u32 %v3457, 7
    %v3459 = vsub.s32 0, %v3458
    %v3460 = vrot.slane %v3451, %v3459
    %v3461 = vmul.f32 %v2975, %v3460
    %v3462 = vmul.f32 %v2976, %v3460
    %v3464 = vlaneseq
    %v3465 = vshrl.u32 %v3464, 7
    %v3466 = vsub.s32 0, %v3465
    %v3467 = vrot.slane %v3454, %v3466
    %v3469 = vadd.f32 %v3461, %v3467
    %v3470 = vadd.f32 %v3462, %v3467
    %v3471 = vxor.u32 %v3469, 2147483648
    %v3472 = vxor.u32 %v3470, 2147483648
    %v3473 = vmul.f32 %v3471, 1.442695
    %v3474 = vpow.pop %v3473
    %v3475 = vmul.f32 %v3472, 1.442695
    %v3476 = vpow.pop %v3475
    %v3477 = vadd.f32 %v3474, 1.0
    %v3478 = vadd.f32 %v3476, 1.0
    %v3479 = vrcp.pop %v3477
    %v3480 = vmul.f32 1.0, %v3479
    %v3481 = vrcp.pop %v3478
    %v3482 = vmul.f32 1.0, %v3481
    %v3483 = vmul.f32 %v3469, %v3480
    %v3484 = vmul.f32 %v3470, %v3482
    %v3485 = vadd.f32 %v3483, %v3455
    %v3486 = vadd.f32 %v3484, %v3456
    %3487 = vst.msk [vmem:[#allocation3] sm:$0xff] %vm2977, %v3485
    %3488 = vst.msk [vmem:[#allocation3 + $0x8] sm:$0xff] %vm2977, %v3486
    %v3489 = vmul.f32 %v3419, %v3460
    %v3490 = vmul.f32 %v3420, %v3460
    %v3491 = vadd.f32 %v3489, %v3467
    %v3492 = vadd.f32 %v3490, %v3467
    %v3493 = vxor.u32 %v3491, 2147483648
    %v3494 = vxor.u32 %v3492, 2147483648
    %v3495 = vmul.f32 %v3493, 1.442695
    %v3496 = vpow.pop %v3495
    %v3497 = vmul.f32 %v3494, 1.442695
    %v3498 = vpow.pop %v3497
    %v3499 = vadd.f32 %v3496, 1.0
    %v3500 = vadd.f32 %v3498, 1.0
    %v3501 = vrcp.pop %v3499
    %v3502 = vmul.f32 1.0, %v3501
    %v3503 = vrcp.pop %v3500
    %v3504 = vmul.f32 1.0, %v3503
    %v3505 = vmul.f32 %v3491, %v3502
    %v3506 = vmul.f32 %v3492, %v3504
    %v3507 = vadd.f32 %v3505, %v3455
    %v3508 = vadd.f32 %v3506, %v3456
    %s3509 = scalar_lea.vmem [#allocation3], 16
    %3510 = vst.msk [vmem:[%s3509] sm:$0xff] %vm2977, %v3507
    %3511 = vst.msk [vmem:[%s3509 + $0x8] sm:$0xff] %vm2977, %v3508
    // Predicated region
    $region34: #{eeg_encoder_forward.1} parent=1 // pred_check
      _
    $region35: #{eeg_encoder_forward.1} parent=1 // pred_check_branch
      %3513 = sbr.rel (0) target = $region37
    $region36: #{eeg_encoder_forward.1} parent=1 // pred_region
      %s3515 = ssub.s32 512, 512
      %3516 = vsyncadd [#allocation4], %s3515
      %s3517 = sshll.u32 [#allocation3], 4
      %s3518 = int_to_ptr.vmem [resolvable:$true] %s3517
      %3523 = dma.vmem_to_hbm [thread:$0]  %s3518, 512, %s8, [#allocation4], 128, 128, 8
    $region37: #{eeg_encoder_forward.1} parent=1 // pred_fallthru
      _
    // Predicated region
    $region38: #{eeg_encoder_forward.1} parent=1 // pred_check
      _
    $region39: #{eeg_encoder_forward.1} parent=1 // pred_check_branch
      %3525 = sbr.rel (0) target = $region41
    $region40: #{eeg_encoder_forward.1} parent=1 // pred_region
      %3526 = dma.done [#allocation4], 512
    $region41: #{eeg_encoder_forward.1} parent=1 // pred_fallthru
      _
    %3527 = vsyncpa [#allocation4], 1

</llo_original>
